<compile_context>
chip_gen: v5e
topology: v5e:2x2
jax: 0.10.0
libtpu: 0.0.40
codegen_flags: <defaults>
</compile_context>

<pallas_src>
import functools
import math

import jax
import jax.numpy as jnp
import numpy as np
from jax.experimental import pallas as pl
from jax.experimental.pallas import tpu as pltpu

LN_EPS = 1e-5      # nn.LayerNorm / TransformerEncoderLayer layer_norm_eps default
BN_EPS = 1e-5      # nn.BatchNorm1d eps default
NEG_INF = -1e9     # additive key-padding mask value
LANE = 128
SUBLANE = 8


# ----------------------------------------------------------------------------- helpers
def _layernorm(v, w, b):
    mu = jnp.mean(v, axis=-1, keepdims=True)
    var = jnp.mean((v - mu) ** 2, axis=-1, keepdims=True)
    return (v - mu) * jax.lax.rsqrt(var + LN_EPS) * w + b


def _gelu_tanh(x):
    # TODO(synk): PyTorch activation='gelu' is the exact erf GELU; the tanh approximation
    # is used because erf lowering is not guaranteed through Mosaic.
    return 0.5 * x * (1.0 + jnp.tanh(0.7978845608028654 * (x + 0.044715 * x * x * x)))


# ------------------------------------------------- fused transformer (layer-grid kernel)
def _fused_transformer_kernel(
        x_ref, mask_ref,
        wqkv_ref, bqkv_ref, wo_ref, bo_ref,
        ln1w_ref, ln1b_ref, ln2w_ref, ln2b_ref,
        w1_ref, b1_ref, w2_ref, b2_ref,
        hlnw_ref, hlnb_ref, bnm_ref, bnv_ref, bnw_ref, bnb_ref,
        fcw_ref, fcb_ref,
        o_ref,
        x_scratch,
        *, num_heads, batch, seq_pad):
    """One grid step == one encoder layer; head computed on the last step."""
    bf16 = jnp.bfloat16
    layer = pl.program_id(0)
    n_layers = pl.num_programs(0)

    B, Tp, H = batch, seq_pad, num_heads

    @pl.when(layer == 0)
    def _():
        x_scratch[...] = x_ref[...]                  # activations resident in VMEM scratch

    x = x_scratch[...]                               # (B*Tp, D) f32, rows = batch-major
    BT, D = x.shape
    dh = D // H
    scale = 1.0 / math.sqrt(dh)

    mask = mask_ref[...]                             # (H*B, Tp) additive, head-major rows

    # ---------------- pre-norm multi-head self-attention ----------------
    h = _layernorm(x, ln1w_ref[...], ln1b_ref[...])                        # (BT, D) f32
    # Fused QKV projection: one lane-dense (BT, D) x (D, 3D) MXU matmul.
    qkv = jnp.dot(h.astype(bf16), wqkv_ref[...],
                  preferred_element_type=jnp.float32) + bqkv_ref[...]      # (BT, 3D)
    q3 = qkv[:, :D].reshape(B, Tp, D)
    k3 = qkv[:, D:2 * D].reshape(B, Tp, D)
    v3 = qkv[:, 2 * D:].reshape(B, Tp, D)

    def split_heads(t3):                             # (B, Tp, D) -> (H*B, Tp, dh), head-major
        return jnp.concatenate(
            [t3[:, :, hh * dh:(hh + 1) * dh] for hh in range(H)], axis=0)

    qh = split_heads(q3).astype(bf16)
    kh = split_heads(k3).astype(bf16)
    vh = split_heads(v3).astype(bf16)

    # Batched attention over the fused (H*B) dim -- no per-batch Python loop.
    s = jnp.einsum('ntd,nsd->nts', qh, kh,
                   preferred_element_type=jnp.float32) * scale             # (H*B, Tp, Tp)
    s = s + mask[:, None, :]                         # broadcast over query rows
    s = s - jnp.max(s, axis=-1, keepdims=True)
    p = jnp.exp(s)
    p = p * pl.reciprocal(jnp.sum(p, axis=-1, keepdims=True), approx=True)
    ctx = jnp.einsum('nts,nsd->ntd', p.astype(bf16), vh,
                     preferred_element_type=jnp.float32)                   # (H*B, Tp, dh)

    # Lane-concat heads back to (BT, D), then one full (D, D) output projection.
    ctx_m = jnp.concatenate([ctx[hh * B:(hh + 1) * B] for hh in range(H)],
                            axis=-1).reshape(BT, D)
    attn = jnp.dot(ctx_m.astype(bf16), wo_ref[...],
                   preferred_element_type=jnp.float32) + bo_ref[...]
    x = x + attn

    # ---------------- pre-norm feed-forward ----------------
    h2 = _layernorm(x, ln2w_ref[...], ln2b_ref[...])
    ff = jnp.dot(h2.astype(bf16), w1_ref[...],
                 preferred_element_type=jnp.float32) + b1_ref[...]
    ff = _gelu_tanh(ff)
    ff = jnp.dot(ff.astype(bf16), w2_ref[...],
                 preferred_element_type=jnp.float32) + b2_ref[...]
    x = x + ff
    x_scratch[...] = x

    # ---------------- classification head on the CLS rows (last layer only) ------------
    @pl.when(layer == n_layers - 1)
    def _():
        # Tp is a sublane multiple, so each single-row slice is tile-aligned.
        # TODO(synk): for large B read the CLS rows with one strided pl.ds(0, B, stride=Tp).
        cls = jnp.concatenate([x[b * Tp:b * Tp + 1, :] for b in range(B)], axis=0)  # (B, D)
        y = _layernorm(cls, hlnw_ref[...], hlnb_ref[...])
        # BatchNorm1d in eval mode with running stats (Dropout is identity in eval).
        y = (y - bnm_ref[...]) * jax.lax.rsqrt(bnv_ref[...] + BN_EPS) * bnw_ref[...] + bnb_ref[...]
        # Lane-dense padded output: (B, 128); true logits are the first num_classes columns.
        o_ref[...] = jnp.dot(y.astype(bf16), fcw_ref[...],
                             preferred_element_type=jnp.float32) + fcb_ref[...]


# ------------------------------------------------------------------- parameter creation
def sinusoidal_pe(num_positions, d_model):
    position = jnp.arange(num_positions, dtype=jnp.float32)[:, None]
    div_term = jnp.exp(jnp.arange(0, d_model, 2, dtype=jnp.float32)
                       * (-math.log(10000.0) / d_model))
    pe = jnp.zeros((num_positions, d_model), jnp.float32)
    pe = pe.at[:, 0::2].set(jnp.sin(position * div_term))
    pe = pe.at[:, 1::2].set(jnp.cos(position * div_term))
    return pe


def init_params(seed, vocab_size, embed_dim, num_features, num_heads,
                num_layers, num_classes, d_ff, max_seq_len):
    d_model = embed_dim if num_features == 1 else embed_dim * num_features
    keys = iter(jax.random.split(jax.random.PRNGKey(seed), 3 + 4 * num_layers))
    std = 0.1

    emb = jax.random.normal(next(keys), (vocab_size, embed_dim), jnp.float32) * std
    emb = emb.at[0].set(0.0)                       # padding_idx=0
    cls_token = jax.random.normal(next(keys), (1, 1, d_model), jnp.float32) * 0.02

    layers = []
    for _ in range(num_layers):
        layers.append(dict(
            wqkv=jax.random.normal(next(keys), (d_model, 3 * d_model), jnp.float32) * std,
            bqkv=jnp.zeros((1, 3 * d_model), jnp.float32),
            wo=jax.random.normal(next(keys), (d_model, d_model), jnp.float32) * std,
            bo=jnp.zeros((1, d_model), jnp.float32),
            ln1w=jnp.ones((1, d_model), jnp.float32),
            ln1b=jnp.zeros((1, d_model), jnp.float32),
            ln2w=jnp.ones((1, d_model), jnp.float32),
            ln2b=jnp.zeros((1, d_model), jnp.float32),
            w1=jax.random.normal(next(keys), (d_model, d_ff), jnp.float32) * std,
            b1=jnp.zeros((1, d_ff), jnp.float32),
            w2=jax.random.normal(next(keys), (d_ff, d_model), jnp.float32) * std,
            b2=jnp.zeros((1, d_model), jnp.float32),
        ))

    head = dict(
        lnw=jnp.ones((1, d_model), jnp.float32),
        lnb=jnp.zeros((1, d_model), jnp.float32),
        bn_mean=jnp.zeros((1, d_model), jnp.float32),
        bn_var=jnp.ones((1, d_model), jnp.float32),
        bnw=jnp.ones((1, d_model), jnp.float32),
        bnb=jnp.zeros((1, d_model), jnp.float32),
        fcw=jax.random.normal(next(keys), (d_model, num_classes), jnp.float32) * std,
        fcb=jnp.zeros((1, num_classes), jnp.float32),
    )

    return dict(
        embedding=emb, cls_token=cls_token, layers=layers, head=head,
        pe=sinusoidal_pe(max_seq_len + 1, d_model),
        num_features=num_features, num_heads=num_heads,
    )


def pack_kernel_params(params):
    """Stack per-layer weights along a leading layer axis (for layer-streaming BlockSpecs),
    cast matmul weights to bf16, lane-pad the classifier."""
    layers, head = params["layers"], params["head"]
    D = layers[0]["wqkv"].shape[0]
    bf = jnp.bfloat16

    def stack(name, dt):
        return jnp.stack([lw[name] for lw in layers]).astype(dt)

    C = head["fcw"].shape[1]
    CP = max(LANE, ((C + LANE - 1) // LANE) * LANE)
    fcw_pad = jnp.zeros((D, CP), jnp.float32).at[:, :C].set(head["fcw"])
    fcb_pad = jnp.zeros((1, CP), jnp.float32).at[:, :C].set(head["fcb"])

    return dict(
        wqkv=stack("wqkv", bf), bqkv=stack("bqkv", jnp.float32),
        wo=stack("wo", bf), bo=stack("bo", jnp.float32),
        ln1w=stack("ln1w", jnp.float32), ln1b=stack("ln1b", jnp.float32),
        ln2w=stack("ln2w", jnp.float32), ln2b=stack("ln2b", jnp.float32),
        w1=stack("w1", bf), b1=stack("b1", jnp.float32),
        w2=stack("w2", bf), b2=stack("b2", jnp.float32),
        hlnw=head["lnw"], hlnb=head["lnb"],
        bnm=head["bn_mean"], bnv=head["bn_var"], bnw=head["bnw"], bnb=head["bnb"],
        fcw=fcw_pad.astype(bf), fcb=fcb_pad,
        num_classes=C, c_pad=CP,
    )


# -------------------------------------------------------------------------- forward pass
def transformer_classifier_forward(params, kp, ids):
    """ids: (B, S) int32 token ids, 0 = padding."""
    B, S = ids.shape
    nf = params["num_features"]
    H = params["num_heads"]
    L = len(params["layers"])

    emb = params["embedding"][ids]                             # (B, S, E)
    if nf > 1:
        # x.unsqueeze(-1).repeat(1,1,nf) feeds identical ids through the same table.
        emb = jnp.concatenate([emb] * nf, axis=-1)             # (B, S, D)
    D = emb.shape[-1]
    T = S + 1
    Tp = ((T + SUBLANE - 1) // SUBLANE) * SUBLANE              # pad CLS+seq to sublane mult
    F = kp["w1"].shape[2]
    CP = kp["c_pad"]

    cls = jnp.broadcast_to(params["cls_token"].reshape(1, 1, D), (B, 1, D))
    h = jnp.concatenate([cls, emb], axis=1) + params["pe"][:T][None, :, :]   # (B, T, D)
    if Tp > T:
        h = jnp.concatenate([h, jnp.zeros((B, Tp - T, D), h.dtype)], axis=1)
    x_flat = h.reshape(B * Tp, D).astype(jnp.float32)          # batch folded into rows

    # Additive key-padding mask, padded positions (real pads + Tp padding) = -1e9.
    pad = jnp.concatenate([jnp.zeros((B, 1), dtype=jnp.bool_), ids == 0,
                           jnp.ones((B, Tp - T), dtype=jnp.bool_)], axis=1)  # (B, Tp)
    mask_b = jnp.where(pad, NEG_INF, 0.0).astype(jnp.float32)
    mask_hb = jnp.tile(mask_b, (H, 1))                         # (H*B, Tp), head-major rows

    # Layer-streaming grid: one grid step per encoder layer ("arbitrary"), weights tiled
    # (1 layer per block, double-buffered), activations in a VMEM scratch across steps.
    grid_spec = pltpu.PrefetchScalarGridSpec(
        num_scalar_prefetch=0,
        grid=(L,),
        in_specs=[
            pl.BlockSpec((B * Tp, D), lambda l: (0, 0)),            # x (resident)
            pl.BlockSpec((H * B, Tp), lambda l: (0, 0)),            # mask (resident)
            pl.BlockSpec((None, D, 3 * D), lambda l: (l, 0, 0)),    # wqkv
            pl.BlockSpec((None, 1, 3 * D), lambda l: (l, 0, 0)),    # bqkv
            pl.BlockSpec((None, D, D), lambda l: (l, 0, 0)),        # wo
            pl.BlockSpec((None, 1, D), lambda l: (l, 0, 0)),        # bo
            pl.BlockSpec((None, 1, D), lambda l: (l, 0, 0)),        # ln1w
            pl.BlockSpec((None, 1, D), lambda l: (l, 0, 0)),        # ln1b
            pl.BlockSpec((None, 1, D), lambda l: (l, 0, 0)),        # ln2w
            pl.BlockSpec((None, 1, D), lambda l: (l, 0, 0)),        # ln2b
            pl.BlockSpec((None, D, F), lambda l: (l, 0, 0)),        # w1
            pl.BlockSpec((None, 1, F), lambda l: (l, 0, 0)),        # b1
            pl.BlockSpec((None, F, D), lambda l: (l, 0, 0)),        # w2
            pl.BlockSpec((None, 1, D), lambda l: (l, 0, 0)),        # b2
            pl.BlockSpec((1, D), lambda l: (0, 0)),                 # head LN w
            pl.BlockSpec((1, D), lambda l: (0, 0)),                 # head LN b
            pl.BlockSpec((1, D), lambda l: (0, 0)),                 # bn mean
            pl.BlockSpec((1, D), lambda l: (0, 0)),                 # bn var
            pl.BlockSpec((1, D), lambda l: (0, 0)),                 # bn w
            pl.BlockSpec((1, D), lambda l: (0, 0)),                 # bn b
            pl.BlockSpec((D, CP), lambda l: (0, 0)),                # fc w (lane-padded)
            pl.BlockSpec((1, CP), lambda l: (0, 0)),                # fc b (lane-padded)
        ],
        out_specs=pl.BlockSpec((B, CP), lambda l: (0, 0)),
        scratch_shapes=[pltpu.VMEM((B * Tp, D), jnp.float32)],
    )

    # TODO(synk): on v7x (2 TCs) add a "parallel" grid axis over batch / (B*H) blocks and
    # re-derive vmem_limit_bytes (<= ~48-56 MiB) when scaling the model; keep the single
    # sequential layer grid on v5e/v6e.
    out_pad = pl.pallas_call(
        functools.partial(_fused_transformer_kernel,
                          num_heads=H, batch=B, seq_pad=Tp),
        out_shape=jax.ShapeDtypeStruct((B, CP), jnp.float32),
        grid_spec=grid_spec,
        compiler_params=pltpu.CompilerParams(
            dimension_semantics=("arbitrary",),
            vmem_limit_bytes=32 * 1024 * 1024),
    )(x_flat, mask_hb,
      kp["wqkv"], kp["bqkv"], kp["wo"], kp["bo"],
      kp["ln1w"], kp["ln1b"], kp["ln2w"], kp["ln2b"],
      kp["w1"], kp["b1"], kp["w2"], kp["b2"],
      kp["hlnw"], kp["hlnb"], kp["bnm"], kp["bnv"], kp["bnw"], kp["bnb"],
      kp["fcw"], kp["fcb"])
    return out_pad[:, :kp["num_classes"]]


# ------------------------------------------------------------------ pure-JAX reference
# Mirrors the kernel's mixed-precision policy (bf16 matmul inputs, f32 accumulation /
# elementwise, tanh GELU).  The kernel's approx reciprocal in softmax is the only
# remaining difference, covered by the test tolerance.
def _ref_layer(x, mask_add, lw, num_heads):
    bf = jnp.bfloat16
    B, T, D = x.shape
    dh = D // num_heads
    h = _layernorm(x, lw["ln1w"][0], lw["ln1b"][0])
    qkv = jnp.dot(h.reshape(B * T, D).astype(bf), lw["wqkv"].astype(bf),
                  preferred_element_type=jnp.float32).reshape(B, T, 3 * D) + lw["bqkv"][0]
    q, k, v = qkv[..., :D], qkv[..., D:2 * D], qkv[..., 2 * D:]
    q = q.reshape(B, T, num_heads, dh).transpose(0, 2, 1, 3).astype(bf)
    k = k.reshape(B, T, num_heads, dh).transpose(0, 2, 1, 3).astype(bf)
    v = v.reshape(B, T, num_heads, dh).transpose(0, 2, 1, 3).astype(bf)
    s = jnp.einsum("bhqd,bhkd->bhqk", q, k,
                   preferred_element_type=jnp.float32) / math.sqrt(dh)
    s = s + mask_add[:, None, :, :]
    p = jax.nn.softmax(s, axis=-1)
    a = jnp.einsum("bhqk,bhkd->bhqd", p.astype(bf), v,
                   preferred_element_type=jnp.float32)
    a = a.transpose(0, 2, 1, 3).reshape(B * T, D)
    attn = jnp.dot(a.astype(bf), lw["wo"].astype(bf),
                   preferred_element_type=jnp.float32).reshape(B, T, D) + lw["bo"][0]
    x1 = x + attn
    h2 = _layernorm(x1, lw["ln2w"][0], lw["ln2b"][0])
    ff = jnp.dot(h2.reshape(B * T, D).astype(bf), lw["w1"].astype(bf),
                 preferred_element_type=jnp.float32) + lw["b1"][0]
    ff = _gelu_tanh(ff)
    ff = jnp.dot(ff.astype(bf), lw["w2"].astype(bf),
                 preferred_element_type=jnp.float32).reshape(B, T, D) + lw["b2"][0]
    return x1 + ff


def reference_forward(params, ids):
    B, S = ids.shape
    nf = params["num_features"]
    emb = params["embedding"][ids]
    if nf > 1:
        emb = jnp.concatenate([emb] * nf, axis=-1)
    D = emb.shape[-1]
    T = S + 1
    cls = jnp.broadcast_to(params["cls_token"].reshape(1, 1, D), (B, 1, D))
    h = jnp.concatenate([cls, emb], axis=1) + params["pe"][:T][None, :, :]
    pad = jnp.concatenate([jnp.zeros((B, 1), dtype=jnp.bool_), ids == 0], axis=1)
    mask_add = jnp.where(pad, NEG_INF, 0.0).astype(jnp.float32)[:, None, :]
    for lw in params["layers"]:
        h = _ref_layer(h, mask_add, lw, params["num_heads"])
    x = h[:, 0, :]
    hp = params["head"]
    y = _layernorm(x, hp["lnw"][0], hp["lnb"][0])
    y = (y - hp["bn_mean"][0]) * jax.lax.rsqrt(hp["bn_var"][0] + BN_EPS) * hp["bnw"][0] + hp["bnb"][0]
    return jnp.dot(y.astype(jnp.bfloat16), hp["fcw"].astype(jnp.bfloat16),
                   preferred_element_type=jnp.float32) + hp["fcb"][0]


# --------------------------------------------------------------------------------- main
if __name__ == "__main__":
    # Small, TPU-friendly hyperparameters consistent with the module's __init__:
    vocab_size, embed_dim, num_features = 32, 64, 2          # d_model = 128
    num_heads, num_layers, num_classes, d_ff = 4, 2, 2, 256
    B, S = 2, 8

    params = init_params(0, vocab_size, embed_dim, num_features, num_heads,
                         num_layers, num_classes, d_ff, max_seq_len=S)
    kparams = pack_kernel_params(params)

    key = jax.random.PRNGKey(0)
    ids = jax.random.randint(key, (B, S), 1, vocab_size).astype(jnp.int32)
    ids = ids.at[1, -2:].set(0)     # padding tokens to exercise key_padding_mask

    logits = transformer_classifier_forward(params, kparams, ids)
    logits = jax.block_until_ready(logits)

    ref = reference_forward(params, ids)
    np.testing.assert_allclose(np.asarray(logits), np.asarray(ref), rtol=2e-2, atol=2e-2)

    print("KERNEL_OK")
</pallas_src>

<mosaic_0001>
module attributes {stable_mosaic.version = 11 : i64} {
  func.func @_fused_transformer_kernel(%arg0: i32, %arg1: memref<32x128xf32, #tpu.memory_space<vmem>>, %arg2: memref<8x16xf32, #tpu.memory_space<vmem>>, %arg3: memref<1x128x384xbf16, #tpu.memory_space<vmem>>, %arg4: memref<1x1x384xf32, #tpu.memory_space<vmem>>, %arg5: memref<1x128x128xbf16, #tpu.memory_space<vmem>>, %arg6: memref<1x1x128xf32, #tpu.memory_space<vmem>>, %arg7: memref<1x1x128xf32, #tpu.memory_space<vmem>>, %arg8: memref<1x1x128xf32, #tpu.memory_space<vmem>>, %arg9: memref<1x1x128xf32, #tpu.memory_space<vmem>>, %arg10: memref<1x1x128xf32, #tpu.memory_space<vmem>>, %arg11: memref<1x128x256xbf16, #tpu.memory_space<vmem>>, %arg12: memref<1x1x256xf32, #tpu.memory_space<vmem>>, %arg13: memref<1x256x128xbf16, #tpu.memory_space<vmem>>, %arg14: memref<1x1x128xf32, #tpu.memory_space<vmem>>, %arg15: memref<1x128xf32, #tpu.memory_space<vmem>>, %arg16: memref<1x128xf32, #tpu.memory_space<vmem>>, %arg17: memref<1x128xf32, #tpu.memory_space<vmem>>, %arg18: memref<1x128xf32, #tpu.memory_space<vmem>>, %arg19: memref<1x128xf32, #tpu.memory_space<vmem>>, %arg20: memref<1x128xf32, #tpu.memory_space<vmem>>, %arg21: memref<128x128xbf16, #tpu.memory_space<vmem>>, %arg22: memref<1x128xf32, #tpu.memory_space<vmem>>, %arg23: memref<2x128xf32, #tpu.memory_space<vmem>>, %arg24: memref<32x128xf32, #tpu.memory_space<vmem>>) attributes {dimension_semantics = [#tpu.dimension_semantics<arbitrary>], iteration_bounds = array<i64: 2>, scalar_prefetch = 0 : i64, scratch_operands = 1 : i64, tpu.core_type = #tpu.core_type<tc>, window_params = [{pipeline_mode = #tpu.pipeline_mode<synchronous>, transform_indices = @transform_0, window_bounds = array<i64: 32, 128>}, {pipeline_mode = #tpu.pipeline_mode<synchronous>, transform_indices = @transform_1, window_bounds = array<i64: 8, 16>}, {transform_indices = @transform_2, window_bounds = array<i64: 1, 128, 384>}, {transform_indices = @transform_3, window_bounds = array<i64: 1, 1, 384>}, {transform_indices = @transform_4, window_bounds = array<i64: 1, 128, 128>}, {transform_indices = @transform_5, window_bounds = array<i64: 1, 1, 128>}, {transform_indices = @transform_6, window_bounds = array<i64: 1, 1, 128>}, {transform_indices = @transform_7, window_bounds = array<i64: 1, 1, 128>}, {transform_indices = @transform_8, window_bounds = array<i64: 1, 1, 128>}, {transform_indices = @transform_9, window_bounds = array<i64: 1, 1, 128>}, {transform_indices = @transform_10, window_bounds = array<i64: 1, 128, 256>}, {transform_indices = @transform_11, window_bounds = array<i64: 1, 1, 256>}, {transform_indices = @transform_12, window_bounds = array<i64: 1, 256, 128>}, {transform_indices = @transform_13, window_bounds = array<i64: 1, 1, 128>}, {pipeline_mode = #tpu.pipeline_mode<synchronous>, transform_indices = @transform_14, window_bounds = array<i64: 1, 128>}, {pipeline_mode = #tpu.pipeline_mode<synchronous>, transform_indices = @transform_15, window_bounds = array<i64: 1, 128>}, {pipeline_mode = #tpu.pipeline_mode<synchronous>, transform_indices = @transform_16, window_bounds = array<i64: 1, 128>}, {pipeline_mode = #tpu.pipeline_mode<synchronous>, transform_indices = @transform_17, window_bounds = array<i64: 1, 128>}, {pipeline_mode = #tpu.pipeline_mode<synchronous>, transform_indices = @transform_18, window_bounds = array<i64: 1, 128>}, {pipeline_mode = #tpu.pipeline_mode<synchronous>, transform_indices = @transform_19, window_bounds = array<i64: 1, 128>}, {pipeline_mode = #tpu.pipeline_mode<synchronous>, transform_indices = @transform_20, window_bounds = array<i64: 128, 128>}, {pipeline_mode = #tpu.pipeline_mode<synchronous>, transform_indices = @transform_21, window_bounds = array<i64: 1, 128>}, {pipeline_mode = #tpu.pipeline_mode<synchronous>, transform_indices = @transform_22, window_bounds = array<i64: 2, 128>}]} {
    %c0_i32 = arith.constant 0 : i32
    %0 = arith.cmpi eq, %arg0, %c0_i32 : i32
    %1 = arith.extui %0 : i1 to i32
    %c0_i32_0 = arith.constant 0 : i32
    %2 = arith.cmpi ne, %1, %c0_i32_0 : i32
    scf.if %2 {
      %c0_65 = arith.constant 0 : index
      %c0_66 = arith.constant 0 : index
      %156 = vector.load %arg1[%c0_65, %c0_66] : memref<32x128xf32, #tpu.memory_space<vmem>>, vector<32x128xf32>
      %c0_67 = arith.constant 0 : index
      %c0_68 = arith.constant 0 : index
      %157 = vector.load %arg24[%c0_67, %c0_68] : memref<32x128xf32, #tpu.memory_space<vmem>>, vector<32x128xf32>
      tpu.vector_store %arg24[%c0_67, %c0_68], %156 {strides = array<i32>} : memref<32x128xf32, #tpu.memory_space<vmem>>, vector<32x128xf32>,
    } else {
    }
    %c0 = arith.constant 0 : index
    %c0_1 = arith.constant 0 : index
    %3 = vector.load %arg24[%c0, %c0_1] : memref<32x128xf32, #tpu.memory_space<vmem>>, vector<32x128xf32>
    %c0_2 = arith.constant 0 : index
    %c0_3 = arith.constant 0 : index
    %4 = vector.load %arg2[%c0_2, %c0_3] : memref<8x16xf32, #tpu.memory_space<vmem>>, vector<8x16xf32>
    %c0_4 = arith.constant 0 : index
    %c0_5 = arith.constant 0 : index
    %c0_6 = arith.constant 0 : index
    %5 = vector.load %arg7[%c0_4, %c0_5, %c0_6] : memref<1x1x128xf32, #tpu.memory_space<vmem>>, vector<1x1x128xf32>
    %6 = vector.shape_cast %5 : vector<1x1x128xf32> to vector<1x128xf32>
    %c0_7 = arith.constant 0 : index
    %c0_8 = arith.constant 0 : index
    %c0_9 = arith.constant 0 : index
    %7 = vector.load %arg8[%c0_7, %c0_8, %c0_9] : memref<1x1x128xf32, #tpu.memory_space<vmem>>, vector<1x1x128xf32>
    %8 = vector.shape_cast %7 : vector<1x1x128xf32> to vector<1x128xf32>
    %cst = arith.constant dense<0.000000e+00> : vector<32xf32>
    %9 = vector.multi_reduction <add>, %3, %cst [1] : vector<32x128xf32> to vector<32xf32>
    %10 = vector.shape_cast %9 : vector<32xf32> to vector<32x1xf32>
    %cst_10 = arith.constant 1.280000e+02 : f32
    %11 = vector.broadcast %cst_10 : f32 to vector<32x1xf32>
    %12 = arith.divf %10, %11 : vector<32x1xf32>
    %13 = vector.broadcast %12 : vector<32x1xf32> to vector<32x128xf32>
    %14 = arith.subf %3, %13 : vector<32x128xf32>
    %15 = arith.mulf %14, %14 : vector<32x128xf32>
    %cst_11 = arith.constant dense<0.000000e+00> : vector<32xf32>
    %16 = vector.multi_reduction <add>, %15, %cst_11 [1] : vector<32x128xf32> to vector<32xf32>
    %17 = vector.shape_cast %16 : vector<32xf32> to vector<32x1xf32>
    %cst_12 = arith.constant 1.280000e+02 : f32
    %18 = vector.broadcast %cst_12 : f32 to vector<32x1xf32>
    %19 = arith.divf %17, %18 : vector<32x1xf32>
    %20 = vector.broadcast %12 : vector<32x1xf32> to vector<32x128xf32>
    %21 = arith.subf %3, %20 : vector<32x128xf32>
    %cst_13 = arith.constant 9.99999974E-6 : f32
    %22 = vector.broadcast %cst_13 : f32 to vector<32x1xf32>
    %23 = arith.addf %19, %22 : vector<32x1xf32>
    %24 = math.rsqrt %23 : vector<32x1xf32>
    %25 = vector.broadcast %24 : vector<32x1xf32> to vector<32x128xf32>
    %26 = arith.mulf %21, %25 : vector<32x128xf32>
    %27 = vector.broadcast %6 : vector<1x128xf32> to vector<32x128xf32>
    %28 = arith.mulf %26, %27 : vector<32x128xf32>
    %29 = vector.broadcast %8 : vector<1x128xf32> to vector<32x128xf32>
    %30 = arith.addf %28, %29 : vector<32x128xf32>
    %31 = arith.truncf %30 : vector<32x128xf32> to vector<32x128xbf16>
    %c0_14 = arith.constant 0 : index
    %c0_15 = arith.constant 0 : index
    %c0_16 = arith.constant 0 : index
    %32 = vector.load %arg3[%c0_14, %c0_15, %c0_16] : memref<1x128x384xbf16, #tpu.memory_space<vmem>>, vector<1x128x384xbf16>
    %33 = vector.shape_cast %32 : vector<1x128x384xbf16> to vector<128x384xbf16>
    %cst_17 = arith.constant dense<0.000000e+00> : vector<32x384xf32>
    %34 = tpu.matmul %31, %33, %cst_17 {dimension_numbers = #tpu.dot_dimension_numbers<[1], [0], [0], [1], [0, 0, 1, 1], [], []>} : vector<32x128xbf16>, vector<128x384xbf16>, vector<32x384xf32> -> vector<32x384xf32>
    %c0_18 = arith.constant 0 : index
    %c0_19 = arith.constant 0 : index
    %c0_20 = arith.constant 0 : index
    %35 = vector.load %arg4[%c0_18, %c0_19, %c0_20] : memref<1x1x384xf32, #tpu.memory_space<vmem>>, vector<1x1x384xf32>
    %36 = vector.shape_cast %35 : vector<1x1x384xf32> to vector<1x384xf32>
    %37 = vector.broadcast %36 : vector<1x384xf32> to vector<32x384xf32>
    %38 = arith.addf %34, %37 : vector<32x384xf32>
    %39 = vector.extract_strided_slice %38 {offsets = [0, 0], sizes = [32, 128], strides = [1, 1]} : vector<32x384xf32> to vector<32x128xf32>
    %40 = vector.shape_cast %39 : vector<32x128xf32> to vector<2x16x128xf32>
    %41 = vector.extract_strided_slice %38 {offsets = [0, 128], sizes = [32, 128], strides = [1, 1]} : vector<32x384xf32> to vector<32x128xf32>
    %42 = vector.shape_cast %41 : vector<32x128xf32> to vector<2x16x128xf32>
    %43 = vector.extract_strided_slice %38 {offsets = [0, 256], sizes = [32, 128], strides = [1, 1]} : vector<32x384xf32> to vector<32x128xf32>
    %44 = vector.shape_cast %43 : vector<32x128xf32> to vector<2x16x128xf32>
    %45 = vector.extract_strided_slice %40 {offsets = [0, 0, 0], sizes = [2, 16, 32], strides = [1, 1, 1]} : vector<2x16x128xf32> to vector<2x16x32xf32>
    %46 = vector.extract_strided_slice %40 {offsets = [0, 0, 32], sizes = [2, 16, 32], strides = [1, 1, 1]} : vector<2x16x128xf32> to vector<2x16x32xf32>
    %47 = vector.extract_strided_slice %40 {offsets = [0, 0, 64], sizes = [2, 16, 32], strides = [1, 1, 1]} : vector<2x16x128xf32> to vector<2x16x32xf32>
    %48 = vector.extract_strided_slice %40 {offsets = [0, 0, 96], sizes = [2, 16, 32], strides = [1, 1, 1]} : vector<2x16x128xf32> to vector<2x16x32xf32>
    %49 = tpu.concatenate %45, %46, %47, %48 in 0 : vector<2x16x32xf32>, vector<2x16x32xf32>, vector<2x16x32xf32>, vector<2x16x32xf32> -> vector<8x16x32xf32>
    %50 = arith.truncf %49 : vector<8x16x32xf32> to vector<8x16x32xbf16>
    %51 = vector.extract_strided_slice %42 {offsets = [0, 0, 0], sizes = [2, 16, 32], strides = [1, 1, 1]} : vector<2x16x128xf32> to vector<2x16x32xf32>
    %52 = vector.extract_strided_slice %42 {offsets = [0, 0, 32], sizes = [2, 16, 32], strides = [1, 1, 1]} : vector<2x16x128xf32> to vector<2x16x32xf32>
    %53 = vector.extract_strided_slice %42 {offsets = [0, 0, 64], sizes = [2, 16, 32], strides = [1, 1, 1]} : vector<2x16x128xf32> to vector<2x16x32xf32>
    %54 = vector.extract_strided_slice %42 {offsets = [0, 0, 96], sizes = [2, 16, 32], strides = [1, 1, 1]} : vector<2x16x128xf32> to vector<2x16x32xf32>
    %55 = tpu.concatenate %51, %52, %53, %54 in 0 : vector<2x16x32xf32>, vector<2x16x32xf32>, vector<2x16x32xf32>, vector<2x16x32xf32> -> vector<8x16x32xf32>
    %56 = arith.truncf %55 : vector<8x16x32xf32> to vector<8x16x32xbf16>
    %57 = vector.extract_strided_slice %44 {offsets = [0, 0, 0], sizes = [2, 16, 32], strides = [1, 1, 1]} : vector<2x16x128xf32> to vector<2x16x32xf32>
    %58 = vector.extract_strided_slice %44 {offsets = [0, 0, 32], sizes = [2, 16, 32], strides = [1, 1, 1]} : vector<2x16x128xf32> to vector<2x16x32xf32>
    %59 = vector.extract_strided_slice %44 {offsets = [0, 0, 64], sizes = [2, 16, 32], strides = [1, 1, 1]} : vector<2x16x128xf32> to vector<2x16x32xf32>
    %60 = vector.extract_strided_slice %44 {offsets = [0, 0, 96], sizes = [2, 16, 32], strides = [1, 1, 1]} : vector<2x16x128xf32> to vector<2x16x32xf32>
    %61 = tpu.concatenate %57, %58, %59, %60 in 0 : vector<2x16x32xf32>, vector<2x16x32xf32>, vector<2x16x32xf32>, vector<2x16x32xf32> -> vector<8x16x32xf32>
    %62 = arith.truncf %61 : vector<8x16x32xf32> to vector<8x16x32xbf16>
    "tpu.trace_start"() <{level = 10 : i32, message = "ntd,nsd->nts"}> : () -> ()
    %cst_21 = arith.constant dense<0.000000e+00> : vector<8x16x16xf32>
    %63 = tpu.matmul %50, %56, %cst_21 {dimension_numbers = #tpu.dot_dimension_numbers<[2], [2], [1], [1], [0, 0, 0, 1, 1, 1], [0], [0]>} : vector<8x16x32xbf16>, vector<8x16x32xbf16>, vector<8x16x16xf32> -> vector<8x16x16xf32>
    "tpu.trace_stop"() : () -> ()
    %cst_22 = arith.constant 0.176776692 : f32
    %64 = vector.broadcast %cst_22 : f32 to vector<8x16x16xf32>
    %65 = arith.mulf %63, %64 : vector<8x16x16xf32>
    %66 = vector.shape_cast %4 : vector<8x16xf32> to vector<8x1x16xf32>
    %67 = vector.broadcast %66 : vector<8x1x16xf32> to vector<8x16x16xf32>
    %68 = arith.addf %65, %67 : vector<8x16x16xf32>
    %cst_23 = arith.constant dense<0xFF800000> : vector<8x16xf32>
    %69 = vector.multi_reduction <maximumf>, %68, %cst_23 [2] : vector<8x16x16xf32> to vector<8x16xf32>
    %70 = vector.shape_cast %69 : vector<8x16xf32> to vector<8x16x1xf32>
    %71 = vector.broadcast %70 : vector<8x16x1xf32> to vector<8x16x16xf32>
    %72 = arith.subf %68, %71 : vector<8x16x16xf32>
    %73 = math.exp %72 : vector<8x16x16xf32>
    %cst_24 = arith.constant dense<0.000000e+00> : vector<8x16xf32>
    %74 = vector.multi_reduction <add>, %73, %cst_24 [2] : vector<8x16x16xf32> to vector<8x16xf32>
    %75 = vector.shape_cast %74 : vector<8x16xf32> to vector<8x16x1xf32>
    %76 = tpu.reciprocal %75 {approx = true} : vector<8x16x1xf32> -> vector<8x16x1xf32>
    %77 = vector.broadcast %76 : vector<8x16x1xf32> to vector<8x16x16xf32>
    %78 = arith.mulf %73, %77 : vector<8x16x16xf32>
    %79 = arith.truncf %78 : vector<8x16x16xf32> to vector<8x16x16xbf16>
    "tpu.trace_start"() <{level = 10 : i32, message = "nts,nsd->ntd"}> : () -> ()
    %cst_25 = arith.constant dense<0.000000e+00> : vector<8x16x32xf32>
    %80 = tpu.matmul %79, %62, %cst_25 {dimension_numbers = #tpu.dot_dimension_numbers<[2], [1], [1], [2], [0, 0, 0, 1, 1, 2], [0], [0]>} : vector<8x16x16xbf16>, vector<8x16x32xbf16>, vector<8x16x32xf32> -> vector<8x16x32xf32>
    "tpu.trace_stop"() : () -> ()
    %81 = vector.extract_strided_slice %80 {offsets = [0, 0, 0], sizes = [2, 16, 32], strides = [1, 1, 1]} : vector<8x16x32xf32> to vector<2x16x32xf32>
    %82 = vector.extract_strided_slice %80 {offsets = [2, 0, 0], sizes = [2, 16, 32], strides = [1, 1, 1]} : vector<8x16x32xf32> to vector<2x16x32xf32>
    %83 = vector.extract_strided_slice %80 {offsets = [4, 0, 0], sizes = [2, 16, 32], strides = [1, 1, 1]} : vector<8x16x32xf32> to vector<2x16x32xf32>
    %84 = vector.extract_strided_slice %80 {offsets = [6, 0, 0], sizes = [2, 16, 32], strides = [1, 1, 1]} : vector<8x16x32xf32> to vector<2x16x32xf32>
    %85 = tpu.concatenate %81, %82, %83, %84 in 2 : vector<2x16x32xf32>, vector<2x16x32xf32>, vector<2x16x32xf32>, vector<2x16x32xf32> -> vector<2x16x128xf32>
    %86 = vector.shape_cast %85 : vector<2x16x128xf32> to vector<32x128xf32>
    %87 = arith.truncf %86 : vector<32x128xf32> to vector<32x128xbf16>
    %c0_26 = arith.constant 0 : index
    %c0_27 = arith.constant 0 : index
    %c0_28 = arith.constant 0 : index
    %88 = vector.load %arg5[%c0_26, %c0_27, %c0_28] : memref<1x128x128xbf16, #tpu.memory_space<vmem>>, vector<1x128x128xbf16>
    %89 = vector.shape_cast %88 : vector<1x128x128xbf16> to vector<128x128xbf16>
    %cst_29 = arith.constant dense<0.000000e+00> : vector<32x128xf32>
    %90 = tpu.matmul %87, %89, %cst_29 {dimension_numbers = #tpu.dot_dimension_numbers<[1], [0], [0], [1], [0, 0, 1, 1], [], []>} : vector<32x128xbf16>, vector<128x128xbf16>, vector<32x128xf32> -> vector<32x128xf32>
    %c0_30 = arith.constant 0 : index
    %c0_31 = arith.constant 0 : index
    %c0_32 = arith.constant 0 : index
    %91 = vector.load %arg6[%c0_30, %c0_31, %c0_32] : memref<1x1x128xf32, #tpu.memory_space<vmem>>, vector<1x1x128xf32>
    %92 = vector.shape_cast %91 : vector<1x1x128xf32> to vector<1x128xf32>
    %93 = vector.broadcast %92 : vector<1x128xf32> to vector<32x128xf32>
    %94 = arith.addf %90, %93 : vector<32x128xf32>
    %95 = arith.addf %3, %94 : vector<32x128xf32>
    %c0_33 = arith.constant 0 : index
    %c0_34 = arith.constant 0 : index
    %c0_35 = arith.constant 0 : index
    %96 = vector.load %arg9[%c0_33, %c0_34, %c0_35] : memref<1x1x128xf32, #tpu.memory_space<vmem>>, vector<1x1x128xf32>
    %97 = vector.shape_cast %96 : vector<1x1x128xf32> to vector<1x128xf32>
    %c0_36 = arith.constant 0 : index
    %c0_37 = arith.constant 0 : index
    %c0_38 = arith.constant 0 : index
    %98 = vector.load %arg10[%c0_36, %c0_37, %c0_38] : memref<1x1x128xf32, #tpu.memory_space<vmem>>, vector<1x1x128xf32>
    %99 = vector.shape_cast %98 : vector<1x1x128xf32> to vector<1x128xf32>
    %cst_39 = arith.constant dense<0.000000e+00> : vector<32xf32>
    %100 = vector.multi_reduction <add>, %95, %cst_39 [1] : vector<32x128xf32> to vector<32xf32>
    %101 = vector.shape_cast %100 : vector<32xf32> to vector<32x1xf32>
    %cst_40 = arith.constant 1.280000e+02 : f32
    %102 = vector.broadcast %cst_40 : f32 to vector<32x1xf32>
    %103 = arith.divf %101, %102 : vector<32x1xf32>
    %104 = vector.broadcast %103 : vector<32x1xf32> to vector<32x128xf32>
    %105 = arith.subf %95, %104 : vector<32x128xf32>
    %106 = arith.mulf %105, %105 : vector<32x128xf32>
    %cst_41 = arith.constant dense<0.000000e+00> : vector<32xf32>
    %107 = vector.multi_reduction <add>, %106, %cst_41 [1] : vector<32x128xf32> to vector<32xf32>
    %108 = vector.shape_cast %107 : vector<32xf32> to vector<32x1xf32>
    %cst_42 = arith.constant 1.280000e+02 : f32
    %109 = vector.broadcast %cst_42 : f32 to vector<32x1xf32>
    %110 = arith.divf %108, %109 : vector<32x1xf32>
    %111 = vector.broadcast %103 : vector<32x1xf32> to vector<32x128xf32>
    %112 = arith.subf %95, %111 : vector<32x128xf32>
    %cst_43 = arith.constant 9.99999974E-6 : f32
    %113 = vector.broadcast %cst_43 : f32 to vector<32x1xf32>
    %114 = arith.addf %110, %113 : vector<32x1xf32>
    %115 = math.rsqrt %114 : vector<32x1xf32>
    %116 = vector.broadcast %115 : vector<32x1xf32> to vector<32x128xf32>
    %117 = arith.mulf %112, %116 : vector<32x128xf32>
    %118 = vector.broadcast %97 : vector<1x128xf32> to vector<32x128xf32>
    %119 = arith.mulf %117, %118 : vector<32x128xf32>
    %120 = vector.broadcast %99 : vector<1x128xf32> to vector<32x128xf32>
    %121 = arith.addf %119, %120 : vector<32x128xf32>
    %122 = arith.truncf %121 : vector<32x128xf32> to vector<32x128xbf16>
    %c0_44 = arith.constant 0 : index
    %c0_45 = arith.constant 0 : index
    %c0_46 = arith.constant 0 : index
    %123 = vector.load %arg11[%c0_44, %c0_45, %c0_46] : memref<1x128x256xbf16, #tpu.memory_space<vmem>>, vector<1x128x256xbf16>
    %124 = vector.shape_cast %123 : vector<1x128x256xbf16> to vector<128x256xbf16>
    %cst_47 = arith.constant dense<0.000000e+00> : vector<32x256xf32>
    %125 = tpu.matmul %122, %124, %cst_47 {dimension_numbers = #tpu.dot_dimension_numbers<[1], [0], [0], [1], [0, 0, 1, 1], [], []>} : vector<32x128xbf16>, vector<128x256xbf16>, vector<32x256xf32> -> vector<32x256xf32>
    %c0_48 = arith.constant 0 : index
    %c0_49 = arith.constant 0 : index
    %c0_50 = arith.constant 0 : index
    %126 = vector.load %arg12[%c0_48, %c0_49, %c0_50] : memref<1x1x256xf32, #tpu.memory_space<vmem>>, vector<1x1x256xf32>
    %127 = vector.shape_cast %126 : vector<1x1x256xf32> to vector<1x256xf32>
    %128 = vector.broadcast %127 : vector<1x256xf32> to vector<32x256xf32>
    %129 = arith.addf %125, %128 : vector<32x256xf32>
    %cst_51 = arith.constant 5.000000e-01 : f32
    %130 = vector.broadcast %cst_51 : f32 to vector<32x256xf32>
    %131 = arith.mulf %130, %129 : vector<32x256xf32>
    %cst_52 = arith.constant 4.471500e-02 : f32
    %132 = vector.broadcast %cst_52 : f32 to vector<32x256xf32>
    %133 = arith.mulf %132, %129 : vector<32x256xf32>
    %134 = arith.mulf %133, %129 : vector<32x256xf32>
    %135 = arith.mulf %134, %129 : vector<32x256xf32>
    %136 = arith.addf %129, %135 : vector<32x256xf32>
    %cst_53 = arith.constant 0.797884583 : f32
    %137 = vector.broadcast %cst_53 : f32 to vector<32x256xf32>
    %138 = arith.mulf %137, %136 : vector<32x256xf32>
    %139 = math.tanh %138 : vector<32x256xf32>
    %cst_54 = arith.constant 1.000000e+00 : f32
    %140 = vector.broadcast %cst_54 : f32 to vector<32x256xf32>
    %141 = arith.addf %140, %139 : vector<32x256xf32>
    %142 = arith.mulf %131, %141 : vector<32x256xf32>
    %143 = arith.truncf %142 : vector<32x256xf32> to vector<32x256xbf16>
    %c0_55 = arith.constant 0 : index
    %c0_56 = arith.constant 0 : index
    %c0_57 = arith.constant 0 : index
    %144 = vector.load %arg13[%c0_55, %c0_56, %c0_57] : memref<1x256x128xbf16, #tpu.memory_space<vmem>>, vector<1x256x128xbf16>
    %145 = vector.shape_cast %144 : vector<1x256x128xbf16> to vector<256x128xbf16>
    %cst_58 = arith.constant dense<0.000000e+00> : vector<32x128xf32>
    %146 = tpu.matmul %143, %145, %cst_58 {dimension_numbers = #tpu.dot_dimension_numbers<[1], [0], [0], [1], [0, 0, 1, 1], [], []>} : vector<32x256xbf16>, vector<256x128xbf16>, vector<32x128xf32> -> vector<32x128xf32>
    %c0_59 = arith.constant 0 : index
    %c0_60 = arith.constant 0 : index
    %c0_61 = arith.constant 0 : index
    %147 = vector.load %arg14[%c0_59, %c0_60, %c0_61] : memref<1x1x128xf32, #tpu.memory_space<vmem>>, vector<1x1x128xf32>
    %148 = vector.shape_cast %147 : vector<1x1x128xf32> to vector<1x128xf32>
    %149 = vector.broadcast %148 : vector<1x128xf32> to vector<32x128xf32>
    %150 = arith.addf %146, %149 : vector<32x128xf32>
    %151 = arith.addf %95, %150 : vector<32x128xf32>
    %c0_62 = arith.constant 0 : index
    %c0_63 = arith.constant 0 : index
    %152 = vector.load %arg24[%c0_62, %c0_63] : memref<32x128xf32, #tpu.memory_space<vmem>>, vector<32x128xf32>
    tpu.vector_store %arg24[%c0_62, %c0_63], %151 {strides = array<i32>} : memref<32x128xf32, #tpu.memory_space<vmem>>, vector<32x128xf32>,
    %c1_i32 = arith.constant 1 : i32
    %153 = arith.cmpi eq, %arg0, %c1_i32 : i32
    %154 = arith.extui %153 : i1 to i32
    %c0_i32_64 = arith.constant 0 : i32
    %155 = arith.cmpi ne, %154, %c0_i32_64 : i32
    scf.if %155 {
      %156 = vector.extract_strided_slice %151 {offsets = [0, 0], sizes = [1, 128], strides = [1, 1]} : vector<32x128xf32> to vector<1x128xf32>
      %157 = vector.extract_strided_slice %151 {offsets = [16, 0], sizes = [1, 128], strides = [1, 1]} : vector<32x128xf32> to vector<1x128xf32>
      %158 = tpu.concatenate %156, %157 in 0 : vector<1x128xf32>, vector<1x128xf32> -> vector<2x128xf32>
      %c0_65 = arith.constant 0 : index
      %c0_66 = arith.constant 0 : index
      %159 = vector.load %arg15[%c0_65, %c0_66] : memref<1x128xf32, #tpu.memory_space<vmem>>, vector<1x128xf32>
      %c0_67 = arith.constant 0 : index
      %c0_68 = arith.constant 0 : index
      %160 = vector.load %arg16[%c0_67, %c0_68] : memref<1x128xf32, #tpu.memory_space<vmem>>, vector<1x128xf32>
      %cst_69 = arith.constant dense<0.000000e+00> : vector<2xf32>
      %161 = vector.multi_reduction <add>, %158, %cst_69 [1] : vector<2x128xf32> to vector<2xf32>
      %162 = vector.shape_cast %161 : vector<2xf32> to vector<2x1xf32>
      %cst_70 = arith.constant 1.280000e+02 : f32
      %163 = vector.broadcast %cst_70 : f32 to vector<2x1xf32>
      %164 = arith.divf %162, %163 : vector<2x1xf32>
      %165 = vector.broadcast %164 : vector<2x1xf32> to vector<2x128xf32>
      %166 = arith.subf %158, %165 : vector<2x128xf32>
      %167 = arith.mulf %166, %166 : vector<2x128xf32>
      %cst_71 = arith.constant dense<0.000000e+00> : vector<2xf32>
      %168 = vector.multi_reduction <add>, %167, %cst_71 [1] : vector<2x128xf32> to vector<2xf32>
      %169 = vector.shape_cast %168 : vector<2xf32> to vector<2x1xf32>
      %cst_72 = arith.constant 1.280000e+02 : f32
      %170 = vector.broadcast %cst_72 : f32 to vector<2x1xf32>
      %171 = arith.divf %169, %170 : vector<2x1xf32>
      %172 = vector.broadcast %164 : vector<2x1xf32> to vector<2x128xf32>
      %173 = arith.subf %158, %172 : vector<2x128xf32>
      %cst_73 = arith.constant 9.99999974E-6 : f32
      %174 = vector.broadcast %cst_73 : f32 to vector<2x1xf32>
      %175 = arith.addf %171, %174 : vector<2x1xf32>
      %176 = math.rsqrt %175 : vector<2x1xf32>
      %177 = vector.broadcast %176 : vector<2x1xf32> to vector<2x128xf32>
      %178 = arith.mulf %173, %177 : vector<2x128xf32>
      %179 = vector.broadcast %159 : vector<1x128xf32> to vector<2x128xf32>
      %180 = arith.mulf %178, %179 : vector<2x128xf32>
      %181 = vector.broadcast %160 : vector<1x128xf32> to vector<2x128xf32>
      %182 = arith.addf %180, %181 : vector<2x128xf32>
      %c0_74 = arith.constant 0 : index
      %c0_75 = arith.constant 0 : index
      %183 = vector.load %arg17[%c0_74, %c0_75] : memref<1x128xf32, #tpu.memory_space<vmem>>, vector<1x128xf32>
      %184 = vector.broadcast %183 : vector<1x128xf32> to vector<2x128xf32>
      %185 = arith.subf %182, %184 : vector<2x128xf32>
      %c0_76 = arith.constant 0 : index
      %c0_77 = arith.constant 0 : index
      %186 = vector.load %arg18[%c0_76, %c0_77] : memref<1x128xf32, #tpu.memory_space<vmem>>, vector<1x128xf32>
      %cst_78 = arith.constant 9.99999974E-6 : f32
      %187 = vector.broadcast %cst_78 : f32 to vector<1x128xf32>
      %188 = arith.addf %186, %187 : vector<1x128xf32>
      %189 = math.rsqrt %188 : vector<1x128xf32>
      %190 = vector.broadcast %189 : vector<1x128xf32> to vector<2x128xf32>
      %191 = arith.mulf %185, %190 : vector<2x128xf32>
      %c0_79 = arith.constant 0 : index
      %c0_80 = arith.constant 0 : index
      %192 = vector.load %arg19[%c0_79, %c0_80] : memref<1x128xf32, #tpu.memory_space<vmem>>, vector<1x128xf32>
      %193 = vector.broadcast %192 : vector<1x128xf32> to vector<2x128xf32>
      %194 = arith.mulf %191, %193 : vector<2x128xf32>
      %c0_81 = arith.constant 0 : index
      %c0_82 = arith.constant 0 : index
      %195 = vector.load %arg20[%c0_81, %c0_82] : memref<1x128xf32, #tpu.memory_space<vmem>>, vector<1x128xf32>
      %196 = vector.broadcast %195 : vector<1x128xf32> to vector<2x128xf32>
      %197 = arith.addf %194, %196 : vector<2x128xf32>
      %198 = arith.truncf %197 : vector<2x128xf32> to vector<2x128xbf16>
      %c0_83 = arith.constant 0 : index
      %c0_84 = arith.constant 0 : index
      %199 = vector.load %arg21[%c0_83, %c0_84] : memref<128x128xbf16, #tpu.memory_space<vmem>>, vector<128x128xbf16>
      %cst_85 = arith.constant dense<0.000000e+00> : vector<2x128xf32>
      %200 = tpu.matmul %198, %199, %cst_85 {dimension_numbers = #tpu.dot_dimension_numbers<[1], [0], [0], [1], [0, 0, 1, 1], [], []>} : vector<2x128xbf16>, vector<128x128xbf16>, vector<2x128xf32> -> vector<2x128xf32>
      %c0_86 = arith.constant 0 : index
      %c0_87 = arith.constant 0 : index
      %201 = vector.load %arg22[%c0_86, %c0_87] : memref<1x128xf32, #tpu.memory_space<vmem>>, vector<1x128xf32>
      %202 = vector.broadcast %201 : vector<1x128xf32> to vector<2x128xf32>
      %203 = arith.addf %200, %202 : vector<2x128xf32>
      %c0_88 = arith.constant 0 : index
      %c0_89 = arith.constant 0 : index
      %204 = vector.load %arg23[%c0_88, %c0_89] : memref<2x128xf32, #tpu.memory_space<vmem>>, vector<2x128xf32>
      tpu.vector_store %arg23[%c0_88, %c0_89], %203 {strides = array<i32>} : memref<2x128xf32, #tpu.memory_space<vmem>>, vector<2x128xf32>,
    } else {
    }
    return
  }
  func.func @transform_0(%arg0: i32) -> (i32, i32) {
    %c0_i32 = arith.constant 0 : i32
    %c0_i32_0 = arith.constant 0 : i32
    %c0_i32_1 = arith.constant 0 : i32
    return %c0_i32, %c0_i32_0 : i32, i32
  }
  func.func @transform_1(%arg0: i32) -> (i32, i32) {
    %c0_i32 = arith.constant 0 : i32
    %c0_i32_0 = arith.constant 0 : i32
    %c0_i32_1 = arith.constant 0 : i32
    return %c0_i32, %c0_i32_0 : i32, i32
  }
  func.func @transform_2(%arg0: i32) -> (i32, i32, i32) {
    %c0_i32 = arith.constant 0 : i32
    %c0_i32_0 = arith.constant 0 : i32
    %c0_i32_1 = arith.constant 0 : i32
    return %arg0, %c0_i32, %c0_i32_0 : i32, i32, i32
  }
  func.func @transform_3(%arg0: i32) -> (i32, i32, i32) {
    %c0_i32 = arith.constant 0 : i32
    %c0_i32_0 = arith.constant 0 : i32
    %c0_i32_1 = arith.constant 0 : i32
    return %arg0, %c0_i32, %c0_i32_0 : i32, i32, i32
  }
  func.func @transform_4(%arg0: i32) -> (i32, i32, i32) {
    %c0_i32 = arith.constant 0 : i32
    %c0_i32_0 = arith.constant 0 : i32
    %c0_i32_1 = arith.constant 0 : i32
    return %arg0, %c0_i32, %c0_i32_0 : i32, i32, i32
  }
  func.func @transform_5(%arg0: i32) -> (i32, i32, i32) {
    %c0_i32 = arith.constant 0 : i32
    %c0_i32_0 = arith.constant 0 : i32
    %c0_i32_1 = arith.constant 0 : i32
    return %arg0, %c0_i32, %c0_i32_0 : i32, i32, i32
  }
  func.func @transform_6(%arg0: i32) -> (i32, i32, i32) {
    %c0_i32 = arith.constant 0 : i32
    %c0_i32_0 = arith.constant 0 : i32
    %c0_i32_1 = arith.constant 0 : i32
    return %arg0, %c0_i32, %c0_i32_0 : i32, i32, i32
  }
  func.func @transform_7(%arg0: i32) -> (i32, i32, i32) {
    %c0_i32 = arith.constant 0 : i32
    %c0_i32_0 = arith.constant 0 : i32
    %c0_i32_1 = arith.constant 0 : i32
    return %arg0, %c0_i32, %c0_i32_0 : i32, i32, i32
  }
  func.func @transform_8(%arg0: i32) -> (i32, i32, i32) {
    %c0_i32 = arith.constant 0 : i32
    %c0_i32_0 = arith.constant 0 : i32
    %c0_i32_1 = arith.constant 0 : i32
    return %arg0, %c0_i32, %c0_i32_0 : i32, i32, i32
  }
  func.func @transform_9(%arg0: i32) -> (i32, i32, i32) {
    %c0_i32 = arith.constant 0 : i32
    %c0_i32_0 = arith.constant 0 : i32
    %c0_i32_1 = arith.constant 0 : i32
    return %arg0, %c0_i32, %c0_i32_0 : i32, i32, i32
  }
  func.func @transform_10(%arg0: i32) -> (i32, i32, i32) {
    %c0_i32 = arith.constant 0 : i32
    %c0_i32_0 = arith.constant 0 : i32
    %c0_i32_1 = arith.constant 0 : i32
    return %arg0, %c0_i32, %c0_i32_0 : i32, i32, i32
  }
  func.func @transform_11(%arg0: i32) -> (i32, i32, i32) {
    %c0_i32 = arith.constant 0 : i32
    %c0_i32_0 = arith.constant 0 : i32
    %c0_i32_1 = arith.constant 0 : i32
    return %arg0, %c0_i32, %c0_i32_0 : i32, i32, i32
  }
  func.func @transform_12(%arg0: i32) -> (i32, i32, i32) {
    %c0_i32 = arith.constant 0 : i32
    %c0_i32_0 = arith.constant 0 : i32
    %c0_i32_1 = arith.constant 0 : i32
    return %arg0, %c0_i32, %c0_i32_0 : i32, i32, i32
  }
  func.func @transform_13(%arg0: i32) -> (i32, i32, i32) {
    %c0_i32 = arith.constant 0 : i32
    %c0_i32_0 = arith.constant 0 : i32
    %c0_i32_1 = arith.constant 0 : i32
    return %arg0, %c0_i32, %c0_i32_0 : i32, i32, i32
  }
  func.func @transform_14(%arg0: i32) -> (i32, i32) {
    %c0_i32 = arith.constant 0 : i32
    %c0_i32_0 = arith.constant 0 : i32
    %c0_i32_1 = arith.constant 0 : i32
    return %c0_i32, %c0_i32_0 : i32, i32
  }
  func.func @transform_15(%arg0: i32) -> (i32, i32) {
    %c0_i32 = arith.constant 0 : i32
    %c0_i32_0 = arith.constant 0 : i32
    %c0_i32_1 = arith.constant 0 : i32
    return %c0_i32, %c0_i32_0 : i32, i32
  }
  func.func @transform_16(%arg0: i32) -> (i32, i32) {
    %c0_i32 = arith.constant 0 : i32
    %c0_i32_0 = arith.constant 0 : i32
    %c0_i32_1 = arith.constant 0 : i32
    return %c0_i32, %c0_i32_0 : i32, i32
  }
  func.func @transform_17(%arg0: i32) -> (i32, i32) {
    %c0_i32 = arith.constant 0 : i32
    %c0_i32_0 = arith.constant 0 : i32
    %c0_i32_1 = arith.constant 0 : i32
    return %c0_i32, %c0_i32_0 : i32, i32
  }
  func.func @transform_18(%arg0: i32) -> (i32, i32) {
    %c0_i32 = arith.constant 0 : i32
    %c0_i32_0 = arith.constant 0 : i32
    %c0_i32_1 = arith.constant 0 : i32
    return %c0_i32, %c0_i32_0 : i32, i32
  }
  func.func @transform_19(%arg0: i32) -> (i32, i32) {
    %c0_i32 = arith.constant 0 : i32
    %c0_i32_0 = arith.constant 0 : i32
    %c0_i32_1 = arith.constant 0 : i32
    return %c0_i32, %c0_i32_0 : i32, i32
  }
  func.func @transform_20(%arg0: i32) -> (i32, i32) {
    %c0_i32 = arith.constant 0 : i32
    %c0_i32_0 = arith.constant 0 : i32
    %c0_i32_1 = arith.constant 0 : i32
    return %c0_i32, %c0_i32_0 : i32, i32
  }
  func.func @transform_21(%arg0: i32) -> (i32, i32) {
    %c0_i32 = arith.constant 0 : i32
    %c0_i32_0 = arith.constant 0 : i32
    %c0_i32_1 = arith.constant 0 : i32
    return %c0_i32, %c0_i32_0 : i32, i32
  }
  func.func @transform_22(%arg0: i32) -> (i32, i32) {
    %c0_i32 = arith.constant 0 : i32
    %c0_i32_0 = arith.constant 0 : i32
    %c0_i32_1 = arith.constant 0 : i32
    return %c0_i32, %c0_i32_0 : i32, i32
  }
}

</mosaic_0001>

<llo_original>
// kernel: tpu_custom_call.1
$region0: #{tpu_custom_call.1}
  #allocation0 [shape = 'u32[]', space=smem, size = 0x4, offset = 0x4, fixed_abs, tag = 'smem constant byte address 0x4 - core index']
  #allocation1 [shape = 'u32[72,128]{1,0:T(1,128)}', space=vmem, size = 0x9000, scoped, tag = 'internal scratch']
  #allocation2 [shape = 'f32[32,128]{1,0:T(8,128)}', space=vmem, size = 0x4000, scoped, tag = 'scratch operand']
  %s0 = inlined_call_operand.hbm [shape: f32[32,128], index: 0, kind: input, shape index: {}]
  %s1 = inlined_call_operand.hbm [shape: f32[8,16], index: 1, kind: input, shape index: {}]
  %s2 = inlined_call_operand.hbm [shape: bf16[2,128,384], index: 2, kind: input, shape index: {}]
  %s3 = inlined_call_operand.hbm [shape: f32[2,1,384], index: 3, kind: input, shape index: {}]
  %s4 = inlined_call_operand.hbm [shape: bf16[2,128,128], index: 4, kind: input, shape index: {}]
  %s5 = inlined_call_operand.vmem [shape: f32[2,1,128], index: 5, kind: input, shape index: {}]
  %s6 = inlined_call_operand.hbm [shape: f32[2,1,128], index: 6, kind: input, shape index: {}]
  %s7 = inlined_call_operand.hbm [shape: f32[2,1,128], index: 7, kind: input, shape index: {}]
  %s8 = inlined_call_operand.hbm [shape: f32[2,1,128], index: 8, kind: input, shape index: {}]
  %s9 = inlined_call_operand.vmem [shape: f32[2,1,128], index: 9, kind: input, shape index: {}]
  %s10 = inlined_call_operand.hbm [shape: bf16[2,128,256], index: 10, kind: input, shape index: {}]
  %s11 = inlined_call_operand.vmem [shape: f32[2,1,256], index: 11, kind: input, shape index: {}]
  %s12 = inlined_call_operand.hbm [shape: bf16[2,256,128], index: 12, kind: input, shape index: {}]
  %s13 = inlined_call_operand.vmem [shape: f32[2,1,128], index: 13, kind: input, shape index: {}]
  %s14 = inlined_call_operand.vmem [shape: f32[1,128], index: 14, kind: input, shape index: {}]
  %s15 = inlined_call_operand.vmem [shape: f32[1,128], index: 15, kind: input, shape index: {}]
  %s16 = inlined_call_operand.vmem [shape: f32[1,128], index: 16, kind: input, shape index: {}]
  %s17 = inlined_call_operand.vmem [shape: f32[1,128], index: 17, kind: input, shape index: {}]
  %s18 = inlined_call_operand.vmem [shape: f32[1,128], index: 18, kind: input, shape index: {}]
  %s19 = inlined_call_operand.vmem [shape: f32[1,128], index: 19, kind: input, shape index: {}]
  %s20 = inlined_call_operand.hbm [shape: bf16[128,128], index: 20, kind: input, shape index: {}]
  %s21 = inlined_call_operand.vmem [shape: f32[1,128], index: 21, kind: input, shape index: {}]
  %s22 = inlined_call_operand.hbm [shape: f32[2,128], index: 22, kind: output, shape index: {}]
  %s23 = sld [smem:[#allocation0]]
  $region173: #{tpu_custom_call.1} parent=0
    _
  %s25 = ssub.s32 1, %s23
  %s26 = scalar_select 0, %s25, %s23
  $region1: #{tpu_custom_call.1} parent=0
    #allocation3 [shape = 'u8[16384]{0}', space=vmem, size = 0x4000, scoped, tag = 'input window, operand 0, single buffered']
    #allocation4 [shape = 's32[2]{0}', space=sflag, size = 0x8, scoped, tag = 'scoped memory for tpu_custom_call.1']
    #allocation5 [shape = 's32[2]{0}', space=sflag, size = 0x8, scoped, tag = 'scoped memory for tpu_custom_call.1']
    #allocation6 [shape = 'u8[4096]{0}', space=vmem, size = 0x1000, scoped, tag = 'input window, operand 1, single buffered']
    #allocation7 [shape = 's32[1]{0}', space=sflag, size = 0x4, scoped, tag = 'scoped memory for tpu_custom_call.1']
    #allocation8 [shape = 'u8[196608]{0}', space=vmem, size = 0x30000, scoped, tag = 'input window, operand 2']
    #allocation9 [shape = 'u8[3072]{0}', space=vmem, size = 0xc00, scoped, tag = 'input window, operand 3']
    #allocation10 [shape = 'u8[65536]{0}', space=vmem, size = 0x10000, scoped, tag = 'input window, operand 4']
    #allocation11 [shape = 'u8[1024]{0}', space=vmem, size = 0x400, scoped, tag = 'input window, operand 6']
    #allocation12 [shape = 'u8[1024]{0}', space=vmem, size = 0x400, scoped, tag = 'input window, operand 7']
    #allocation13 [shape = 'u8[1024]{0}', space=vmem, size = 0x400, scoped, tag = 'input window, operand 8']
    #allocation14 [shape = 'u8[131072]{0}', space=vmem, size = 0x20000, scoped, tag = 'input window, operand 10']
    #allocation15 [shape = 'u8[131072]{0}', space=vmem, size = 0x20000, scoped, tag = 'input window, operand 12']
    #allocation16 [shape = 'u8[32768]{0}', space=vmem, size = 0x8000, scoped, tag = 'input window, operand 20, single buffered']
    #allocation17 [shape = 'u8[1024]{0}', space=vmem, size = 0x400, scoped, tag = 'output window, operand 0, single buffered']
    %27 = vsyncpa [#allocation4], 0
    %28 = vsyncpa [#allocation7], 0
    %29 = vsyncpa [#allocation5], 0
    loop: start=0, step=1, limit=4
    $region2: #{tpu_custom_call.1} parent=1 // loop_pre_header
      _
    $region3: #{tpu_custom_call.1} parent=1 // loop_header
      %s31 = sphi 0, %s35
      %p32 = scmp.ge.s32.totalorder %s31, 4
      %s39 = sphi 0, %s39
      %s41 = sphi 0, %s39
      %s42 = sphi 0, %s41
      %s56 = sphi 0, %s42
      %s60 = sphi 0, %s60
      %s62 = sphi 0, %s60
      %s63 = sphi 0, %s62
      %s77 = sphi 0, %s63
      %s83 = sphi 0, %s85
      %s86 = sphi 0, %s83
      %s87 = sphi 0, %s86
      %s103 = sphi 0, %s87
      %s109 = sphi 0, %s111
      %s112 = sphi 0, %s109
      %s113 = sphi 0, %s112
      %s129 = sphi 0, %s113
      %s135 = sphi 0, %s137
      %s138 = sphi 0, %s135
      %s139 = sphi 0, %s138
      %s155 = sphi 0, %s139
      %s161 = sphi 0, %s163
      %s164 = sphi 0, %s161
      %s165 = sphi 0, %s164
      %s181 = sphi 0, %s165
      %s187 = sphi 0, %s189
      %s190 = sphi 0, %s187
      %s191 = sphi 0, %s190
      %s207 = sphi 0, %s191
      %s213 = sphi 0, %s215
      %s216 = sphi 0, %s213
      %s217 = sphi 0, %s216
      %s233 = sphi 0, %s217
      %s239 = sphi 0, %s241
      %s242 = sphi 0, %s239
      %s243 = sphi 0, %s242
      %s259 = sphi 0, %s243
      %s265 = sphi 0, %s267
      %s268 = sphi 0, %s265
      %s269 = sphi 0, %s268
      %s285 = sphi 0, %s269
      %s291 = sphi 0, %s293
      %s294 = sphi 0, %s291
      %s295 = sphi 0, %s294
      %s311 = sphi 0, %s295
      %s317 = sphi 0, %s319
      %s320 = sphi 0, %s317
      %s321 = sphi 0, %s320
      %s337 = sphi 0, %s321
      %s343 = sphi 0, %s345
      %s346 = sphi 0, %s343
      %s347 = sphi 0, %s346
      %s363 = sphi 0, %s347
      %s369 = sphi 0, %s371
      %s372 = sphi 0, %s369
      %s373 = sphi 0, %s372
      %s389 = sphi 0, %s373
      %s393 = sphi 0, %s393
      %s395 = sphi 0, %s393
      %s396 = sphi 0, %s395
      %s410 = sphi 0, %s396
      %s414 = sphi 0, %s414
      %s416 = sphi 0, %s414
      %s417 = sphi 0, %s416
      %s431 = sphi 0, %s417
      %s435 = sphi 0, %s435
      %s437 = sphi 0, %s435
      %s438 = sphi 0, %s437
      %s452 = sphi 0, %s438
      %s456 = sphi 0, %s456
      %s458 = sphi 0, %s456
      %s459 = sphi 0, %s458
      %s473 = sphi 0, %s459
      %s477 = sphi 0, %s477
      %s479 = sphi 0, %s477
      %s480 = sphi 0, %s479
      %s494 = sphi 0, %s480
      %s498 = sphi 0, %s498
      %s500 = sphi 0, %s498
      %s501 = sphi 0, %s500
      %s515 = sphi 0, %s501
      %s519 = sphi 0, %s519
      %s521 = sphi 0, %s519
      %s522 = sphi 0, %s521
      %s536 = sphi 0, %s522
      %s540 = sphi 0, %s540
      %s542 = sphi 0, %s540
      %s543 = sphi 0, %s542
      %s557 = sphi 0, %s543
      %s561 = sphi 0, %s561
      %s563 = sphi 0, %s561
      %s564 = sphi 0, %s563
      %s578 = sphi 0, %s564
    $region4: #{tpu_custom_call.1} parent=1 // loop_header_branch
      %34 = sbr.rel (%p32) target = $region8
    $region5: #{tpu_custom_call.1} parent=1 // loop_body
      %s36 = ssub.s32 %s31, 1
      %s37 = ssub.s32 %s31, 2
      %s38 = sadd.s32 %s31, 1
      %s40 = sadd.s32 %s39, 1
      %p43 = scmp.eq.s32.totalorder %s31, 1
      %p44 = scmp.ne.s32.totalorder %s39, %s41
      %p45 = scmp.eq.s32.totalorder %s31, 0
      %p46 = por %p44, %p45
      %p47 = scmp.ne.s32.totalorder %s39, %s41
      %p48 = scmp.eq.s32.totalorder %s36, 1
      %p49 = por %p47, %p48
      %p50 = scmp.ne.s32.totalorder %s41, %s42
      %p51 = scmp.eq.s32.totalorder %s36, 0
      %p52 = por %p50, %p51
      %p53 = scmp.ne.s32.totalorder %s41, %s42
      %p54 = scmp.eq.s32.totalorder %s37, 1
      %p55 = por %p53, %p54
      %p57 = scmp.ne.s32.totalorder %s42, %s56
      %p58 = scmp.eq.s32.totalorder %s37, 0
      %p59 = por %p57, %p58
      %s61 = sadd.s32 %s60, 1
      %p64 = scmp.eq.s32.totalorder %s31, 1
      %p65 = scmp.ne.s32.totalorder %s60, %s62
      %p66 = scmp.eq.s32.totalorder %s31, 0
      %p67 = por %p65, %p66
      %p68 = scmp.ne.s32.totalorder %s60, %s62
      %p69 = scmp.eq.s32.totalorder %s36, 1
      %p70 = por %p68, %p69
      %p71 = scmp.ne.s32.totalorder %s62, %s63
      %p72 = scmp.eq.s32.totalorder %s36, 0
      %p73 = por %p71, %p72
      %p74 = scmp.ne.s32.totalorder %s62, %s63
      %p75 = scmp.eq.s32.totalorder %s37, 1
      %p76 = por %p74, %p75
      %p78 = scmp.ne.s32.totalorder %s63, %s77
      %p79 = scmp.eq.s32.totalorder %s37, 0
      %p80 = por %p78, %p79
      %s81 = ssub.s32 %s31, %s38
      %p82 = scmp.eq.s32.totalorder %s81, 0
      %s84 = sadd.s32 %s83, 1
      %s85 = scalar_select %p82, %s83, %s84
      %p88 = pneg %p82
      %p89 = scmp.eq.s32.totalorder %s31, 1
      %p90 = por %p88, %p89
      %p91 = scmp.ne.s32.totalorder %s83, %s86
      %p92 = scmp.eq.s32.totalorder %s31, 0
      %p93 = por %p91, %p92
      %p94 = scmp.ne.s32.totalorder %s83, %s86
      %p95 = scmp.eq.s32.totalorder %s36, 1
      %p96 = por %p94, %p95
      %p97 = scmp.ne.s32.totalorder %s86, %s87
      %p98 = scmp.eq.s32.totalorder %s36, 0
      %p99 = por %p97, %p98
      %p100 = scmp.ne.s32.totalorder %s86, %s87
      %p101 = scmp.eq.s32.totalorder %s37, 1
      %p102 = por %p100, %p101
      %p104 = scmp.ne.s32.totalorder %s87, %s103
      %p105 = scmp.eq.s32.totalorder %s37, 0
      %p106 = por %p104, %p105
      %s107 = ssub.s32 %s31, %s38
      %p108 = scmp.eq.s32.totalorder %s107, 0
      %s110 = sadd.s32 %s109, 1
      %s111 = scalar_select %p108, %s109, %s110
      %p114 = pneg %p108
      %p115 = scmp.eq.s32.totalorder %s31, 1
      %p116 = por %p114, %p115
      %p117 = scmp.ne.s32.totalorder %s109, %s112
      %p118 = scmp.eq.s32.totalorder %s31, 0
      %p119 = por %p117, %p118
      %p120 = scmp.ne.s32.totalorder %s109, %s112
      %p121 = scmp.eq.s32.totalorder %s36, 1
      %p122 = por %p120, %p121
      %p123 = scmp.ne.s32.totalorder %s112, %s113
      %p124 = scmp.eq.s32.totalorder %s36, 0
      %p125 = por %p123, %p124
      %p126 = scmp.ne.s32.totalorder %s112, %s113
      %p127 = scmp.eq.s32.totalorder %s37, 1
      %p128 = por %p126, %p127
      %p130 = scmp.ne.s32.totalorder %s113, %s129
      %p131 = scmp.eq.s32.totalorder %s37, 0
      %p132 = por %p130, %p131
      %s133 = ssub.s32 %s31, %s38
      %p134 = scmp.eq.s32.totalorder %s133, 0
      %s136 = sadd.s32 %s135, 1
      %s137 = scalar_select %p134, %s135, %s136
      %p140 = pneg %p134
      %p141 = scmp.eq.s32.totalorder %s31, 1
      %p142 = por %p140, %p141
      %p143 = scmp.ne.s32.totalorder %s135, %s138
      %p144 = scmp.eq.s32.totalorder %s31, 0
      %p145 = por %p143, %p144
      %p146 = scmp.ne.s32.totalorder %s135, %s138
      %p147 = scmp.eq.s32.totalorder %s36, 1
      %p148 = por %p146, %p147
      %p149 = scmp.ne.s32.totalorder %s138, %s139
      %p150 = scmp.eq.s32.totalorder %s36, 0
      %p151 = por %p149, %p150
      %p152 = scmp.ne.s32.totalorder %s138, %s139
      %p153 = scmp.eq.s32.totalorder %s37, 1
      %p154 = por %p152, %p153
      %p156 = scmp.ne.s32.totalorder %s139, %s155
      %p157 = scmp.eq.s32.totalorder %s37, 0
      %p158 = por %p156, %p157
      %s159 = ssub.s32 %s31, %s38
      %p160 = scmp.eq.s32.totalorder %s159, 0
      %s162 = sadd.s32 %s161, 1
      %s163 = scalar_select %p160, %s161, %s162
      %p166 = pneg %p160
      %p167 = scmp.eq.s32.totalorder %s31, 1
      %p168 = por %p166, %p167
      %p169 = scmp.ne.s32.totalorder %s161, %s164
      %p170 = scmp.eq.s32.totalorder %s31, 0
      %p171 = por %p169, %p170
      %p172 = scmp.ne.s32.totalorder %s161, %s164
      %p173 = scmp.eq.s32.totalorder %s36, 1
      %p174 = por %p172, %p173
      %p175 = scmp.ne.s32.totalorder %s164, %s165
      %p176 = scmp.eq.s32.totalorder %s36, 0
      %p177 = por %p175, %p176
      %p178 = scmp.ne.s32.totalorder %s164, %s165
      %p179 = scmp.eq.s32.totalorder %s37, 1
      %p180 = por %p178, %p179
      %p182 = scmp.ne.s32.totalorder %s165, %s181
      %p183 = scmp.eq.s32.totalorder %s37, 0
      %p184 = por %p182, %p183
      %s185 = ssub.s32 %s31, %s38
      %p186 = scmp.eq.s32.totalorder %s185, 0
      %s188 = sadd.s32 %s187, 1
      %s189 = scalar_select %p186, %s187, %s188
      %p192 = pneg %p186
      %p193 = scmp.eq.s32.totalorder %s31, 1
      %p194 = por %p192, %p193
      %p195 = scmp.ne.s32.totalorder %s187, %s190
      %p196 = scmp.eq.s32.totalorder %s31, 0
      %p197 = por %p195, %p196
      %p198 = scmp.ne.s32.totalorder %s187, %s190
      %p199 = scmp.eq.s32.totalorder %s36, 1
      %p200 = por %p198, %p199
      %p201 = scmp.ne.s32.totalorder %s190, %s191
      %p202 = scmp.eq.s32.totalorder %s36, 0
      %p203 = por %p201, %p202
      %p204 = scmp.ne.s32.totalorder %s190, %s191
      %p205 = scmp.eq.s32.totalorder %s37, 1
      %p206 = por %p204, %p205
      %p208 = scmp.ne.s32.totalorder %s191, %s207
      %p209 = scmp.eq.s32.totalorder %s37, 0
      %p210 = por %p208, %p209
      %s211 = ssub.s32 %s31, %s38
      %p212 = scmp.eq.s32.totalorder %s211, 0
      %s214 = sadd.s32 %s213, 1
      %s215 = scalar_select %p212, %s213, %s214
      %p218 = pneg %p212
      %p219 = scmp.eq.s32.totalorder %s31, 1
      %p220 = por %p218, %p219
      %p221 = scmp.ne.s32.totalorder %s213, %s216
      %p222 = scmp.eq.s32.totalorder %s31, 0
      %p223 = por %p221, %p222
      %p224 = scmp.ne.s32.totalorder %s213, %s216
      %p225 = scmp.eq.s32.totalorder %s36, 1
      %p226 = por %p224, %p225
      %p227 = scmp.ne.s32.totalorder %s216, %s217
      %p228 = scmp.eq.s32.totalorder %s36, 0
      %p229 = por %p227, %p228
      %p230 = scmp.ne.s32.totalorder %s216, %s217
      %p231 = scmp.eq.s32.totalorder %s37, 1
      %p232 = por %p230, %p231
      %p234 = scmp.ne.s32.totalorder %s217, %s233
      %p235 = scmp.eq.s32.totalorder %s37, 0
      %p236 = por %p234, %p235
      %s237 = ssub.s32 %s31, %s38
      %p238 = scmp.eq.s32.totalorder %s237, 0
      %s240 = sadd.s32 %s239, 1
      %s241 = scalar_select %p238, %s239, %s240
      %p244 = pneg %p238
      %p245 = scmp.eq.s32.totalorder %s31, 1
      %p246 = por %p244, %p245
      %p247 = scmp.ne.s32.totalorder %s239, %s242
      %p248 = scmp.eq.s32.totalorder %s31, 0
      %p249 = por %p247, %p248
      %p250 = scmp.ne.s32.totalorder %s239, %s242
      %p251 = scmp.eq.s32.totalorder %s36, 1
      %p252 = por %p250, %p251
      %p253 = scmp.ne.s32.totalorder %s242, %s243
      %p254 = scmp.eq.s32.totalorder %s36, 0
      %p255 = por %p253, %p254
      %p256 = scmp.ne.s32.totalorder %s242, %s243
      %p257 = scmp.eq.s32.totalorder %s37, 1
      %p258 = por %p256, %p257
      %p260 = scmp.ne.s32.totalorder %s243, %s259
      %p261 = scmp.eq.s32.totalorder %s37, 0
      %p262 = por %p260, %p261
      %s263 = ssub.s32 %s31, %s38
      %p264 = scmp.eq.s32.totalorder %s263, 0
      %s266 = sadd.s32 %s265, 1
      %s267 = scalar_select %p264, %s265, %s266
      %p270 = pneg %p264
      %p271 = scmp.eq.s32.totalorder %s31, 1
      %p272 = por %p270, %p271
      %p273 = scmp.ne.s32.totalorder %s265, %s268
      %p274 = scmp.eq.s32.totalorder %s31, 0
      %p275 = por %p273, %p274
      %p276 = scmp.ne.s32.totalorder %s265, %s268
      %p277 = scmp.eq.s32.totalorder %s36, 1
      %p278 = por %p276, %p277
      %p279 = scmp.ne.s32.totalorder %s268, %s269
      %p280 = scmp.eq.s32.totalorder %s36, 0
      %p281 = por %p279, %p280
      %p282 = scmp.ne.s32.totalorder %s268, %s269
      %p283 = scmp.eq.s32.totalorder %s37, 1
      %p284 = por %p282, %p283
      %p286 = scmp.ne.s32.totalorder %s269, %s285
      %p287 = scmp.eq.s32.totalorder %s37, 0
      %p288 = por %p286, %p287
      %s289 = ssub.s32 %s31, %s38
      %p290 = scmp.eq.s32.totalorder %s289, 0
      %s292 = sadd.s32 %s291, 1
      %s293 = scalar_select %p290, %s291, %s292
      %p296 = pneg %p290
      %p297 = scmp.eq.s32.totalorder %s31, 1
      %p298 = por %p296, %p297
      %p299 = scmp.ne.s32.totalorder %s291, %s294
      %p300 = scmp.eq.s32.totalorder %s31, 0
      %p301 = por %p299, %p300
      %p302 = scmp.ne.s32.totalorder %s291, %s294
      %p303 = scmp.eq.s32.totalorder %s36, 1
      %p304 = por %p302, %p303
      %p305 = scmp.ne.s32.totalorder %s294, %s295
      %p306 = scmp.eq.s32.totalorder %s36, 0
      %p307 = por %p305, %p306
      %p308 = scmp.ne.s32.totalorder %s294, %s295
      %p309 = scmp.eq.s32.totalorder %s37, 1
      %p310 = por %p308, %p309
      %p312 = scmp.ne.s32.totalorder %s295, %s311
      %p313 = scmp.eq.s32.totalorder %s37, 0
      %p314 = por %p312, %p313
      %s315 = ssub.s32 %s31, %s38
      %p316 = scmp.eq.s32.totalorder %s315, 0
      %s318 = sadd.s32 %s317, 1
      %s319 = scalar_select %p316, %s317, %s318
      %p322 = pneg %p316
      %p323 = scmp.eq.s32.totalorder %s31, 1
      %p324 = por %p322, %p323
      %p325 = scmp.ne.s32.totalorder %s317, %s320
      %p326 = scmp.eq.s32.totalorder %s31, 0
      %p327 = por %p325, %p326
      %p328 = scmp.ne.s32.totalorder %s317, %s320
      %p329 = scmp.eq.s32.totalorder %s36, 1
      %p330 = por %p328, %p329
      %p331 = scmp.ne.s32.totalorder %s320, %s321
      %p332 = scmp.eq.s32.totalorder %s36, 0
      %p333 = por %p331, %p332
      %p334 = scmp.ne.s32.totalorder %s320, %s321
      %p335 = scmp.eq.s32.totalorder %s37, 1
      %p336 = por %p334, %p335
      %p338 = scmp.ne.s32.totalorder %s321, %s337
      %p339 = scmp.eq.s32.totalorder %s37, 0
      %p340 = por %p338, %p339
      %s341 = ssub.s32 %s31, %s38
      %p342 = scmp.eq.s32.totalorder %s341, 0
      %s344 = sadd.s32 %s343, 1
      %s345 = scalar_select %p342, %s343, %s344
      %p348 = pneg %p342
      %p349 = scmp.eq.s32.totalorder %s31, 1
      %p350 = por %p348, %p349
      %p351 = scmp.ne.s32.totalorder %s343, %s346
      %p352 = scmp.eq.s32.totalorder %s31, 0
      %p353 = por %p351, %p352
      %p354 = scmp.ne.s32.totalorder %s343, %s346
      %p355 = scmp.eq.s32.totalorder %s36, 1
      %p356 = por %p354, %p355
      %p357 = scmp.ne.s32.totalorder %s346, %s347
      %p358 = scmp.eq.s32.totalorder %s36, 0
      %p359 = por %p357, %p358
      %p360 = scmp.ne.s32.totalorder %s346, %s347
      %p361 = scmp.eq.s32.totalorder %s37, 1
      %p362 = por %p360, %p361
      %p364 = scmp.ne.s32.totalorder %s347, %s363
      %p365 = scmp.eq.s32.totalorder %s37, 0
      %p366 = por %p364, %p365
      %s367 = ssub.s32 %s31, %s38
      %p368 = scmp.eq.s32.totalorder %s367, 0
      %s370 = sadd.s32 %s369, 1
      %s371 = scalar_select %p368, %s369, %s370
      %p374 = pneg %p368
      %p375 = scmp.eq.s32.totalorder %s31, 1
      %p376 = por %p374, %p375
      %p377 = scmp.ne.s32.totalorder %s369, %s372
      %p378 = scmp.eq.s32.totalorder %s31, 0
      %p379 = por %p377, %p378
      %p380 = scmp.ne.s32.totalorder %s369, %s372
      %p381 = scmp.eq.s32.totalorder %s36, 1
      %p382 = por %p380, %p381
      %p383 = scmp.ne.s32.totalorder %s372, %s373
      %p384 = scmp.eq.s32.totalorder %s36, 0
      %p385 = por %p383, %p384
      %p386 = scmp.ne.s32.totalorder %s372, %s373
      %p387 = scmp.eq.s32.totalorder %s37, 1
      %p388 = por %p386, %p387
      %p390 = scmp.ne.s32.totalorder %s373, %s389
      %p391 = scmp.eq.s32.totalorder %s37, 0
      %p392 = por %p390, %p391
      %s394 = sadd.s32 %s393, 1
      %p397 = scmp.eq.s32.totalorder %s31, 1
      %p398 = scmp.ne.s32.totalorder %s393, %s395
      %p399 = scmp.eq.s32.totalorder %s31, 0
      %p400 = por %p398, %p399
      %p401 = scmp.ne.s32.totalorder %s393, %s395
      %p402 = scmp.eq.s32.totalorder %s36, 1
      %p403 = por %p401, %p402
      %p404 = scmp.ne.s32.totalorder %s395, %s396
      %p405 = scmp.eq.s32.totalorder %s36, 0
      %p406 = por %p404, %p405
      %p407 = scmp.ne.s32.totalorder %s395, %s396
      %p408 = scmp.eq.s32.totalorder %s37, 1
      %p409 = por %p407, %p408
      %p411 = scmp.ne.s32.totalorder %s396, %s410
      %p412 = scmp.eq.s32.totalorder %s37, 0
      %p413 = por %p411, %p412
      %s415 = sadd.s32 %s414, 1
      %p418 = scmp.eq.s32.totalorder %s31, 1
      %p419 = scmp.ne.s32.totalorder %s414, %s416
      %p420 = scmp.eq.s32.totalorder %s31, 0
      %p421 = por %p419, %p420
      %p422 = scmp.ne.s32.totalorder %s414, %s416
      %p423 = scmp.eq.s32.totalorder %s36, 1
      %p424 = por %p422, %p423
      %p425 = scmp.ne.s32.totalorder %s416, %s417
      %p426 = scmp.eq.s32.totalorder %s36, 0
      %p427 = por %p425, %p426
      %p428 = scmp.ne.s32.totalorder %s416, %s417
      %p429 = scmp.eq.s32.totalorder %s37, 1
      %p430 = por %p428, %p429
      %p432 = scmp.ne.s32.totalorder %s417, %s431
      %p433 = scmp.eq.s32.totalorder %s37, 0
      %p434 = por %p432, %p433
      %s436 = sadd.s32 %s435, 1
      %p439 = scmp.eq.s32.totalorder %s31, 1
      %p440 = scmp.ne.s32.totalorder %s435, %s437
      %p441 = scmp.eq.s32.totalorder %s31, 0
      %p442 = por %p440, %p441
      %p443 = scmp.ne.s32.totalorder %s435, %s437
      %p444 = scmp.eq.s32.totalorder %s36, 1
      %p445 = por %p443, %p444
      %p446 = scmp.ne.s32.totalorder %s437, %s438
      %p447 = scmp.eq.s32.totalorder %s36, 0
      %p448 = por %p446, %p447
      %p449 = scmp.ne.s32.totalorder %s437, %s438
      %p450 = scmp.eq.s32.totalorder %s37, 1
      %p451 = por %p449, %p450
      %p453 = scmp.ne.s32.totalorder %s438, %s452
      %p454 = scmp.eq.s32.totalorder %s37, 0
      %p455 = por %p453, %p454
      %s457 = sadd.s32 %s456, 1
      %p460 = scmp.eq.s32.totalorder %s31, 1
      %p461 = scmp.ne.s32.totalorder %s456, %s458
      %p462 = scmp.eq.s32.totalorder %s31, 0
      %p463 = por %p461, %p462
      %p464 = scmp.ne.s32.totalorder %s456, %s458
      %p465 = scmp.eq.s32.totalorder %s36, 1
      %p466 = por %p464, %p465
      %p467 = scmp.ne.s32.totalorder %s458, %s459
      %p468 = scmp.eq.s32.totalorder %s36, 0
      %p469 = por %p467, %p468
      %p470 = scmp.ne.s32.totalorder %s458, %s459
      %p471 = scmp.eq.s32.totalorder %s37, 1
      %p472 = por %p470, %p471
      %p474 = scmp.ne.s32.totalorder %s459, %s473
      %p475 = scmp.eq.s32.totalorder %s37, 0
      %p476 = por %p474, %p475
      %s478 = sadd.s32 %s477, 1
      %p481 = scmp.eq.s32.totalorder %s31, 1
      %p482 = scmp.ne.s32.totalorder %s477, %s479
      %p483 = scmp.eq.s32.totalorder %s31, 0
      %p484 = por %p482, %p483
      %p485 = scmp.ne.s32.totalorder %s477, %s479
      %p486 = scmp.eq.s32.totalorder %s36, 1
      %p487 = por %p485, %p486
      %p488 = scmp.ne.s32.totalorder %s479, %s480
      %p489 = scmp.eq.s32.totalorder %s36, 0
      %p490 = por %p488, %p489
      %p491 = scmp.ne.s32.totalorder %s479, %s480
      %p492 = scmp.eq.s32.totalorder %s37, 1
      %p493 = por %p491, %p492
      %p495 = scmp.ne.s32.totalorder %s480, %s494
      %p496 = scmp.eq.s32.totalorder %s37, 0
      %p497 = por %p495, %p496
      %s499 = sadd.s32 %s498, 1
      %p502 = scmp.eq.s32.totalorder %s31, 1
      %p503 = scmp.ne.s32.totalorder %s498, %s500
      %p504 = scmp.eq.s32.totalorder %s31, 0
      %p505 = por %p503, %p504
      %p506 = scmp.ne.s32.totalorder %s498, %s500
      %p507 = scmp.eq.s32.totalorder %s36, 1
      %p508 = por %p506, %p507
      %p509 = scmp.ne.s32.totalorder %s500, %s501
      %p510 = scmp.eq.s32.totalorder %s36, 0
      %p511 = por %p509, %p510
      %p512 = scmp.ne.s32.totalorder %s500, %s501
      %p513 = scmp.eq.s32.totalorder %s37, 1
      %p514 = por %p512, %p513
      %p516 = scmp.ne.s32.totalorder %s501, %s515
      %p517 = scmp.eq.s32.totalorder %s37, 0
      %p518 = por %p516, %p517
      %s520 = sadd.s32 %s519, 1
      %p523 = scmp.eq.s32.totalorder %s31, 1
      %p524 = scmp.ne.s32.totalorder %s519, %s521
      %p525 = scmp.eq.s32.totalorder %s31, 0
      %p526 = por %p524, %p525
      %p527 = scmp.ne.s32.totalorder %s519, %s521
      %p528 = scmp.eq.s32.totalorder %s36, 1
      %p529 = por %p527, %p528
      %p530 = scmp.ne.s32.totalorder %s521, %s522
      %p531 = scmp.eq.s32.totalorder %s36, 0
      %p532 = por %p530, %p531
      %p533 = scmp.ne.s32.totalorder %s521, %s522
      %p534 = scmp.eq.s32.totalorder %s37, 1
      %p535 = por %p533, %p534
      %p537 = scmp.ne.s32.totalorder %s522, %s536
      %p538 = scmp.eq.s32.totalorder %s37, 0
      %p539 = por %p537, %p538
      %s541 = sadd.s32 %s540, 1
      %p544 = scmp.eq.s32.totalorder %s31, 1
      %p545 = scmp.ne.s32.totalorder %s540, %s542
      %p546 = scmp.eq.s32.totalorder %s31, 0
      %p547 = por %p545, %p546
      %p548 = scmp.ne.s32.totalorder %s540, %s542
      %p549 = scmp.eq.s32.totalorder %s36, 1
      %p550 = por %p548, %p549
      %p551 = scmp.ne.s32.totalorder %s542, %s543
      %p552 = scmp.eq.s32.totalorder %s36, 0
      %p553 = por %p551, %p552
      %p554 = scmp.ne.s32.totalorder %s542, %s543
      %p555 = scmp.eq.s32.totalorder %s37, 1
      %p556 = por %p554, %p555
      %p558 = scmp.ne.s32.totalorder %s543, %s557
      %p559 = scmp.eq.s32.totalorder %s37, 0
      %p560 = por %p558, %p559
      %s562 = sadd.s32 %s561, 1
      %p565 = scmp.eq.s32.totalorder %s31, 1
      %p566 = scmp.ne.s32.totalorder %s561, %s563
      %p567 = scmp.eq.s32.totalorder %s31, 0
      %p568 = por %p566, %p567
      %p569 = scmp.ne.s32.totalorder %s561, %s563
      %p570 = scmp.eq.s32.totalorder %s36, 1
      %p571 = por %p569, %p570
      %p572 = scmp.ne.s32.totalorder %s563, %s564
      %p573 = scmp.eq.s32.totalorder %s36, 0
      %p574 = por %p572, %p573
      %p575 = scmp.ne.s32.totalorder %s563, %s564
      %p576 = scmp.eq.s32.totalorder %s37, 1
      %p577 = por %p575, %p576
      %p579 = scmp.ne.s32.totalorder %s564, %s578
      %p580 = scmp.eq.s32.totalorder %s37, 0
      %p581 = por %p579, %p580
      %p582 = scmp.le.s32.totalorder 1, %s31
      %p583 = scmp.lt.s32.totalorder %s31, 3
      %p584 = pnand %p582, %p583
      %p585 = pneg %p584
      // Predicated region
      $region9: #{tpu_custom_call.1} parent=5 // pred_check
        _
      $region10: #{tpu_custom_call.1} parent=5 // pred_check_branch
        %587 = sbr.rel (%p584) target = $region12
      $region11: #{tpu_custom_call.1} parent=5 // pred_region
        %s588 = ssub.s32 %s31, 1
        // Predicated region
        $region13: #{tpu_custom_call.1} parent=11 // pred_check
          %p589 = pneg %p52
        $region14: #{tpu_custom_call.1} parent=11 // pred_check_branch
          %591 = sbr.rel (%p589) target = $region16
        $region15: #{tpu_custom_call.1} parent=11 // pred_region
          %593 = vsyncadd [#allocation4], 0
          %s594 = sshll.u32 %s0, 4
          %s595 = int_to_ptr.hbm [resolvable:$true] %s594
          %s596 = sshll.u32 [#allocation3], 4
          %s597 = int_to_ptr.vmem [resolvable:$true] %s596
          %602 = dma.hbm_to_vmem [thread:$0]  %s595, 512, %s597, [#allocation4], 128, 128, 8
        $region16: #{tpu_custom_call.1} parent=11 // pred_fallthru
          _
        // Predicated region
        $region17: #{tpu_custom_call.1} parent=11 // pred_check
          %p603 = pneg %p73
        $region18: #{tpu_custom_call.1} parent=11 // pred_check_branch
          %605 = sbr.rel (%p603) target = $region20
        $region19: #{tpu_custom_call.1} parent=11 // pred_region
          %607 = vsyncadd [#allocation7], 0
          %s609 = sshll.u32 %s1, 4
          %s610 = int_to_ptr.hbm [resolvable:$true] %s609
          %s611 = sshll.u32 [#allocation6], 4
          %s612 = int_to_ptr.vmem [resolvable:$true] %s611
          %614 = dma.hbm_to_vmem [thread:$0]  %s610, 128, %s612, [#allocation7]
        $region20: #{tpu_custom_call.1} parent=11 // pred_fallthru
          _
        // Predicated region
        $region21: #{tpu_custom_call.1} parent=11 // pred_check
          %p615 = pneg %p406
        $region22: #{tpu_custom_call.1} parent=11 // pred_check_branch
          %617 = sbr.rel (%p615) target = $region24
        $region23: #{tpu_custom_call.1} parent=11 // pred_region
          _
        $region24: #{tpu_custom_call.1} parent=11 // pred_fallthru
          _
        // Predicated region
        $region25: #{tpu_custom_call.1} parent=11 // pred_check
          %p618 = pneg %p427
        $region26: #{tpu_custom_call.1} parent=11 // pred_check_branch
          %620 = sbr.rel (%p618) target = $region28
        $region27: #{tpu_custom_call.1} parent=11 // pred_region
          _
        $region28: #{tpu_custom_call.1} parent=11 // pred_fallthru
          _
        // Predicated region
        $region29: #{tpu_custom_call.1} parent=11 // pred_check
          %p621 = pneg %p448
        $region30: #{tpu_custom_call.1} parent=11 // pred_check_branch
          %623 = sbr.rel (%p621) target = $region32
        $region31: #{tpu_custom_call.1} parent=11 // pred_region
          _
        $region32: #{tpu_custom_call.1} parent=11 // pred_fallthru
          _
        // Predicated region
        $region33: #{tpu_custom_call.1} parent=11 // pred_check
          %p624 = pneg %p469
        $region34: #{tpu_custom_call.1} parent=11 // pred_check_branch
          %626 = sbr.rel (%p624) target = $region36
        $region35: #{tpu_custom_call.1} parent=11 // pred_region
          _
        $region36: #{tpu_custom_call.1} parent=11 // pred_fallthru
          _
        // Predicated region
        $region37: #{tpu_custom_call.1} parent=11 // pred_check
          %p627 = pneg %p490
        $region38: #{tpu_custom_call.1} parent=11 // pred_check_branch
          %629 = sbr.rel (%p627) target = $region40
        $region39: #{tpu_custom_call.1} parent=11 // pred_region
          _
        $region40: #{tpu_custom_call.1} parent=11 // pred_fallthru
          _
        // Predicated region
        $region41: #{tpu_custom_call.1} parent=11 // pred_check
          %p630 = pneg %p511
        $region42: #{tpu_custom_call.1} parent=11 // pred_check_branch
          %632 = sbr.rel (%p630) target = $region44
        $region43: #{tpu_custom_call.1} parent=11 // pred_region
          _
        $region44: #{tpu_custom_call.1} parent=11 // pred_fallthru
          _
        // Predicated region
        $region45: #{tpu_custom_call.1} parent=11 // pred_check
          %p633 = pneg %p532
        $region46: #{tpu_custom_call.1} parent=11 // pred_check_branch
          %635 = sbr.rel (%p633) target = $region48
        $region47: #{tpu_custom_call.1} parent=11 // pred_region
          %637 = vsyncadd [#allocation7], 0
          %s638 = sshll.u32 %s20, 4
          %s639 = int_to_ptr.hbm [resolvable:$true] %s638
          %s640 = sshll.u32 [#allocation16], 4
          %s641 = int_to_ptr.vmem [resolvable:$true] %s640
          %646 = dma.hbm_to_vmem [thread:$0]  %s639, 1024, %s641, [#allocation7], 64, 64, 4
        $region48: #{tpu_custom_call.1} parent=11 // pred_fallthru
          _
        // Predicated region
        $region49: #{tpu_custom_call.1} parent=11 // pred_check
          %p647 = pneg %p553
        $region50: #{tpu_custom_call.1} parent=11 // pred_check_branch
          %649 = sbr.rel (%p647) target = $region52
        $region51: #{tpu_custom_call.1} parent=11 // pred_region
          _
        $region52: #{tpu_custom_call.1} parent=11 // pred_fallthru
          _
      $region12: #{tpu_custom_call.1} parent=5 // pred_fallthru
        _
      %p650 = scmp.lt.s32.totalorder %s31, 2
      // Predicated region
      $region53: #{tpu_custom_call.1} parent=5 // pred_check
        %p651 = pneg %p650
      $region54: #{tpu_custom_call.1} parent=5 // pred_check_branch
        %653 = sbr.rel (%p651) target = $region56
      $region55: #{tpu_custom_call.1} parent=5 // pred_region
        // Predicated region
        $region57: #{tpu_custom_call.1} parent=55 // pred_check
          %p654 = pneg %p93
        $region58: #{tpu_custom_call.1} parent=55 // pred_check_branch
          %656 = sbr.rel (%p654) target = $region60
        $region59: #{tpu_custom_call.1} parent=55 // pred_region
          %s657 = sand.u32 %s31, 1
          %s658 = scalar_lea.sflag [#allocation4], %s657
          %s659 = sand.u32 %s83, 1
          %s660 = smul.addr %s659, 192
          %s661 = scalar_lea.vmem [#allocation8], %s660
          %663 = vsyncadd %s658, 0
          %s664 = smul.addr %s31, 48
          %s665 = smul.addr %s664, 4
          %s666 = scalar_lea.hbm %s2, %s665
          %s667 = sshll.u32 %s666, 4
          %s668 = int_to_ptr.hbm [resolvable:$true] %s667
          %s669 = sshll.u32 %s661, 4
          %s670 = int_to_ptr.vmem [resolvable:$true] %s669
          %675 = dma.hbm_to_vmem [thread:$0]  %s668, 3072, %s670, %s658, 192, 192, 12
        $region60: #{tpu_custom_call.1} parent=55 // pred_fallthru
          _
        // Predicated region
        $region61: #{tpu_custom_call.1} parent=55 // pred_check
          %p676 = pneg %p119
        $region62: #{tpu_custom_call.1} parent=55 // pred_check_branch
          %678 = sbr.rel (%p676) target = $region64
        $region63: #{tpu_custom_call.1} parent=55 // pred_region
          %s679 = sand.u32 %s31, 1
          %s680 = scalar_lea.sflag [#allocation4], %s679
          %s681 = sand.u32 %s109, 1
          %s682 = smul.addr %s681, 3
          %s683 = scalar_lea.vmem [#allocation9], %s682
          %685 = vsyncadd %s680, 0
          %s686 = smul.addr %s31, 3
          %s687 = scalar_lea.hbm %s3, %s686
          %s689 = sshll.u32 %s687, 4
          %s690 = int_to_ptr.hbm [resolvable:$true] %s689
          %s691 = sshll.u32 %s683, 4
          %s692 = int_to_ptr.vmem [resolvable:$true] %s691
          %694 = dma.hbm_to_vmem [thread:$0]  %s690, 48, %s692, %s680
        $region64: #{tpu_custom_call.1} parent=55 // pred_fallthru
          _
        // Predicated region
        $region65: #{tpu_custom_call.1} parent=55 // pred_check
          %p695 = pneg %p145
        $region66: #{tpu_custom_call.1} parent=55 // pred_check_branch
          %697 = sbr.rel (%p695) target = $region68
        $region67: #{tpu_custom_call.1} parent=55 // pred_region
          %s698 = sand.u32 %s31, 1
          %s699 = scalar_lea.sflag [#allocation4], %s698
          %s700 = sand.u32 %s135, 1
          %s701 = smul.addr %s700, 64
          %s702 = scalar_lea.vmem [#allocation10], %s701
          %704 = vsyncadd %s699, 0
          %s705 = smul.addr %s31, 16
          %s706 = smul.addr %s705, 4
          %s707 = scalar_lea.hbm %s4, %s706
          %s708 = sshll.u32 %s707, 4
          %s709 = int_to_ptr.hbm [resolvable:$true] %s708
          %s710 = sshll.u32 %s702, 4
          %s711 = int_to_ptr.vmem [resolvable:$true] %s710
          %716 = dma.hbm_to_vmem [thread:$0]  %s709, 1024, %s711, %s699, 64, 64, 4
        $region68: #{tpu_custom_call.1} parent=55 // pred_fallthru
          _
        // Predicated region
        $region69: #{tpu_custom_call.1} parent=55 // pred_check
          %p717 = pneg %p171
        $region70: #{tpu_custom_call.1} parent=55 // pred_check_branch
          %719 = sbr.rel (%p717) target = $region72
        $region71: #{tpu_custom_call.1} parent=55 // pred_region
          %p720 = scmp.lt.s32.totalorder %s31, 1
          %s721 = scalar_select %p720, %s31, 1
          %s722 = scalar_lea.vmem %s5, %s721
        $region72: #{tpu_custom_call.1} parent=55 // pred_fallthru
          _
        // Predicated region
        $region73: #{tpu_custom_call.1} parent=55 // pred_check
          %p723 = pneg %p197
        $region74: #{tpu_custom_call.1} parent=55 // pred_check_branch
          %725 = sbr.rel (%p723) target = $region76
        $region75: #{tpu_custom_call.1} parent=55 // pred_region
          %s726 = sand.u32 %s31, 1
          %s727 = scalar_lea.sflag [#allocation4], %s726
          %s728 = sand.u32 %s187, 1
          %s729 = scalar_lea.vmem [#allocation11], %s728
          %731 = vsyncadd %s727, 0
          %s732 = scalar_lea.hbm %s6, %s31
          %s734 = sshll.u32 %s732, 4
          %s735 = int_to_ptr.hbm [resolvable:$true] %s734
          %s736 = sshll.u32 %s729, 4
          %s737 = int_to_ptr.vmem [resolvable:$true] %s736
          %739 = dma.hbm_to_vmem [thread:$0]  %s735, 16, %s737, %s727
        $region76: #{tpu_custom_call.1} parent=55 // pred_fallthru
          _
        // Predicated region
        $region77: #{tpu_custom_call.1} parent=55 // pred_check
          %p740 = pneg %p223
        $region78: #{tpu_custom_call.1} parent=55 // pred_check_branch
          %742 = sbr.rel (%p740) target = $region80
        $region79: #{tpu_custom_call.1} parent=55 // pred_region
          %s743 = sand.u32 %s31, 1
          %s744 = scalar_lea.sflag [#allocation4], %s743
          %s745 = sand.u32 %s213, 1
          %s746 = scalar_lea.vmem [#allocation12], %s745
          %748 = vsyncadd %s744, 0
          %s749 = scalar_lea.hbm %s7, %s31
          %s751 = sshll.u32 %s749, 4
          %s752 = int_to_ptr.hbm [resolvable:$true] %s751
          %s753 = sshll.u32 %s746, 4
          %s754 = int_to_ptr.vmem [resolvable:$true] %s753
          %756 = dma.hbm_to_vmem [thread:$0]  %s752, 16, %s754, %s744
        $region80: #{tpu_custom_call.1} parent=55 // pred_fallthru
          _
        // Predicated region
        $region81: #{tpu_custom_call.1} parent=55 // pred_check
          %p757 = pneg %p249
        $region82: #{tpu_custom_call.1} parent=55 // pred_check_branch
          %759 = sbr.rel (%p757) target = $region84
        $region83: #{tpu_custom_call.1} parent=55 // pred_region
          %s760 = sand.u32 %s31, 1
          %s761 = scalar_lea.sflag [#allocation4], %s760
          %s762 = sand.u32 %s239, 1
          %s763 = scalar_lea.vmem [#allocation13], %s762
          %765 = vsyncadd %s761, 0
          %s766 = scalar_lea.hbm %s8, %s31
          %s768 = sshll.u32 %s766, 4
          %s769 = int_to_ptr.hbm [resolvable:$true] %s768
          %s770 = sshll.u32 %s763, 4
          %s771 = int_to_ptr.vmem [resolvable:$true] %s770
          %773 = dma.hbm_to_vmem [thread:$0]  %s769, 16, %s771, %s761
        $region84: #{tpu_custom_call.1} parent=55 // pred_fallthru
          _
        // Predicated region
        $region85: #{tpu_custom_call.1} parent=55 // pred_check
          %p774 = pneg %p275
        $region86: #{tpu_custom_call.1} parent=55 // pred_check_branch
          %776 = sbr.rel (%p774) target = $region88
        $region87: #{tpu_custom_call.1} parent=55 // pred_region
          %p777 = scmp.lt.s32.totalorder %s31, 1
          %s778 = scalar_select %p777, %s31, 1
          %s779 = scalar_lea.vmem %s9, %s778
        $region88: #{tpu_custom_call.1} parent=55 // pred_fallthru
          _
        // Predicated region
        $region89: #{tpu_custom_call.1} parent=55 // pred_check
          %p780 = pneg %p301
        $region90: #{tpu_custom_call.1} parent=55 // pred_check_branch
          %782 = sbr.rel (%p780) target = $region92
        $region91: #{tpu_custom_call.1} parent=55 // pred_region
          %s783 = sand.u32 %s31, 1
          %s784 = scalar_lea.sflag [#allocation4], %s783
          %s785 = sand.u32 %s291, 1
          %s786 = smul.addr %s785, 128
          %s787 = scalar_lea.vmem [#allocation14], %s786
          %789 = vsyncadd %s784, 0
          %s790 = smul.addr %s31, 32
          %s791 = smul.addr %s790, 4
          %s792 = scalar_lea.hbm %s10, %s791
          %s793 = sshll.u32 %s792, 4
          %s794 = int_to_ptr.hbm [resolvable:$true] %s793
          %s795 = sshll.u32 %s787, 4
          %s796 = int_to_ptr.vmem [resolvable:$true] %s795
          %801 = dma.hbm_to_vmem [thread:$0]  %s794, 2048, %s796, %s784, 128, 128, 8
        $region92: #{tpu_custom_call.1} parent=55 // pred_fallthru
          _
        // Predicated region
        $region93: #{tpu_custom_call.1} parent=55 // pred_check
          %p802 = pneg %p327
        $region94: #{tpu_custom_call.1} parent=55 // pred_check_branch
          %804 = sbr.rel (%p802) target = $region96
        $region95: #{tpu_custom_call.1} parent=55 // pred_region
          %p805 = scmp.lt.s32.totalorder %s31, 1
          %s806 = scalar_select %p805, %s31, 1
          %s807 = smul.addr %s806, 2
          %s808 = scalar_lea.vmem %s11, %s807
        $region96: #{tpu_custom_call.1} parent=55 // pred_fallthru
          _
        // Predicated region
        $region97: #{tpu_custom_call.1} parent=55 // pred_check
          %p809 = pneg %p353
        $region98: #{tpu_custom_call.1} parent=55 // pred_check_branch
          %811 = sbr.rel (%p809) target = $region100
        $region99: #{tpu_custom_call.1} parent=55 // pred_region
          %s812 = sand.u32 %s31, 1
          %s813 = scalar_lea.sflag [#allocation4], %s812
          %s814 = sand.u32 %s343, 1
          %s815 = smul.addr %s814, 128
          %s816 = scalar_lea.vmem [#allocation15], %s815
          %818 = vsyncadd %s813, 0
          %s819 = smul.addr %s31, 32
          %s820 = smul.addr %s819, 4
          %s821 = scalar_lea.hbm %s12, %s820
          %s822 = sshll.u32 %s821, 4
          %s823 = int_to_ptr.hbm [resolvable:$true] %s822
          %s824 = sshll.u32 %s816, 4
          %s825 = int_to_ptr.vmem [resolvable:$true] %s824
          %830 = dma.hbm_to_vmem [thread:$0]  %s823, 2048, %s825, %s813, 64, 64, 4
        $region100: #{tpu_custom_call.1} parent=55 // pred_fallthru
          _
        // Predicated region
        $region101: #{tpu_custom_call.1} parent=55 // pred_check
          %p831 = pneg %p379
        $region102: #{tpu_custom_call.1} parent=55 // pred_check_branch
          %833 = sbr.rel (%p831) target = $region104
        $region103: #{tpu_custom_call.1} parent=55 // pred_region
          %p834 = scmp.lt.s32.totalorder %s31, 1
          %s835 = scalar_select %p834, %s31, 1
          %s836 = scalar_lea.vmem %s13, %s835
        $region104: #{tpu_custom_call.1} parent=55 // pred_fallthru
          _
      $region56: #{tpu_custom_call.1} parent=5 // pred_fallthru
        _
      %p837 = scmp.le.s32.totalorder 1, %s31
      %p838 = scmp.lt.s32.totalorder %s31, 3
      %p839 = pnand %p837, %p838
      %p840 = pneg %p839
      // Predicated region
      $region105: #{tpu_custom_call.1} parent=5 // pred_check
        _
      $region106: #{tpu_custom_call.1} parent=5 // pred_check_branch
        %842 = sbr.rel (%p839) target = $region108
      $region107: #{tpu_custom_call.1} parent=5 // pred_region
        %s843 = ssub.s32 %s31, 1
        // Predicated region
        $region109: #{tpu_custom_call.1} parent=107 // pred_check
          %p844 = pneg %p52
        $region110: #{tpu_custom_call.1} parent=107 // pred_check_branch
          %846 = sbr.rel (%p844) target = $region112
        $region111: #{tpu_custom_call.1} parent=107 // pred_region
          %848 = dma.done [#allocation4], 512
        $region112: #{tpu_custom_call.1} parent=107 // pred_fallthru
          _
        // Predicated region
        $region113: #{tpu_custom_call.1} parent=107 // pred_check
          %p849 = pneg %p73
        $region114: #{tpu_custom_call.1} parent=107 // pred_check_branch
          %851 = sbr.rel (%p849) target = $region116
        $region115: #{tpu_custom_call.1} parent=107 // pred_region
          %853 = dma.done [#allocation7], 128
        $region116: #{tpu_custom_call.1} parent=107 // pred_fallthru
          _
        %s854 = sand.u32 %s36, 1
        %s855 = scalar_lea.sflag [#allocation4], %s854
        %s856 = sand.u32 %s86, 1
        %s857 = smul.addr %s856, 192
        %s858 = scalar_lea.vmem [#allocation8], %s857
        // Predicated region
        $region117: #{tpu_custom_call.1} parent=107 // pred_check
          %p859 = pneg %p99
        $region118: #{tpu_custom_call.1} parent=107 // pred_check_branch
          %861 = sbr.rel (%p859) target = $region120
        $region119: #{tpu_custom_call.1} parent=107 // pred_region
          %863 = dma.done %s855, 3072
        $region120: #{tpu_custom_call.1} parent=107 // pred_fallthru
          _
        %s864 = sand.u32 %s36, 1
        %s865 = scalar_lea.sflag [#allocation4], %s864
        %s866 = sand.u32 %s112, 1
        %s867 = smul.addr %s866, 3
        %s868 = scalar_lea.vmem [#allocation9], %s867
        // Predicated region
        $region121: #{tpu_custom_call.1} parent=107 // pred_check
          %p869 = pneg %p125
        $region122: #{tpu_custom_call.1} parent=107 // pred_check_branch
          %871 = sbr.rel (%p869) target = $region124
        $region123: #{tpu_custom_call.1} parent=107 // pred_region
          %873 = dma.done %s865, 48
        $region124: #{tpu_custom_call.1} parent=107 // pred_fallthru
          _
        %s874 = sand.u32 %s36, 1
        %s875 = scalar_lea.sflag [#allocation4], %s874
        %s876 = sand.u32 %s138, 1
        %s877 = smul.addr %s876, 64
        %s878 = scalar_lea.vmem [#allocation10], %s877
        // Predicated region
        $region125: #{tpu_custom_call.1} parent=107 // pred_check
          %p879 = pneg %p151
        $region126: #{tpu_custom_call.1} parent=107 // pred_check_branch
          %881 = sbr.rel (%p879) target = $region128
        $region127: #{tpu_custom_call.1} parent=107 // pred_region
          %883 = dma.done %s875, 1024
        $region128: #{tpu_custom_call.1} parent=107 // pred_fallthru
          _
        %s884 = sand.u32 %s36, 1
        %s885 = scalar_lea.sflag [#allocation4], %s884
        %s886 = sand.u32 %s190, 1
        %s887 = scalar_lea.vmem [#allocation11], %s886
        // Predicated region
        $region129: #{tpu_custom_call.1} parent=107 // pred_check
          %p888 = pneg %p203
        $region130: #{tpu_custom_call.1} parent=107 // pred_check_branch
          %890 = sbr.rel (%p888) target = $region132
        $region131: #{tpu_custom_call.1} parent=107 // pred_region
          %892 = dma.done %s885, 16
        $region132: #{tpu_custom_call.1} parent=107 // pred_fallthru
          _
        %s893 = sand.u32 %s36, 1
        %s894 = scalar_lea.sflag [#allocation4], %s893
        %s895 = sand.u32 %s216, 1
        %s896 = scalar_lea.vmem [#allocation12], %s895
        // Predicated region
        $region133: #{tpu_custom_call.1} parent=107 // pred_check
          %p897 = pneg %p229
        $region134: #{tpu_custom_call.1} parent=107 // pred_check_branch
          %899 = sbr.rel (%p897) target = $region136
        $region135: #{tpu_custom_call.1} parent=107 // pred_region
          %901 = dma.done %s894, 16
        $region136: #{tpu_custom_call.1} parent=107 // pred_fallthru
          _
        %s902 = sand.u32 %s36, 1
        %s903 = scalar_lea.sflag [#allocation4], %s902
        %s904 = sand.u32 %s242, 1
        %s905 = scalar_lea.vmem [#allocation13], %s904
        // Predicated region
        $region137: #{tpu_custom_call.1} parent=107 // pred_check
          %p906 = pneg %p255
        $region138: #{tpu_custom_call.1} parent=107 // pred_check_branch
          %908 = sbr.rel (%p906) target = $region140
        $region139: #{tpu_custom_call.1} parent=107 // pred_region
          %910 = dma.done %s903, 16
        $region140: #{tpu_custom_call.1} parent=107 // pred_fallthru
          _
        %s911 = sand.u32 %s36, 1
        %s912 = scalar_lea.sflag [#allocation4], %s911
        %s913 = sand.u32 %s294, 1
        %s914 = smul.addr %s913, 128
        %s915 = scalar_lea.vmem [#allocation14], %s914
        // Predicated region
        $region141: #{tpu_custom_call.1} parent=107 // pred_check
          %p916 = pneg %p307
        $region142: #{tpu_custom_call.1} parent=107 // pred_check_branch
          %918 = sbr.rel (%p916) target = $region144
        $region143: #{tpu_custom_call.1} parent=107 // pred_region
          %920 = dma.done %s912, 2048
        $region144: #{tpu_custom_call.1} parent=107 // pred_fallthru
          _
        %s921 = sand.u32 %s36, 1
        %s922 = scalar_lea.sflag [#allocation4], %s921
        %s923 = sand.u32 %s346, 1
        %s924 = smul.addr %s923, 128
        %s925 = scalar_lea.vmem [#allocation15], %s924
        // Predicated region
        $region145: #{tpu_custom_call.1} parent=107 // pred_check
          %p926 = pneg %p359
        $region146: #{tpu_custom_call.1} parent=107 // pred_check_branch
          %928 = sbr.rel (%p926) target = $region148
        $region147: #{tpu_custom_call.1} parent=107 // pred_region
          %930 = dma.done %s922, 2048
        $region148: #{tpu_custom_call.1} parent=107 // pred_fallthru
          _
        // Predicated region
        $region149: #{tpu_custom_call.1} parent=107 // pred_check
          %p931 = pneg %p532
        $region150: #{tpu_custom_call.1} parent=107 // pred_check_branch
          %933 = sbr.rel (%p931) target = $region152
        $region151: #{tpu_custom_call.1} parent=107 // pred_region
          %935 = dma.done [#allocation7], 1024
        $region152: #{tpu_custom_call.1} parent=107 // pred_fallthru
          _
        %p936 = pneg %p52
        %p937 = pneg %p49
        %p938 = pneg %p73
        %p939 = pneg %p70
        %s940 = sand.u32 %s36, 1
        %s941 = scalar_lea.sflag [#allocation4], %s940
        %s942 = sand.u32 %s86, 1
        %s943 = smul.addr %s942, 192
        %s944 = scalar_lea.vmem [#allocation8], %s943
        %p945 = pneg %p99
        %p946 = pneg %p96
        %s947 = sand.u32 %s36, 1
        %s948 = scalar_lea.sflag [#allocation4], %s947
        %s949 = sand.u32 %s112, 1
        %s950 = smul.addr %s949, 3
        %s951 = scalar_lea.vmem [#allocation9], %s950
        %p952 = pneg %p125
        %p953 = pneg %p122
        %s954 = sand.u32 %s36, 1
        %s955 = scalar_lea.sflag [#allocation4], %s954
        %s956 = sand.u32 %s138, 1
        %s957 = smul.addr %s956, 64
        %s958 = scalar_lea.vmem [#allocation10], %s957
        %p959 = pneg %p151
        %p960 = pneg %p148
        %p961 = scmp.lt.s32.totalorder %s36, 1
        %s962 = scalar_select %p961, %s36, 1
        %s963 = scalar_lea.vmem %s5, %s962
        %p964 = pneg %p177
        %p965 = pneg %p174
        %s966 = sand.u32 %s36, 1
        %s967 = scalar_lea.sflag [#allocation4], %s966
        %s968 = sand.u32 %s190, 1
        %s969 = scalar_lea.vmem [#allocation11], %s968
        %p970 = pneg %p203
        %p971 = pneg %p200
        %s972 = sand.u32 %s36, 1
        %s973 = scalar_lea.sflag [#allocation4], %s972
        %s974 = sand.u32 %s216, 1
        %s975 = scalar_lea.vmem [#allocation12], %s974
        %p976 = pneg %p229
        %p977 = pneg %p226
        %s978 = sand.u32 %s36, 1
        %s979 = scalar_lea.sflag [#allocation4], %s978
        %s980 = sand.u32 %s242, 1
        %s981 = scalar_lea.vmem [#allocation13], %s980
        %p982 = pneg %p255
        %p983 = pneg %p252
        %p984 = scmp.lt.s32.totalorder %s36, 1
        %s985 = scalar_select %p984, %s36, 1
        %s986 = scalar_lea.vmem %s9, %s985
        %p987 = pneg %p281
        %p988 = pneg %p278
        %s989 = sand.u32 %s36, 1
        %s990 = scalar_lea.sflag [#allocation4], %s989
        %s991 = sand.u32 %s294, 1
        %s992 = smul.addr %s991, 128
        %s993 = scalar_lea.vmem [#allocation14], %s992
        %p994 = pneg %p307
        %p995 = pneg %p304
        %p996 = scmp.lt.s32.totalorder %s36, 1
        %s997 = scalar_select %p996, %s36, 1
        %s998 = smul.addr %s997, 2
        %s999 = scalar_lea.vmem %s11, %s998
        %p1000 = pneg %p333
        %p1001 = pneg %p330
        %s1002 = sand.u32 %s36, 1
        %s1003 = scalar_lea.sflag [#allocation4], %s1002
        %s1004 = sand.u32 %s346, 1
        %s1005 = smul.addr %s1004, 128
        %s1006 = scalar_lea.vmem [#allocation15], %s1005
        %p1007 = pneg %p359
        %p1008 = pneg %p356
        %p1009 = scmp.lt.s32.totalorder %s36, 1
        %s1010 = scalar_select %p1009, %s36, 1
        %s1011 = scalar_lea.vmem %s13, %s1010
        %p1012 = pneg %p385
        %p1013 = pneg %p382
        %p1014 = pneg %p406
        %p1015 = pneg %p403
        %p1016 = pneg %p427
        %p1017 = pneg %p424
        %p1018 = pneg %p448
        %p1019 = pneg %p445
        %p1020 = pneg %p469
        %p1021 = pneg %p466
        %p1022 = pneg %p490
        %p1023 = pneg %p487
        %p1024 = pneg %p511
        %p1025 = pneg %p508
        %p1026 = pneg %p532
        %p1027 = pneg %p529
        %p1028 = pneg %p553
        %p1029 = pneg %p550
        %p1030 = pneg %p574
        %p1031 = pneg %p571
        %p1032 = scmp.lt.s32.totalorder %s36, 1
        %s1033 = scalar_select %p1032, %s36, 1
        %s1034 = scalar_lea.vmem %s5, %s1033
        %p1035 = scmp.lt.s32.totalorder %s36, 1
        %s1036 = scalar_select %p1035, %s36, 1
        %s1037 = scalar_lea.vmem %s9, %s1036
        %p1038 = scmp.lt.s32.totalorder %s36, 1
        %s1039 = scalar_select %p1038, %s36, 1
        %s1040 = smul.addr %s1039, 2
        %s1041 = scalar_lea.vmem %s11, %s1040
        %p1042 = scmp.lt.s32.totalorder %s36, 1
        %s1043 = scalar_select %p1042, %s36, 1
        %s1044 = scalar_lea.vmem %s13, %s1043
        %p1046 = scmp.eq.s32.totalorder %s36, 0
        // Predicated region
        $region153: #{tpu_custom_call.1} parent=107 // pred_check
          %p1047 = pneg %p1046
        $region154: #{tpu_custom_call.1} parent=107 // pred_check_branch
          %1049 = sbr.rel (%p1047) target = $region156
        $region155: #{tpu_custom_call.1} parent=107 // pred_region
          %v1050 = vld [vmem:[#allocation3] sm:$0xff]
          %v1051 = vld [vmem:[#allocation3 + $0x8] sm:$0xff]
          %v1052 = vld [vmem:[#allocation3 + $0x10] sm:$0xff]
          %v1053 = vld [vmem:[#allocation3 + $0x18] sm:$0xff]
          %1054 = vst [vmem:[#allocation2] sm:$0xff] %v1050
          %1055 = vst [vmem:[#allocation2 + $0x8] sm:$0xff] %v1051
          %1056 = vst [vmem:[#allocation2 + $0x10] sm:$0xff] %v1052
          %1057 = vst [vmem:[#allocation2 + $0x18] sm:$0xff] %v1053
        $region156: #{tpu_custom_call.1} parent=107 // pred_fallthru
          _
        %v1058 = vld [vmem:[#allocation2] sm:$0xff]
        %v1059 = vld [vmem:[#allocation2 + $0x8] sm:$0xff]
        %v1060 = vld [vmem:[#allocation2 + $0x10] sm:$0xff]
        %v1061 = vld [vmem:[#allocation2 + $0x18] sm:$0xff]
        %v1062 = vld [vmem:[#allocation6] sm:$0xff]
        %v1063 = vld [vmem:[%s887] sm:$0x1]
        %v1064 = vld [vmem:[%s896] sm:$0x1]
        %1065 = vadd.xlane.f32.xlu0 %v1058
        %v1066 = vpop.xlane.xlu0 %1065
        %1067 = vadd.xlane.f32.xlu0 %v1059
        %v1068 = vpop.xlane.xlu0 %1067
        %1069 = vadd.xlane.f32.xlu0 %v1060
        %v1070 = vpop.xlane.xlu0 %1069
        %1071 = vadd.xlane.f32.xlu0 %v1061
        %v1072 = vpop.xlane.xlu0 %1071
        %v1073 = vrcp.pop 128.0
        %v1074 = vmul.f32 128.0, %v1073
        %v1075 = vsub.f32 1.0, %v1074
        %v1076 = vmul.f32 %v1073, %v1075
        %v1077 = vadd.f32 %v1073, %v1076
        %vm1078 = vweird.f32 %v1073
        %v1079 = vsel %vm1078, %v1073, %v1077
        %v1080 = vmul.f32 %v1066, %v1079
        %v1081 = vmul.f32 %v1068, %v1079
        %v1082 = vmul.f32 %v1070, %v1079
        %v1083 = vmul.f32 %v1072, %v1079
        %v1084 = vsub.f32 %v1058, %v1080
        %v1085 = vsub.f32 %v1059, %v1081
        %v1086 = vsub.f32 %v1060, %v1082
        %v1087 = vsub.f32 %v1061, %v1083
        %v1088 = vmul.f32 %v1084, %v1084
        %v1089 = vmul.f32 %v1085, %v1085
        %v1090 = vmul.f32 %v1086, %v1086
        %v1091 = vmul.f32 %v1087, %v1087
        %1092 = vadd.xlane.f32.xlu0 %v1088
        %v1093 = vpop.xlane.xlu0 %1092
        %1094 = vadd.xlane.f32.xlu0 %v1089
        %v1095 = vpop.xlane.xlu0 %1094
        %1096 = vadd.xlane.f32.xlu0 %v1090
        %v1097 = vpop.xlane.xlu0 %1096
        %1098 = vadd.xlane.f32.xlu0 %v1091
        %v1099 = vpop.xlane.xlu0 %1098
        %v1100 = vmul.f32 %v1093, %v1079
        %v1101 = vmul.f32 %v1095, %v1079
        %v1102 = vmul.f32 %v1097, %v1079
        %v1103 = vmul.f32 %v1099, %v1079
        %v1104 = vadd.f32 %v1100, 1e-05
        %v1105 = vadd.f32 %v1101, 1e-05
        %v1106 = vadd.f32 %v1102, 1e-05
        %v1107 = vadd.f32 %v1103, 1e-05
        %v1108 = vrsqrt.pop %v1104
        %v1109 = vmul.f32 %v1108, %v1104
        %v1110 = vmul.f32 %v1109, %v1108
        %v1111 = vmul.f32 0.5, %v1110
        %v1112 = vsub.f32 1.5, %v1111
        %v1113 = vmul.f32 %v1108, %v1112
        %vm1114 = vweird.f32 %v1104
        %vm1115 = vweird.f32 %v1108
        %vm1116 = vmor %vm1114, %vm1115
        %v1117 = vsel %vm1116, %v1108, %v1113
        %v1118 = vrsqrt.pop %v1105
        %v1119 = vmul.f32 %v1118, %v1105
        %v1120 = vmul.f32 %v1119, %v1118
        %v1121 = vmul.f32 0.5, %v1120
        %v1122 = vsub.f32 1.5, %v1121
        %v1123 = vmul.f32 %v1118, %v1122
        %vm1124 = vweird.f32 %v1105
        %vm1125 = vweird.f32 %v1118
        %vm1126 = vmor %vm1124, %vm1125
        %v1127 = vsel %vm1126, %v1118, %v1123
        %v1128 = vrsqrt.pop %v1106
        %v1129 = vmul.f32 %v1128, %v1106
        %v1130 = vmul.f32 %v1129, %v1128
        %v1131 = vmul.f32 0.5, %v1130
        %v1132 = vsub.f32 1.5, %v1131
        %v1133 = vmul.f32 %v1128, %v1132
        %vm1134 = vweird.f32 %v1106
        %vm1135 = vweird.f32 %v1128
        %vm1136 = vmor %vm1134, %vm1135
        %v1137 = vsel %vm1136, %v1128, %v1133
        %v1138 = vrsqrt.pop %v1107
        %v1139 = vmul.f32 %v1138, %v1107
        %v1140 = vmul.f32 %v1139, %v1138
        %v1141 = vmul.f32 0.5, %v1140
        %v1142 = vsub.f32 1.5, %v1141
        %v1143 = vmul.f32 %v1138, %v1142
        %vm1144 = vweird.f32 %v1107
        %vm1145 = vweird.f32 %v1138
        %vm1146 = vmor %vm1144, %vm1145
        %v1147 = vsel %vm1146, %v1138, %v1143
        %v1148 = vmul.f32 %v1084, %v1117
        %v1149 = vmul.f32 %v1085, %v1127
        %v1150 = vmul.f32 %v1086, %v1137
        %v1151 = vmul.f32 %v1087, %v1147
        %v1153 = vperm.slane %v1063, 0
        %v1155 = vmul.f32 %v1148, %v1153
        %v1156 = vmul.f32 %v1149, %v1153
        %v1157 = vmul.f32 %v1150, %v1153
        %v1158 = vmul.f32 %v1151, %v1153
        %v1160 = vperm.slane %v1064, 0
        %v1162 = vadd.f32 %v1155, %v1160
        %v1163 = vadd.f32 %v1156, %v1160
        %v1164 = vadd.f32 %v1157, %v1160
        %v1165 = vadd.f32 %v1158, %v1160
        %v1166 = vpack.c.bf16 %v1163, %v1162
        %v1167 = vpack.c.bf16 %v1165, %v1164
        %v1168 = vld [vmem:[%s858] sm:$0xff]
        %v1169 = vld [vmem:[%s858 + $0x8] sm:$0xf]
        %v1170 = vld [vmem:[%s858 + $0xc] sm:$0xff]
        %v1171 = vld [vmem:[%s858 + $0x14] sm:$0xf]
        %v1172 = vld [vmem:[%s858 + $0x18] sm:$0xff]
        %v1173 = vld [vmem:[%s858 + $0x20] sm:$0xf]
        %v1174 = vld [vmem:[%s858 + $0x24] sm:$0xff]
        %v1175 = vld [vmem:[%s858 + $0x2c] sm:$0xf]
        %v1176 = vld [vmem:[%s858 + $0x30] sm:$0xff]
        %v1177 = vld [vmem:[%s858 + $0x38] sm:$0xf]
        %v1178 = vld [vmem:[%s858 + $0x3c] sm:$0xff]
        %v1179 = vld [vmem:[%s858 + $0x44] sm:$0xf]
        %v1180 = vld [vmem:[%s858 + $0x48] sm:$0xff]
        %v1181 = vld [vmem:[%s858 + $0x50] sm:$0xf]
        %v1182 = vld [vmem:[%s858 + $0x54] sm:$0xff]
        %v1183 = vld [vmem:[%s858 + $0x5c] sm:$0xf]
        %v1184 = vld [vmem:[%s858 + $0x60] sm:$0xff]
        %v1185 = vld [vmem:[%s858 + $0x68] sm:$0xf]
        %v1186 = vld [vmem:[%s858 + $0x6c] sm:$0xff]
        %v1187 = vld [vmem:[%s858 + $0x74] sm:$0xf]
        %v1188 = vld [vmem:[%s858 + $0x78] sm:$0xff]
        %v1189 = vld [vmem:[%s858 + $0x80] sm:$0xf]
        %v1190 = vld [vmem:[%s858 + $0x84] sm:$0xff]
        %v1191 = vld [vmem:[%s858 + $0x8c] sm:$0xf]
        %v1192 = vld [vmem:[%s858 + $0x90] sm:$0xff]
        %v1193 = vld [vmem:[%s858 + $0x98] sm:$0xf]
        %v1194 = vld [vmem:[%s858 + $0x9c] sm:$0xff]
        %v1195 = vld [vmem:[%s858 + $0xa4] sm:$0xf]
        %v1196 = vld [vmem:[%s858 + $0xa8] sm:$0xff]
        %v1197 = vld [vmem:[%s858 + $0xb0] sm:$0xf]
        %v1198 = vld [vmem:[%s858 + $0xb4] sm:$0xff]
        %v1199 = vld [vmem:[%s858 + $0xbc] sm:$0xf]
        %v1200 = vld [vmem:[%s868] sm:$0x7]
        %v1202 = vperm.slane %v1200, 0
        %v1203 = vperm.slane %v1200, 1
        %v1204 = vperm.slane %v1200, 2
        %v1240 = vunpack.c.l.b16 %v1168
        %v1241 = vunpack.c.h.b16 %v1168
        %v1242 = vunpack.c.l.b16 %v1169
        %v1243 = vunpack.c.l.b16 %v1170
        %v1244 = vunpack.c.h.b16 %v1170
        %v1245 = vunpack.c.l.b16 %v1171
        %v1246 = vunpack.c.l.b16 %v1172
        %v1247 = vunpack.c.h.b16 %v1172
        %v1248 = vunpack.c.l.b16 %v1173
        %v1249 = vunpack.c.l.b16 %v1174
        %v1250 = vunpack.c.h.b16 %v1174
        %v1251 = vunpack.c.l.b16 %v1175
        %v1252 = vunpack.c.l.b16 %v1176
        %v1253 = vunpack.c.h.b16 %v1176
        %v1254 = vunpack.c.l.b16 %v1177
        %v1255 = vunpack.c.l.b16 %v1178
        %v1256 = vunpack.c.h.b16 %v1178
        %v1257 = vunpack.c.l.b16 %v1179
        %v1258 = vunpack.c.l.b16 %v1180
        %v1259 = vunpack.c.h.b16 %v1180
        %v1260 = vunpack.c.l.b16 %v1181
        %v1261 = vunpack.c.l.b16 %v1182
        %v1262 = vunpack.c.h.b16 %v1182
        %v1263 = vunpack.c.l.b16 %v1183
        %v1264 = vunpack.c.l.b16 %v1184
        %v1265 = vunpack.c.h.b16 %v1184
        %v1266 = vunpack.c.l.b16 %v1185
        %v1267 = vunpack.c.l.b16 %v1186
        %v1268 = vunpack.c.h.b16 %v1186
        %v1269 = vunpack.c.l.b16 %v1187
        %v1270 = vunpack.c.l.b16 %v1188
        %v1271 = vunpack.c.h.b16 %v1188
        %v1272 = vunpack.c.l.b16 %v1189
        %v1273 = vunpack.c.l.b16 %v1190
        %v1274 = vunpack.c.h.b16 %v1190
        %v1275 = vunpack.c.l.b16 %v1191
        %v1276 = vunpack.c.l.b16 %v1192
        %v1277 = vunpack.c.h.b16 %v1192
        %v1278 = vunpack.c.l.b16 %v1193
        %v1279 = vunpack.c.l.b16 %v1194
        %v1280 = vunpack.c.h.b16 %v1194
        %v1281 = vunpack.c.l.b16 %v1195
        %v1282 = vunpack.c.l.b16 %v1196
        %v1283 = vunpack.c.h.b16 %v1196
        %v1284 = vunpack.c.l.b16 %v1197
        %v1285 = vunpack.c.l.b16 %v1198
        %v1286 = vunpack.c.h.b16 %v1198
        %v1287 = vunpack.c.l.b16 %v1199
        %v1288 = vpack.c.b16 %v1243, %v1240
        %v1289 = vpack.c.b16 %v1244, %v1241
        %v1290 = vpack.c.b16 %v1245, %v1242
        %v1291 = vpack.c.b16 %v1249, %v1246
        %v1292 = vpack.c.b16 %v1250, %v1247
        %v1293 = vpack.c.b16 %v1251, %v1248
        %v1294 = vpack.c.b16 %v1255, %v1252
        %v1295 = vpack.c.b16 %v1256, %v1253
        %v1296 = vpack.c.b16 %v1257, %v1254
        %v1297 = vpack.c.b16 %v1261, %v1258
        %v1298 = vpack.c.b16 %v1262, %v1259
        %v1299 = vpack.c.b16 %v1263, %v1260
        %v1300 = vpack.c.b16 %v1267, %v1264
        %v1301 = vpack.c.b16 %v1268, %v1265
        %v1302 = vpack.c.b16 %v1269, %v1266
        %v1303 = vpack.c.b16 %v1273, %v1270
        %v1304 = vpack.c.b16 %v1274, %v1271
        %v1305 = vpack.c.b16 %v1275, %v1272
        %v1306 = vpack.c.b16 %v1279, %v1276
        %v1307 = vpack.c.b16 %v1280, %v1277
        %v1308 = vpack.c.b16 %v1281, %v1278
        %v1309 = vpack.c.b16 %v1285, %v1282
        %v1310 = vpack.c.b16 %v1286, %v1283
        %v1311 = vpack.c.b16 %v1287, %v1284
        %1336 = vmatpush.bf16.msra.mxu0 %v1309
        %1337 = vmatpush.bf16.msra.mxu0 %v1306
        %1338 = vmatpush.bf16.msra.mxu0 %v1303
        %1339 = vmatpush.bf16.msra.mxu0 %v1300
        %1340 = vmatpush.bf16.msra.mxu0 %v1297
        %1341 = vmatpush.bf16.msra.mxu0 %v1294
        %1342 = vmatpush.bf16.msra.mxu0 %v1291
        %1343 = vmatpush.bf16.msra.mxu0 %v1288
        %1344 = vmatmul.bf16.gmra.mxu0 %v1166
        %v1345 = vpop.f32.mrf.mxu0
        %v1346 = vadd.f32 %v1202, %v1345
        %v1347 = vpop.f32.mrf.mxu0
        %v1348 = vadd.f32 %v1202, %v1347
        %1349 = vmatmul.bf16.gmra.mxu0 %v1167
        %v1350 = vpop.f32.mrf.mxu0
        %v1351 = vadd.f32 %v1202, %v1350
        %v1352 = vpop.f32.mrf.mxu0
        %v1353 = vadd.f32 %v1202, %v1352
        %1354 = vdwg.mxu0
        %1355 = vmatpush.bf16.msra.mxu0 %v1310
        %1356 = vmatpush.bf16.msra.mxu0 %v1307
        %1357 = vmatpush.bf16.msra.mxu0 %v1304
        %1358 = vmatpush.bf16.msra.mxu0 %v1301
        %1359 = vmatpush.bf16.msra.mxu0 %v1298
        %1360 = vmatpush.bf16.msra.mxu0 %v1295
        %1361 = vmatpush.bf16.msra.mxu0 %v1292
        %1362 = vmatpush.bf16.msra.mxu0 %v1289
        %1363 = vmatmul.bf16.gmra.mxu0 %v1166
        %v1364 = vpop.f32.mrf.mxu0
        %v1365 = vadd.f32 %v1203, %v1364
        %v1366 = vpop.f32.mrf.mxu0
        %v1367 = vadd.f32 %v1203, %v1366
        %1368 = vmatmul.bf16.gmra.mxu0 %v1167
        %v1369 = vpop.f32.mrf.mxu0
        %v1370 = vadd.f32 %v1203, %v1369
        %v1371 = vpop.f32.mrf.mxu0
        %v1372 = vadd.f32 %v1203, %v1371
        %1373 = vdwg.mxu0
        %1374 = vmatpush.bf16.msra.mxu0 %v1311
        %1375 = vmatpush.bf16.msra.mxu0 %v1308
        %1376 = vmatpush.bf16.msra.mxu0 %v1305
        %1377 = vmatpush.bf16.msra.mxu0 %v1302
        %1378 = vmatpush.bf16.msra.mxu0 %v1299
        %1379 = vmatpush.bf16.msra.mxu0 %v1296
        %1380 = vmatpush.bf16.msra.mxu0 %v1293
        %1381 = vmatpush.bf16.msra.mxu0 %v1290
        %1382 = vmatmul.bf16.gmra.mxu0 %v1166
        %v1383 = vpop.f32.mrf.mxu0
        %v1384 = vadd.f32 %v1204, %v1383
        %v1385 = vpop.f32.mrf.mxu0
        %v1386 = vadd.f32 %v1204, %v1385
        %1387 = vmatmul.bf16.gmra.mxu0 %v1167
        %v1388 = vpop.f32.mrf.mxu0
        %v1389 = vadd.f32 %v1204, %v1388
        %v1390 = vpop.f32.mrf.mxu0
        %v1391 = vadd.f32 %v1204, %v1390
        %1392 = vdwg.mxu0
        %1397 = vrot.lane.b32.xlu0 %v1346, 96
        %v1398 = vpop.permute.xlu0 %1397
        %1399 = vrot.lane.b32.xlu0 %v1348, 96
        %v1400 = vpop.permute.xlu0 %1399
        %1401 = vrot.lane.b32.xlu0 %v1351, 96
        %v1402 = vpop.permute.xlu0 %1401
        %1403 = vrot.lane.b32.xlu0 %v1353, 96
        %v1404 = vpop.permute.xlu0 %1403
        %1409 = vrot.lane.b32.xlu0 %v1346, 64
        %v1410 = vpop.permute.xlu0 %1409
        %1411 = vrot.lane.b32.xlu0 %v1348, 64
        %v1412 = vpop.permute.xlu0 %1411
        %1413 = vrot.lane.b32.xlu0 %v1351, 64
        %v1414 = vpop.permute.xlu0 %1413
        %1415 = vrot.lane.b32.xlu0 %v1353, 64
        %v1416 = vpop.permute.xlu0 %1415
        %1421 = vrot.lane.b32.xlu0 %v1346, 32
        %v1422 = vpop.permute.xlu0 %1421
        %1423 = vrot.lane.b32.xlu0 %v1348, 32
        %v1424 = vpop.permute.xlu0 %1423
        %1425 = vrot.lane.b32.xlu0 %v1351, 32
        %v1426 = vpop.permute.xlu0 %1425
        %1427 = vrot.lane.b32.xlu0 %v1353, 32
        %v1428 = vpop.permute.xlu0 %1427
        %v1433 = vpack.c.bf16 %v1346, %v1346
        %v1434 = vpack.c.bf16 %v1348, %v1348
        %v1435 = vpack.c.bf16 %v1351, %v1351
        %v1436 = vpack.c.bf16 %v1353, %v1353
        %v1437 = vpack.c.bf16 %v1398, %v1398
        %v1438 = vpack.c.bf16 %v1400, %v1400
        %v1439 = vpack.c.bf16 %v1402, %v1402
        %v1440 = vpack.c.bf16 %v1404, %v1404
        %v1441 = vpack.c.bf16 %v1410, %v1410
        %v1442 = vpack.c.bf16 %v1412, %v1412
        %v1443 = vpack.c.bf16 %v1414, %v1414
        %v1444 = vpack.c.bf16 %v1416, %v1416
        %v1445 = vpack.c.bf16 %v1422, %v1422
        %v1446 = vpack.c.bf16 %v1424, %v1424
        %v1447 = vpack.c.bf16 %v1426, %v1426
        %v1448 = vpack.c.bf16 %v1428, %v1428
        %1453 = vrot.lane.b32.xlu0 %v1365, 96
        %v1454 = vpop.permute.xlu0 %1453
        %1455 = vrot.lane.b32.xlu0 %v1367, 96
        %v1456 = vpop.permute.xlu0 %1455
        %1457 = vrot.lane.b32.xlu0 %v1370, 96
        %v1458 = vpop.permute.xlu0 %1457
        %1459 = vrot.lane.b32.xlu0 %v1372, 96
        %v1460 = vpop.permute.xlu0 %1459
        %1465 = vrot.lane.b32.xlu0 %v1365, 64
        %v1466 = vpop.permute.xlu0 %1465
        %1467 = vrot.lane.b32.xlu0 %v1367, 64
        %v1468 = vpop.permute.xlu0 %1467
        %1469 = vrot.lane.b32.xlu0 %v1370, 64
        %v1470 = vpop.permute.xlu0 %1469
        %1471 = vrot.lane.b32.xlu0 %v1372, 64
        %v1472 = vpop.permute.xlu0 %1471
        %1477 = vrot.lane.b32.xlu0 %v1365, 32
        %v1478 = vpop.permute.xlu0 %1477
        %1479 = vrot.lane.b32.xlu0 %v1367, 32
        %v1480 = vpop.permute.xlu0 %1479
        %1481 = vrot.lane.b32.xlu0 %v1370, 32
        %v1482 = vpop.permute.xlu0 %1481
        %1483 = vrot.lane.b32.xlu0 %v1372, 32
        %v1484 = vpop.permute.xlu0 %1483
        %v1489 = vpack.c.bf16 %v1365, %v1365
        %v1490 = vpack.c.bf16 %v1367, %v1367
        %v1491 = vpack.c.bf16 %v1370, %v1370
        %v1492 = vpack.c.bf16 %v1372, %v1372
        %v1493 = vpack.c.bf16 %v1454, %v1454
        %v1494 = vpack.c.bf16 %v1456, %v1456
        %v1495 = vpack.c.bf16 %v1458, %v1458
        %v1496 = vpack.c.bf16 %v1460, %v1460
        %v1497 = vpack.c.bf16 %v1466, %v1466
        %v1498 = vpack.c.bf16 %v1468, %v1468
        %v1499 = vpack.c.bf16 %v1470, %v1470
        %v1500 = vpack.c.bf16 %v1472, %v1472
        %v1501 = vpack.c.bf16 %v1478, %v1478
        %v1502 = vpack.c.bf16 %v1480, %v1480
        %v1503 = vpack.c.bf16 %v1482, %v1482
        %v1504 = vpack.c.bf16 %v1484, %v1484
        %1509 = vrot.lane.b32.xlu0 %v1384, 96
        %v1510 = vpop.permute.xlu0 %1509
        %1511 = vrot.lane.b32.xlu0 %v1386, 96
        %v1512 = vpop.permute.xlu0 %1511
        %1513 = vrot.lane.b32.xlu0 %v1389, 96
        %v1514 = vpop.permute.xlu0 %1513
        %1515 = vrot.lane.b32.xlu0 %v1391, 96
        %v1516 = vpop.permute.xlu0 %1515
        %1521 = vrot.lane.b32.xlu0 %v1384, 64
        %v1522 = vpop.permute.xlu0 %1521
        %1523 = vrot.lane.b32.xlu0 %v1386, 64
        %v1524 = vpop.permute.xlu0 %1523
        %1525 = vrot.lane.b32.xlu0 %v1389, 64
        %v1526 = vpop.permute.xlu0 %1525
        %1527 = vrot.lane.b32.xlu0 %v1391, 64
        %v1528 = vpop.permute.xlu0 %1527
        %1533 = vrot.lane.b32.xlu0 %v1384, 32
        %v1534 = vpop.permute.xlu0 %1533
        %1535 = vrot.lane.b32.xlu0 %v1386, 32
        %v1536 = vpop.permute.xlu0 %1535
        %1537 = vrot.lane.b32.xlu0 %v1389, 32
        %v1538 = vpop.permute.xlu0 %1537
        %1539 = vrot.lane.b32.xlu0 %v1391, 32
        %v1540 = vpop.permute.xlu0 %1539
        %v1545 = vpack.c.bf16 %v1384, %v1384
        %v1546 = vpack.c.bf16 %v1386, %v1386
        %v1547 = vpack.c.bf16 %v1389, %v1389
        %v1548 = vpack.c.bf16 %v1391, %v1391
        %v1549 = vpack.c.bf16 %v1510, %v1510
        %v1550 = vpack.c.bf16 %v1512, %v1512
        %v1551 = vpack.c.bf16 %v1514, %v1514
        %v1552 = vpack.c.bf16 %v1516, %v1516
        %v1553 = vpack.c.bf16 %v1522, %v1522
        %v1554 = vpack.c.bf16 %v1524, %v1524
        %v1555 = vpack.c.bf16 %v1526, %v1526
        %v1556 = vpack.c.bf16 %v1528, %v1528
        %v1557 = vpack.c.bf16 %v1534, %v1534
        %v1558 = vpack.c.bf16 %v1536, %v1536
        %v1559 = vpack.c.bf16 %v1538, %v1538
        %v1560 = vpack.c.bf16 %v1540, %v1540
        %v1563 = vunpack.c.l.b16 %v1433
        %v1564 = vunpack.c.l.b16 %v1434
        %v1565 = vpack.c.b16 %v1564, %v1563
        %v1568 = vunpack.c.l.b16 %v1489
        %v1569 = vunpack.c.l.b16 %v1490
        %v1570 = vpack.c.b16 %v1569, %v1568
        %vm1571 = vcmask 261120
        %v1573 = vsel %vm1571, %v1565, 0
        %v1576 = vsel %vm1571, %v1570, 0
        %1578 = vmatpush.bf16.xpose.msra.mxu0 0
        %1579 = vmatpush.bf16.xpose.msra.mxu0 0
        %1580 = vmatpush.bf16.xpose.msra.mxu0 0
        %1581 = vmatpush.bf16.xpose.msra.mxu0 0
        %1582 = vmatpush.bf16.xpose.msra.mxu0 0
        %1583 = vmatpush.bf16.xpose.msra.mxu0 0
        %1584 = vmatpush.bf16.xpose.msra.mxu0 0
        %1585 = vmatpush.bf16.xpose.msra.mxu0 %v1576
        %1586 = vmatmul.bf16.gmra.mxu0 %v1573
        %v1587 = vpop.f32.mrf.mxu0
        %v1588 = vadd.f32 0.0, %v1587
        %v1589 = vpop.f32.mrf.mxu0
        %v1590 = vadd.f32 0.0, %v1589
        %1591 = vdwg.mxu0
        %v1594 = vunpack.c.l.b16 %v1435
        %v1595 = vunpack.c.l.b16 %v1436
        %v1596 = vpack.c.b16 %v1595, %v1594
        %v1599 = vunpack.c.l.b16 %v1491
        %v1600 = vunpack.c.l.b16 %v1492
        %v1601 = vpack.c.b16 %v1600, %v1599
        %v1603 = vsel %vm1571, %v1596, 0
        %v1606 = vsel %vm1571, %v1601, 0
        %1608 = vmatpush.bf16.xpose.msra.mxu0 0
        %1609 = vmatpush.bf16.xpose.msra.mxu0 0
        %1610 = vmatpush.bf16.xpose.msra.mxu0 0
        %1611 = vmatpush.bf16.xpose.msra.mxu0 0
        %1612 = vmatpush.bf16.xpose.msra.mxu0 0
        %1613 = vmatpush.bf16.xpose.msra.mxu0 0
        %1614 = vmatpush.bf16.xpose.msra.mxu0 0
        %1615 = vmatpush.bf16.xpose.msra.mxu0 %v1606
        %1616 = vmatmul.bf16.gmra.mxu0 %v1603
        %v1617 = vpop.f32.mrf.mxu0
        %v1618 = vadd.f32 0.0, %v1617
        %v1619 = vpop.f32.mrf.mxu0
        %v1620 = vadd.f32 0.0, %v1619
        %1621 = vdwg.mxu0
        %v1624 = vunpack.c.l.b16 %v1437
        %v1625 = vunpack.c.l.b16 %v1438
        %v1626 = vpack.c.b16 %v1625, %v1624
        %v1629 = vunpack.c.l.b16 %v1493
        %v1630 = vunpack.c.l.b16 %v1494
        %v1631 = vpack.c.b16 %v1630, %v1629
        %v1633 = vsel %vm1571, %v1626, 0
        %v1636 = vsel %vm1571, %v1631, 0
        %1638 = vmatpush.bf16.xpose.msra.mxu0 0
        %1639 = vmatpush.bf16.xpose.msra.mxu0 0
        %1640 = vmatpush.bf16.xpose.msra.mxu0 0
        %1641 = vmatpush.bf16.xpose.msra.mxu0 0
        %1642 = vmatpush.bf16.xpose.msra.mxu0 0
        %1643 = vmatpush.bf16.xpose.msra.mxu0 0
        %1644 = vmatpush.bf16.xpose.msra.mxu0 0
        %1645 = vmatpush.bf16.xpose.msra.mxu0 %v1636
        %1646 = vmatmul.bf16.gmra.mxu0 %v1633
        %v1647 = vpop.f32.mrf.mxu0
        %v1648 = vadd.f32 0.0, %v1647
        %v1649 = vpop.f32.mrf.mxu0
        %v1650 = vadd.f32 0.0, %v1649
        %1651 = vdwg.mxu0
        %v1654 = vunpack.c.l.b16 %v1439
        %v1655 = vunpack.c.l.b16 %v1440
        %v1656 = vpack.c.b16 %v1655, %v1654
        %v1659 = vunpack.c.l.b16 %v1495
        %v1660 = vunpack.c.l.b16 %v1496
        %v1661 = vpack.c.b16 %v1660, %v1659
        %v1663 = vsel %vm1571, %v1656, 0
        %v1666 = vsel %vm1571, %v1661, 0
        %1668 = vmatpush.bf16.xpose.msra.mxu0 0
        %1669 = vmatpush.bf16.xpose.msra.mxu0 0
        %1670 = vmatpush.bf16.xpose.msra.mxu0 0
        %1671 = vmatpush.bf16.xpose.msra.mxu0 0
        %1672 = vmatpush.bf16.xpose.msra.mxu0 0
        %1673 = vmatpush.bf16.xpose.msra.mxu0 0
        %1674 = vmatpush.bf16.xpose.msra.mxu0 0
        %1675 = vmatpush.bf16.xpose.msra.mxu0 %v1666
        %1676 = vmatmul.bf16.gmra.mxu0 %v1663
        %v1677 = vpop.f32.mrf.mxu0
        %v1678 = vadd.f32 0.0, %v1677
        %v1679 = vpop.f32.mrf.mxu0
        %v1680 = vadd.f32 0.0, %v1679
        %1681 = vdwg.mxu0
        %v1684 = vunpack.c.l.b16 %v1441
        %v1685 = vunpack.c.l.b16 %v1442
        %v1686 = vpack.c.b16 %v1685, %v1684
        %v1689 = vunpack.c.l.b16 %v1497
        %v1690 = vunpack.c.l.b16 %v1498
        %v1691 = vpack.c.b16 %v1690, %v1689
        %v1693 = vsel %vm1571, %v1686, 0
        %v1696 = vsel %vm1571, %v1691, 0
        %1698 = vmatpush.bf16.xpose.msra.mxu0 0
        %1699 = vmatpush.bf16.xpose.msra.mxu0 0
        %1700 = vmatpush.bf16.xpose.msra.mxu0 0
        %1701 = vmatpush.bf16.xpose.msra.mxu0 0
        %1702 = vmatpush.bf16.xpose.msra.mxu0 0
        %1703 = vmatpush.bf16.xpose.msra.mxu0 0
        %1704 = vmatpush.bf16.xpose.msra.mxu0 0
        %1705 = vmatpush.bf16.xpose.msra.mxu0 %v1696
        %1706 = vmatmul.bf16.gmra.mxu0 %v1693
        %v1707 = vpop.f32.mrf.mxu0
        %v1708 = vadd.f32 0.0, %v1707
        %v1709 = vpop.f32.mrf.mxu0
        %v1710 = vadd.f32 0.0, %v1709
        %1711 = vdwg.mxu0
        %v1714 = vunpack.c.l.b16 %v1443
        %v1715 = vunpack.c.l.b16 %v1444
        %v1716 = vpack.c.b16 %v1715, %v1714
        %v1719 = vunpack.c.l.b16 %v1499
        %v1720 = vunpack.c.l.b16 %v1500
        %v1721 = vpack.c.b16 %v1720, %v1719
        %v1723 = vsel %vm1571, %v1716, 0
        %v1726 = vsel %vm1571, %v1721, 0
        %1728 = vmatpush.bf16.xpose.msra.mxu0 0
        %1729 = vmatpush.bf16.xpose.msra.mxu0 0
        %1730 = vmatpush.bf16.xpose.msra.mxu0 0
        %1731 = vmatpush.bf16.xpose.msra.mxu0 0
        %1732 = vmatpush.bf16.xpose.msra.mxu0 0
        %1733 = vmatpush.bf16.xpose.msra.mxu0 0
        %1734 = vmatpush.bf16.xpose.msra.mxu0 0
        %1735 = vmatpush.bf16.xpose.msra.mxu0 %v1726
        %1736 = vmatmul.bf16.gmra.mxu0 %v1723
        %v1737 = vpop.f32.mrf.mxu0
        %v1738 = vadd.f32 0.0, %v1737
        %v1739 = vpop.f32.mrf.mxu0
        %v1740 = vadd.f32 0.0, %v1739
        %1741 = vdwg.mxu0
        %v1744 = vunpack.c.l.b16 %v1445
        %v1745 = vunpack.c.l.b16 %v1446
        %v1746 = vpack.c.b16 %v1745, %v1744
        %v1749 = vunpack.c.l.b16 %v1501
        %v1750 = vunpack.c.l.b16 %v1502
        %v1751 = vpack.c.b16 %v1750, %v1749
        %v1753 = vsel %vm1571, %v1746, 0
        %v1756 = vsel %vm1571, %v1751, 0
        %1758 = vmatpush.bf16.xpose.msra.mxu0 0
        %1759 = vmatpush.bf16.xpose.msra.mxu0 0
        %1760 = vmatpush.bf16.xpose.msra.mxu0 0
        %1761 = vmatpush.bf16.xpose.msra.mxu0 0
        %1762 = vmatpush.bf16.xpose.msra.mxu0 0
        %1763 = vmatpush.bf16.xpose.msra.mxu0 0
        %1764 = vmatpush.bf16.xpose.msra.mxu0 0
        %1765 = vmatpush.bf16.xpose.msra.mxu0 %v1756
        %1766 = vmatmul.bf16.gmra.mxu0 %v1753
        %v1767 = vpop.f32.mrf.mxu0
        %v1768 = vadd.f32 0.0, %v1767
        %v1769 = vpop.f32.mrf.mxu0
        %v1770 = vadd.f32 0.0, %v1769
        %1771 = vdwg.mxu0
        %v1774 = vunpack.c.l.b16 %v1447
        %v1775 = vunpack.c.l.b16 %v1448
        %v1776 = vpack.c.b16 %v1775, %v1774
        %v1779 = vunpack.c.l.b16 %v1503
        %v1780 = vunpack.c.l.b16 %v1504
        %v1781 = vpack.c.b16 %v1780, %v1779
        %v1783 = vsel %vm1571, %v1776, 0
        %v1786 = vsel %vm1571, %v1781, 0
        %1788 = vmatpush.bf16.xpose.msra.mxu0 0
        %1789 = vmatpush.bf16.xpose.msra.mxu0 0
        %1790 = vmatpush.bf16.xpose.msra.mxu0 0
        %1791 = vmatpush.bf16.xpose.msra.mxu0 0
        %1792 = vmatpush.bf16.xpose.msra.mxu0 0
        %1793 = vmatpush.bf16.xpose.msra.mxu0 0
        %1794 = vmatpush.bf16.xpose.msra.mxu0 0
        %1795 = vmatpush.bf16.xpose.msra.mxu0 %v1786
        %1796 = vmatmul.bf16.gmra.mxu0 %v1783
        %v1797 = vpop.f32.mrf.mxu0
        %v1798 = vadd.f32 0.0, %v1797
        %v1799 = vpop.f32.mrf.mxu0
        %v1800 = vadd.f32 0.0, %v1799
        %1801 = vdwg.mxu0
        %v1802 = vmul.f32 %v1588, 0.17677669
        %v1803 = vmul.f32 %v1590, 0.17677669
        %v1804 = vmul.f32 %v1618, 0.17677669
        %v1805 = vmul.f32 %v1620, 0.17677669
        %v1806 = vmul.f32 %v1648, 0.17677669
        %v1807 = vmul.f32 %v1650, 0.17677669
        %v1808 = vmul.f32 %v1678, 0.17677669
        %v1809 = vmul.f32 %v1680, 0.17677669
        %v1810 = vmul.f32 %v1708, 0.17677669
        %v1811 = vmul.f32 %v1710, 0.17677669
        %v1812 = vmul.f32 %v1738, 0.17677669
        %v1813 = vmul.f32 %v1740, 0.17677669
        %v1814 = vmul.f32 %v1768, 0.17677669
        %v1815 = vmul.f32 %v1770, 0.17677669
        %v1816 = vmul.f32 %v1798, 0.17677669
        %v1817 = vmul.f32 %v1800, 0.17677669
        %v1819 = vrot.slane %v1062, 1
        %v1820 = vrot.slane %v1062, 2
        %v1821 = vrot.slane %v1062, 3
        %v1822 = vrot.slane %v1062, 4
        %v1823 = vrot.slane %v1062, 5
        %v1824 = vrot.slane %v1062, 6
        %v1825 = vrot.slane %v1062, 7
        %v1826 = vperm.slane %v1062, 0
        %v1827 = vperm.slane %v1819, 0
        %v1828 = vperm.slane %v1820, 0
        %v1829 = vperm.slane %v1821, 0
        %v1830 = vperm.slane %v1822, 0
        %v1831 = vperm.slane %v1823, 0
        %v1832 = vperm.slane %v1824, 0
        %v1833 = vperm.slane %v1825, 0
        %v1842 = vadd.f32 %v1802, %v1826
        %v1843 = vadd.f32 %v1803, %v1826
        %v1844 = vadd.f32 %v1804, %v1827
        %v1845 = vadd.f32 %v1805, %v1827
        %v1846 = vadd.f32 %v1806, %v1828
        %v1847 = vadd.f32 %v1807, %v1828
        %v1848 = vadd.f32 %v1808, %v1829
        %v1849 = vadd.f32 %v1809, %v1829
        %v1850 = vadd.f32 %v1810, %v1830
        %v1851 = vadd.f32 %v1811, %v1830
        %v1852 = vadd.f32 %v1812, %v1831
        %v1853 = vadd.f32 %v1813, %v1831
        %v1854 = vadd.f32 %v1814, %v1832
        %v1855 = vadd.f32 %v1815, %v1832
        %v1856 = vadd.f32 %v1816, %v1833
        %v1857 = vadd.f32 %v1817, %v1833
        %vm1858 = vcmask 130048
        %v1859 = vsel %vm1858, %v1842, -inf
        %1860 = vmax.xlane.f32.xlu0 %v1859
        %v1861 = vpop.xlane.xlu0 %1860
        %v1862 = vsel %vm1858, %v1843, -inf
        %1863 = vmax.xlane.f32.xlu0 %v1862
        %v1864 = vpop.xlane.xlu0 %1863
        %v1865 = vsel %vm1858, %v1844, -inf
        %1866 = vmax.xlane.f32.xlu0 %v1865
        %v1867 = vpop.xlane.xlu0 %1866
        %v1868 = vsel %vm1858, %v1845, -inf
        %1869 = vmax.xlane.f32.xlu0 %v1868
        %v1870 = vpop.xlane.xlu0 %1869
        %v1871 = vsel %vm1858, %v1846, -inf
        %1872 = vmax.xlane.f32.xlu0 %v1871
        %v1873 = vpop.xlane.xlu0 %1872
        %v1874 = vsel %vm1858, %v1847, -inf
        %1875 = vmax.xlane.f32.xlu0 %v1874
        %v1876 = vpop.xlane.xlu0 %1875
        %v1877 = vsel %vm1858, %v1848, -inf
        %1878 = vmax.xlane.f32.xlu0 %v1877
        %v1879 = vpop.xlane.xlu0 %1878
        %v1880 = vsel %vm1858, %v1849, -inf
        %1881 = vmax.xlane.f32.xlu0 %v1880
        %v1882 = vpop.xlane.xlu0 %1881
        %v1883 = vsel %vm1858, %v1850, -inf
        %1884 = vmax.xlane.f32.xlu0 %v1883
        %v1885 = vpop.xlane.xlu0 %1884
        %v1886 = vsel %vm1858, %v1851, -inf
        %1887 = vmax.xlane.f32.xlu0 %v1886
        %v1888 = vpop.xlane.xlu0 %1887
        %v1889 = vsel %vm1858, %v1852, -inf
        %1890 = vmax.xlane.f32.xlu0 %v1889
        %v1891 = vpop.xlane.xlu0 %1890
        %v1892 = vsel %vm1858, %v1853, -inf
        %1893 = vmax.xlane.f32.xlu0 %v1892
        %v1894 = vpop.xlane.xlu0 %1893
        %v1895 = vsel %vm1858, %v1854, -inf
        %1896 = vmax.xlane.f32.xlu0 %v1895
        %v1897 = vpop.xlane.xlu0 %1896
        %v1898 = vsel %vm1858, %v1855, -inf
        %1899 = vmax.xlane.f32.xlu0 %v1898
        %v1900 = vpop.xlane.xlu0 %1899
        %v1901 = vsel %vm1858, %v1856, -inf
        %1902 = vmax.xlane.f32.xlu0 %v1901
        %v1903 = vpop.xlane.xlu0 %1902
        %v1904 = vsel %vm1858, %v1857, -inf
        %1905 = vmax.xlane.f32.xlu0 %v1904
        %v1906 = vpop.xlane.xlu0 %1905
        %v1907 = vsub.f32 %v1842, %v1861
        %v1908 = vsub.f32 %v1843, %v1864
        %v1909 = vsub.f32 %v1844, %v1867
        %v1910 = vsub.f32 %v1845, %v1870
        %v1911 = vsub.f32 %v1846, %v1873
        %v1912 = vsub.f32 %v1847, %v1876
        %v1913 = vsub.f32 %v1848, %v1879
        %v1914 = vsub.f32 %v1849, %v1882
        %v1915 = vsub.f32 %v1850, %v1885
        %v1916 = vsub.f32 %v1851, %v1888
        %v1917 = vsub.f32 %v1852, %v1891
        %v1918 = vsub.f32 %v1853, %v1894
        %v1919 = vsub.f32 %v1854, %v1897
        %v1920 = vsub.f32 %v1855, %v1900
        %v1921 = vsub.f32 %v1856, %v1903
        %v1922 = vsub.f32 %v1857, %v1906
        %v1923 = vmul.f32 %v1907, 1.442695
        %v1924 = vpow.pop %v1923
        %v1925 = vmul.f32 %v1908, 1.442695
        %v1926 = vpow.pop %v1925
        %v1927 = vmul.f32 %v1909, 1.442695
        %v1928 = vpow.pop %v1927
        %v1929 = vmul.f32 %v1910, 1.442695
        %v1930 = vpow.pop %v1929
        %v1931 = vmul.f32 %v1911, 1.442695
        %v1932 = vpow.pop %v1931
        %v1933 = vmul.f32 %v1912, 1.442695
        %v1934 = vpow.pop %v1933
        %v1935 = vmul.f32 %v1913, 1.442695
        %v1936 = vpow.pop %v1935
        %v1937 = vmul.f32 %v1914, 1.442695
        %v1938 = vpow.pop %v1937
        %v1939 = vmul.f32 %v1915, 1.442695
        %v1940 = vpow.pop %v1939
        %v1941 = vmul.f32 %v1916, 1.442695
        %v1942 = vpow.pop %v1941
        %v1943 = vmul.f32 %v1917, 1.442695
        %v1944 = vpow.pop %v1943
        %v1945 = vmul.f32 %v1918, 1.442695
        %v1946 = vpow.pop %v1945
        %v1947 = vmul.f32 %v1919, 1.442695
        %v1948 = vpow.pop %v1947
        %v1949 = vmul.f32 %v1920, 1.442695
        %v1950 = vpow.pop %v1949
        %v1951 = vmul.f32 %v1921, 1.442695
        %v1952 = vpow.pop %v1951
        %v1953 = vmul.f32 %v1922, 1.442695
        %v1954 = vpow.pop %v1953
        %v1955 = vsel %vm1858, %v1924, 0.0
        %1956 = vadd.xlane.f32.xlu0 %v1955
        %v1957 = vpop.xlane.xlu0 %1956
        %v1958 = vsel %vm1858, %v1926, 0.0
        %1959 = vadd.xlane.f32.xlu0 %v1958
        %v1960 = vpop.xlane.xlu0 %1959
        %v1961 = vsel %vm1858, %v1928, 0.0
        %1962 = vadd.xlane.f32.xlu0 %v1961
        %v1963 = vpop.xlane.xlu0 %1962
        %v1964 = vsel %vm1858, %v1930, 0.0
        %1965 = vadd.xlane.f32.xlu0 %v1964
        %v1966 = vpop.xlane.xlu0 %1965
        %v1967 = vsel %vm1858, %v1932, 0.0
        %1968 = vadd.xlane.f32.xlu0 %v1967
        %v1969 = vpop.xlane.xlu0 %1968
        %v1970 = vsel %vm1858, %v1934, 0.0
        %1971 = vadd.xlane.f32.xlu0 %v1970
        %v1972 = vpop.xlane.xlu0 %1971
        %v1973 = vsel %vm1858, %v1936, 0.0
        %1974 = vadd.xlane.f32.xlu0 %v1973
        %v1975 = vpop.xlane.xlu0 %1974
        %v1976 = vsel %vm1858, %v1938, 0.0
        %1977 = vadd.xlane.f32.xlu0 %v1976
        %v1978 = vpop.xlane.xlu0 %1977
        %v1979 = vsel %vm1858, %v1940, 0.0
        %1980 = vadd.xlane.f32.xlu0 %v1979
        %v1981 = vpop.xlane.xlu0 %1980
        %v1982 = vsel %vm1858, %v1942, 0.0
        %1983 = vadd.xlane.f32.xlu0 %v1982
        %v1984 = vpop.xlane.xlu0 %1983
        %v1985 = vsel %vm1858, %v1944, 0.0
        %1986 = vadd.xlane.f32.xlu0 %v1985
        %v1987 = vpop.xlane.xlu0 %1986
        %v1988 = vsel %vm1858, %v1946, 0.0
        %1989 = vadd.xlane.f32.xlu0 %v1988
        %v1990 = vpop.xlane.xlu0 %1989
        %v1991 = vsel %vm1858, %v1948, 0.0
        %1992 = vadd.xlane.f32.xlu0 %v1991
        %v1993 = vpop.xlane.xlu0 %1992
        %v1994 = vsel %vm1858, %v1950, 0.0
        %1995 = vadd.xlane.f32.xlu0 %v1994
        %v1996 = vpop.xlane.xlu0 %1995
        %v1997 = vsel %vm1858, %v1952, 0.0
        %1998 = vadd.xlane.f32.xlu0 %v1997
        %v1999 = vpop.xlane.xlu0 %1998
        %v2000 = vsel %vm1858, %v1954, 0.0
        %2001 = vadd.xlane.f32.xlu0 %v2000
        %v2002 = vpop.xlane.xlu0 %2001
        %v2003 = vrcp.pop %v1957
        %v2004 = vrcp.pop %v1960
        %v2005 = vrcp.pop %v1963
        %v2006 = vrcp.pop %v1966
        %v2007 = vrcp.pop %v1969
        %v2008 = vrcp.pop %v1972
        %v2009 = vrcp.pop %v1975
        %v2010 = vrcp.pop %v1978
        %v2011 = vrcp.pop %v1981
        %v2012 = vrcp.pop %v1984
        %v2013 = vrcp.pop %v1987
        %v2014 = vrcp.pop %v1990
        %v2015 = vrcp.pop %v1993
        %v2016 = vrcp.pop %v1996
        %v2017 = vrcp.pop %v1999
        %v2018 = vrcp.pop %v2002
        %v2019 = vmul.f32 %v1924, %v2003
        %v2020 = vmul.f32 %v1926, %v2004
        %v2021 = vmul.f32 %v1928, %v2005
        %v2022 = vmul.f32 %v1930, %v2006
        %v2023 = vmul.f32 %v1932, %v2007
        %v2024 = vmul.f32 %v1934, %v2008
        %v2025 = vmul.f32 %v1936, %v2009
        %v2026 = vmul.f32 %v1938, %v2010
        %v2027 = vmul.f32 %v1940, %v2011
        %v2028 = vmul.f32 %v1942, %v2012
        %v2029 = vmul.f32 %v1944, %v2013
        %v2030 = vmul.f32 %v1946, %v2014
        %v2031 = vmul.f32 %v1948, %v2015
        %v2032 = vmul.f32 %v1950, %v2016
        %v2033 = vmul.f32 %v1952, %v2017
        %v2034 = vmul.f32 %v1954, %v2018
        %v2035 = vpack.c.bf16 %v2019, %v2019
        %v2036 = vpack.c.bf16 %v2020, %v2020
        %v2037 = vpack.c.bf16 %v2021, %v2021
        %v2038 = vpack.c.bf16 %v2022, %v2022
        %v2039 = vpack.c.bf16 %v2023, %v2023
        %v2040 = vpack.c.bf16 %v2024, %v2024
        %v2041 = vpack.c.bf16 %v2025, %v2025
        %v2042 = vpack.c.bf16 %v2026, %v2026
        %v2043 = vpack.c.bf16 %v2027, %v2027
        %v2044 = vpack.c.bf16 %v2028, %v2028
        %v2045 = vpack.c.bf16 %v2029, %v2029
        %v2046 = vpack.c.bf16 %v2030, %v2030
        %v2047 = vpack.c.bf16 %v2031, %v2031
        %v2048 = vpack.c.bf16 %v2032, %v2032
        %v2049 = vpack.c.bf16 %v2033, %v2033
        %v2050 = vpack.c.bf16 %v2034, %v2034
        %v2053 = vunpack.c.l.b16 %v2035
        %v2054 = vunpack.c.l.b16 %v2036
        %v2055 = vpack.c.b16 %v2054, %v2053
        %v2058 = vunpack.c.l.b16 %v1545
        %v2059 = vunpack.c.l.b16 %v1546
        %v2060 = vpack.c.b16 %v2059, %v2058
        %v2063 = vsel %vm1858, %v2055, 0
        %2065 = vmatpush.bf16.msra.mxu0 0
        %2066 = vmatpush.bf16.msra.mxu0 0
        %2067 = vmatpush.bf16.msra.mxu0 0
        %2068 = vmatpush.bf16.msra.mxu0 0
        %2069 = vmatpush.bf16.msra.mxu0 0
        %2070 = vmatpush.bf16.msra.mxu0 0
        %2071 = vmatpush.bf16.msra.mxu0 0
        %2072 = vmatpush.bf16.msra.mxu0 %v2060
        %2073 = vmatmul.bf16.gmra.mxu0 %v2063
        %v2074 = vpop.f32.mrf.mxu0
        %v2075 = vadd.f32 0.0, %v2074
        %v2076 = vpop.f32.mrf.mxu0
        %v2077 = vadd.f32 0.0, %v2076
        %2078 = vdwg.mxu0
        %v2081 = vunpack.c.l.b16 %v2037
        %v2082 = vunpack.c.l.b16 %v2038
        %v2083 = vpack.c.b16 %v2082, %v2081
        %v2086 = vunpack.c.l.b16 %v1547
        %v2087 = vunpack.c.l.b16 %v1548
        %v2088 = vpack.c.b16 %v2087, %v2086
        %v2091 = vsel %vm1858, %v2083, 0
        %2093 = vmatpush.bf16.msra.mxu0 0
        %2094 = vmatpush.bf16.msra.mxu0 0
        %2095 = vmatpush.bf16.msra.mxu0 0
        %2096 = vmatpush.bf16.msra.mxu0 0
        %2097 = vmatpush.bf16.msra.mxu0 0
        %2098 = vmatpush.bf16.msra.mxu0 0
        %2099 = vmatpush.bf16.msra.mxu0 0
        %2100 = vmatpush.bf16.msra.mxu0 %v2088
        %2101 = vmatmul.bf16.gmra.mxu0 %v2091
        %v2102 = vpop.f32.mrf.mxu0
        %v2103 = vadd.f32 0.0, %v2102
        %v2104 = vpop.f32.mrf.mxu0
        %v2105 = vadd.f32 0.0, %v2104
        %2106 = vdwg.mxu0
        %v2109 = vunpack.c.l.b16 %v2039
        %v2110 = vunpack.c.l.b16 %v2040
        %v2111 = vpack.c.b16 %v2110, %v2109
        %v2114 = vunpack.c.l.b16 %v1549
        %v2115 = vunpack.c.l.b16 %v1550
        %v2116 = vpack.c.b16 %v2115, %v2114
        %v2119 = vsel %vm1858, %v2111, 0
        %2121 = vmatpush.bf16.msra.mxu0 0
        %2122 = vmatpush.bf16.msra.mxu0 0
        %2123 = vmatpush.bf16.msra.mxu0 0
        %2124 = vmatpush.bf16.msra.mxu0 0
        %2125 = vmatpush.bf16.msra.mxu0 0
        %2126 = vmatpush.bf16.msra.mxu0 0
        %2127 = vmatpush.bf16.msra.mxu0 0
        %2128 = vmatpush.bf16.msra.mxu0 %v2116
        %2129 = vmatmul.bf16.gmra.mxu0 %v2119
        %v2130 = vpop.f32.mrf.mxu0
        %v2131 = vadd.f32 0.0, %v2130
        %v2132 = vpop.f32.mrf.mxu0
        %v2133 = vadd.f32 0.0, %v2132
        %2134 = vdwg.mxu0
        %v2137 = vunpack.c.l.b16 %v2041
        %v2138 = vunpack.c.l.b16 %v2042
        %v2139 = vpack.c.b16 %v2138, %v2137
        %v2142 = vunpack.c.l.b16 %v1551
        %v2143 = vunpack.c.l.b16 %v1552
        %v2144 = vpack.c.b16 %v2143, %v2142
        %v2147 = vsel %vm1858, %v2139, 0
        %2149 = vmatpush.bf16.msra.mxu0 0
        %2150 = vmatpush.bf16.msra.mxu0 0
        %2151 = vmatpush.bf16.msra.mxu0 0
        %2152 = vmatpush.bf16.msra.mxu0 0
        %2153 = vmatpush.bf16.msra.mxu0 0
        %2154 = vmatpush.bf16.msra.mxu0 0
        %2155 = vmatpush.bf16.msra.mxu0 0
        %2156 = vmatpush.bf16.msra.mxu0 %v2144
        %2157 = vmatmul.bf16.gmra.mxu0 %v2147
        %v2158 = vpop.f32.mrf.mxu0
        %v2159 = vadd.f32 0.0, %v2158
        %v2160 = vpop.f32.mrf.mxu0
        %v2161 = vadd.f32 0.0, %v2160
        %2162 = vdwg.mxu0
        %v2165 = vunpack.c.l.b16 %v2043
        %v2166 = vunpack.c.l.b16 %v2044
        %v2167 = vpack.c.b16 %v2166, %v2165
        %v2170 = vunpack.c.l.b16 %v1553
        %v2171 = vunpack.c.l.b16 %v1554
        %v2172 = vpack.c.b16 %v2171, %v2170
        %v2175 = vsel %vm1858, %v2167, 0
        %2177 = vmatpush.bf16.msra.mxu0 0
        %2178 = vmatpush.bf16.msra.mxu0 0
        %2179 = vmatpush.bf16.msra.mxu0 0
        %2180 = vmatpush.bf16.msra.mxu0 0
        %2181 = vmatpush.bf16.msra.mxu0 0
        %2182 = vmatpush.bf16.msra.mxu0 0
        %2183 = vmatpush.bf16.msra.mxu0 0
        %2184 = vmatpush.bf16.msra.mxu0 %v2172
        %2185 = vmatmul.bf16.gmra.mxu0 %v2175
        %v2186 = vpop.f32.mrf.mxu0
        %v2187 = vadd.f32 0.0, %v2186
        %v2188 = vpop.f32.mrf.mxu0
        %v2189 = vadd.f32 0.0, %v2188
        %2190 = vdwg.mxu0
        %v2193 = vunpack.c.l.b16 %v2045
        %v2194 = vunpack.c.l.b16 %v2046
        %v2195 = vpack.c.b16 %v2194, %v2193
        %v2198 = vunpack.c.l.b16 %v1555
        %v2199 = vunpack.c.l.b16 %v1556
        %v2200 = vpack.c.b16 %v2199, %v2198
        %v2203 = vsel %vm1858, %v2195, 0
        %2205 = vmatpush.bf16.msra.mxu0 0
        %2206 = vmatpush.bf16.msra.mxu0 0
        %2207 = vmatpush.bf16.msra.mxu0 0
        %2208 = vmatpush.bf16.msra.mxu0 0
        %2209 = vmatpush.bf16.msra.mxu0 0
        %2210 = vmatpush.bf16.msra.mxu0 0
        %2211 = vmatpush.bf16.msra.mxu0 0
        %2212 = vmatpush.bf16.msra.mxu0 %v2200
        %2213 = vmatmul.bf16.gmra.mxu0 %v2203
        %v2214 = vpop.f32.mrf.mxu0
        %v2215 = vadd.f32 0.0, %v2214
        %v2216 = vpop.f32.mrf.mxu0
        %v2217 = vadd.f32 0.0, %v2216
        %2218 = vdwg.mxu0
        %v2221 = vunpack.c.l.b16 %v2047
        %v2222 = vunpack.c.l.b16 %v2048
        %v2223 = vpack.c.b16 %v2222, %v2221
        %v2226 = vunpack.c.l.b16 %v1557
        %v2227 = vunpack.c.l.b16 %v1558
        %v2228 = vpack.c.b16 %v2227, %v2226
        %v2231 = vsel %vm1858, %v2223, 0
        %2233 = vmatpush.bf16.msra.mxu0 0
        %2234 = vmatpush.bf16.msra.mxu0 0
        %2235 = vmatpush.bf16.msra.mxu0 0
        %2236 = vmatpush.bf16.msra.mxu0 0
        %2237 = vmatpush.bf16.msra.mxu0 0
        %2238 = vmatpush.bf16.msra.mxu0 0
        %2239 = vmatpush.bf16.msra.mxu0 0
        %2240 = vmatpush.bf16.msra.mxu0 %v2228
        %2241 = vmatmul.bf16.gmra.mxu0 %v2231
        %v2242 = vpop.f32.mrf.mxu0
        %v2243 = vadd.f32 0.0, %v2242
        %v2244 = vpop.f32.mrf.mxu0
        %v2245 = vadd.f32 0.0, %v2244
        %2246 = vdwg.mxu0
        %v2249 = vunpack.c.l.b16 %v2049
        %v2250 = vunpack.c.l.b16 %v2050
        %v2251 = vpack.c.b16 %v2250, %v2249
        %v2254 = vunpack.c.l.b16 %v1559
        %v2255 = vunpack.c.l.b16 %v1560
        %v2256 = vpack.c.b16 %v2255, %v2254
        %v2259 = vsel %vm1858, %v2251, 0
        %2261 = vmatpush.bf16.msra.mxu0 0
        %2262 = vmatpush.bf16.msra.mxu0 0
        %2263 = vmatpush.bf16.msra.mxu0 0
        %2264 = vmatpush.bf16.msra.mxu0 0
        %2265 = vmatpush.bf16.msra.mxu0 0
        %2266 = vmatpush.bf16.msra.mxu0 0
        %2267 = vmatpush.bf16.msra.mxu0 0
        %2268 = vmatpush.bf16.msra.mxu0 %v2256
        %2269 = vmatmul.bf16.gmra.mxu0 %v2259
        %v2270 = vpop.f32.mrf.mxu0
        %v2271 = vadd.f32 0.0, %v2270
        %v2272 = vpop.f32.mrf.mxu0
        %v2273 = vadd.f32 0.0, %v2272
        %2274 = vdwg.mxu0
        %2279 = vrot.lane.b32.xlu0 %v2131, 32
        %v2280 = vpop.permute.xlu0 %2279
        %2281 = vrot.lane.b32.xlu0 %v2133, 32
        %v2282 = vpop.permute.xlu0 %2281
        %2283 = vrot.lane.b32.xlu0 %v2159, 32
        %v2284 = vpop.permute.xlu0 %2283
        %2285 = vrot.lane.b32.xlu0 %v2161, 32
        %v2286 = vpop.permute.xlu0 %2285
        %2295 = vrot.lane.b32.xlu0 %v2187, 64
        %v2296 = vpop.permute.xlu0 %2295
        %2297 = vrot.lane.b32.xlu0 %v2189, 64
        %v2298 = vpop.permute.xlu0 %2297
        %2299 = vrot.lane.b32.xlu0 %v2215, 64
        %v2300 = vpop.permute.xlu0 %2299
        %2301 = vrot.lane.b32.xlu0 %v2217, 64
        %v2302 = vpop.permute.xlu0 %2301
        %2311 = vrot.lane.b32.xlu0 %v2243, 96
        %v2312 = vpop.permute.xlu0 %2311
        %2313 = vrot.lane.b32.xlu0 %v2245, 96
        %v2314 = vpop.permute.xlu0 %2313
        %2315 = vrot.lane.b32.xlu0 %v2271, 96
        %v2316 = vpop.permute.xlu0 %2315
        %2317 = vrot.lane.b32.xlu0 %v2273, 96
        %v2318 = vpop.permute.xlu0 %2317
        %v2323 = vsel %vm1571, %v2075, %v2280
        %v2324 = vsel %vm1571, %v2077, %v2282
        %v2325 = vsel %vm1571, %v2103, %v2284
        %v2326 = vsel %vm1571, %v2105, %v2286
        %vm2327 = vcmask 523264
        %v2328 = vsel %vm2327, %v2323, %v2296
        %v2329 = vsel %vm2327, %v2324, %v2298
        %v2330 = vsel %vm2327, %v2325, %v2300
        %v2331 = vsel %vm2327, %v2326, %v2302
        %vm2332 = vcmask 785408
        %v2333 = vsel %vm2332, %v2328, %v2312
        %v2334 = vsel %vm2332, %v2329, %v2314
        %v2335 = vsel %vm2332, %v2330, %v2316
        %v2336 = vsel %vm2332, %v2331, %v2318
        %v2337 = vpack.c.bf16 %v2334, %v2333
        %v2338 = vpack.c.bf16 %v2336, %v2335
        %v2339 = vld [vmem:[%s878] sm:$0xf]
        %v2340 = vld [vmem:[%s878 + $0x4] sm:$0xf]
        %v2341 = vld [vmem:[%s878 + $0x8] sm:$0xf]
        %v2342 = vld [vmem:[%s878 + $0xc] sm:$0xf]
        %v2343 = vld [vmem:[%s878 + $0x10] sm:$0xf]
        %v2344 = vld [vmem:[%s878 + $0x14] sm:$0xf]
        %v2345 = vld [vmem:[%s878 + $0x18] sm:$0xf]
        %v2346 = vld [vmem:[%s878 + $0x1c] sm:$0xf]
        %v2347 = vld [vmem:[%s878 + $0x20] sm:$0xf]
        %v2348 = vld [vmem:[%s878 + $0x24] sm:$0xf]
        %v2349 = vld [vmem:[%s878 + $0x28] sm:$0xf]
        %v2350 = vld [vmem:[%s878 + $0x2c] sm:$0xf]
        %v2351 = vld [vmem:[%s878 + $0x30] sm:$0xf]
        %v2352 = vld [vmem:[%s878 + $0x34] sm:$0xf]
        %v2353 = vld [vmem:[%s878 + $0x38] sm:$0xf]
        %v2354 = vld [vmem:[%s878 + $0x3c] sm:$0xf]
        %v2355 = vld [vmem:[%s1034] sm:$0x1]
        %v2357 = vperm.slane %v2355, 0
        %v2375 = vunpack.c.l.b16 %v2339
        %v2376 = vunpack.c.l.b16 %v2340
        %v2377 = vunpack.c.l.b16 %v2341
        %v2378 = vunpack.c.l.b16 %v2342
        %v2379 = vunpack.c.l.b16 %v2343
        %v2380 = vunpack.c.l.b16 %v2344
        %v2381 = vunpack.c.l.b16 %v2345
        %v2382 = vunpack.c.l.b16 %v2346
        %v2383 = vunpack.c.l.b16 %v2347
        %v2384 = vunpack.c.l.b16 %v2348
        %v2385 = vunpack.c.l.b16 %v2349
        %v2386 = vunpack.c.l.b16 %v2350
        %v2387 = vunpack.c.l.b16 %v2351
        %v2388 = vunpack.c.l.b16 %v2352
        %v2389 = vunpack.c.l.b16 %v2353
        %v2390 = vunpack.c.l.b16 %v2354
        %v2391 = vpack.c.b16 %v2376, %v2375
        %v2392 = vpack.c.b16 %v2378, %v2377
        %v2393 = vpack.c.b16 %v2380, %v2379
        %v2394 = vpack.c.b16 %v2382, %v2381
        %v2395 = vpack.c.b16 %v2384, %v2383
        %v2396 = vpack.c.b16 %v2386, %v2385
        %v2397 = vpack.c.b16 %v2388, %v2387
        %v2398 = vpack.c.b16 %v2390, %v2389
        %2407 = vmatpush.bf16.msra.mxu0 %v2398
        %2408 = vmatpush.bf16.msra.mxu0 %v2397
        %2409 = vmatpush.bf16.msra.mxu0 %v2396
        %2410 = vmatpush.bf16.msra.mxu0 %v2395
        %2411 = vmatpush.bf16.msra.mxu0 %v2394
        %2412 = vmatpush.bf16.msra.mxu0 %v2393
        %2413 = vmatpush.bf16.msra.mxu0 %v2392
        %2414 = vmatpush.bf16.msra.mxu0 %v2391
        %2415 = vmatmul.bf16.gmra.mxu0 %v2337
        %v2416 = vpop.f32.mrf.mxu0
        %v2417 = vadd.f32 %v2357, %v2416
        %v2418 = vpop.f32.mrf.mxu0
        %v2419 = vadd.f32 %v2357, %v2418
        %2420 = vmatmul.bf16.gmra.mxu0 %v2338
        %v2421 = vpop.f32.mrf.mxu0
        %v2422 = vadd.f32 %v2357, %v2421
        %v2423 = vpop.f32.mrf.mxu0
        %v2424 = vadd.f32 %v2357, %v2423
        %2425 = vdwg.mxu0
        %v2426 = vadd.f32 %v1058, %v2417
        %v2427 = vadd.f32 %v1059, %v2419
        %v2428 = vadd.f32 %v1060, %v2422
        %v2429 = vadd.f32 %v1061, %v2424
        %v2430 = vld [vmem:[%s905] sm:$0x1]
        %v2431 = vld [vmem:[%s1037] sm:$0x1]
        %2432 = vadd.xlane.f32.xlu0 %v2426
        %v2433 = vpop.xlane.xlu0 %2432
        %2434 = vadd.xlane.f32.xlu0 %v2427
        %v2435 = vpop.xlane.xlu0 %2434
        %2436 = vadd.xlane.f32.xlu0 %v2428
        %v2437 = vpop.xlane.xlu0 %2436
        %2438 = vadd.xlane.f32.xlu0 %v2429
        %v2439 = vpop.xlane.xlu0 %2438
        %v2440 = vmul.f32 %v2433, %v1079
        %v2441 = vmul.f32 %v2435, %v1079
        %v2442 = vmul.f32 %v2437, %v1079
        %v2443 = vmul.f32 %v2439, %v1079
        %v2444 = vsub.f32 %v2426, %v2440
        %v2445 = vsub.f32 %v2427, %v2441
        %v2446 = vsub.f32 %v2428, %v2442
        %v2447 = vsub.f32 %v2429, %v2443
        %v2448 = vmul.f32 %v2444, %v2444
        %v2449 = vmul.f32 %v2445, %v2445
        %v2450 = vmul.f32 %v2446, %v2446
        %v2451 = vmul.f32 %v2447, %v2447
        %2452 = vadd.xlane.f32.xlu0 %v2448
        %v2453 = vpop.xlane.xlu0 %2452
        %2454 = vadd.xlane.f32.xlu0 %v2449
        %v2455 = vpop.xlane.xlu0 %2454
        %2456 = vadd.xlane.f32.xlu0 %v2450
        %v2457 = vpop.xlane.xlu0 %2456
        %2458 = vadd.xlane.f32.xlu0 %v2451
        %v2459 = vpop.xlane.xlu0 %2458
        %v2460 = vmul.f32 %v2453, %v1079
        %v2461 = vmul.f32 %v2455, %v1079
        %v2462 = vmul.f32 %v2457, %v1079
        %v2463 = vmul.f32 %v2459, %v1079
        %v2464 = vadd.f32 %v2460, 1e-05
        %v2465 = vadd.f32 %v2461, 1e-05
        %v2466 = vadd.f32 %v2462, 1e-05
        %v2467 = vadd.f32 %v2463, 1e-05
        %v2468 = vrsqrt.pop %v2464
        %v2469 = vmul.f32 %v2468, %v2464
        %v2470 = vmul.f32 %v2469, %v2468
        %v2471 = vmul.f32 0.5, %v2470
        %v2472 = vsub.f32 1.5, %v2471
        %v2473 = vmul.f32 %v2468, %v2472
        %vm2474 = vweird.f32 %v2464
        %vm2475 = vweird.f32 %v2468
        %vm2476 = vmor %vm2474, %vm2475
        %v2477 = vsel %vm2476, %v2468, %v2473
        %v2478 = vrsqrt.pop %v2465
        %v2479 = vmul.f32 %v2478, %v2465
        %v2480 = vmul.f32 %v2479, %v2478
        %v2481 = vmul.f32 0.5, %v2480
        %v2482 = vsub.f32 1.5, %v2481
        %v2483 = vmul.f32 %v2478, %v2482
        %vm2484 = vweird.f32 %v2465
        %vm2485 = vweird.f32 %v2478
        %vm2486 = vmor %vm2484, %vm2485
        %v2487 = vsel %vm2486, %v2478, %v2483
        %v2488 = vrsqrt.pop %v2466
        %v2489 = vmul.f32 %v2488, %v2466
        %v2490 = vmul.f32 %v2489, %v2488
        %v2491 = vmul.f32 0.5, %v2490
        %v2492 = vsub.f32 1.5, %v2491
        %v2493 = vmul.f32 %v2488, %v2492
        %vm2494 = vweird.f32 %v2466
        %vm2495 = vweird.f32 %v2488
        %vm2496 = vmor %vm2494, %vm2495
        %v2497 = vsel %vm2496, %v2488, %v2493
        %v2498 = vrsqrt.pop %v2467
        %v2499 = vmul.f32 %v2498, %v2467
        %v2500 = vmul.f32 %v2499, %v2498
        %v2501 = vmul.f32 0.5, %v2500
        %v2502 = vsub.f32 1.5, %v2501
        %v2503 = vmul.f32 %v2498, %v2502
        %vm2504 = vweird.f32 %v2467
        %vm2505 = vweird.f32 %v2498
        %vm2506 = vmor %vm2504, %vm2505
        %v2507 = vsel %vm2506, %v2498, %v2503
        %v2508 = vmul.f32 %v2444, %v2477
        %v2509 = vmul.f32 %v2445, %v2487
        %v2510 = vmul.f32 %v2446, %v2497
        %v2511 = vmul.f32 %v2447, %v2507
        %v2513 = vperm.slane %v2430, 0
        %v2515 = vmul.f32 %v2508, %v2513
        %v2516 = vmul.f32 %v2509, %v2513
        %v2517 = vmul.f32 %v2510, %v2513
        %v2518 = vmul.f32 %v2511, %v2513
        %v2520 = vperm.slane %v2431, 0
        %v2522 = vadd.f32 %v2515, %v2520
        %v2523 = vadd.f32 %v2516, %v2520
        %v2524 = vadd.f32 %v2517, %v2520
        %v2525 = vadd.f32 %v2518, %v2520
        %v2526 = vpack.c.bf16 %v2523, %v2522
        %v2527 = vpack.c.bf16 %v2525, %v2524
        %v2528 = vld [vmem:[%s915] sm:$0xff]
        %v2529 = vld [vmem:[%s915 + $0x8] sm:$0xff]
        %v2530 = vld [vmem:[%s915 + $0x10] sm:$0xff]
        %v2531 = vld [vmem:[%s915 + $0x18] sm:$0xff]
        %v2532 = vld [vmem:[%s915 + $0x20] sm:$0xff]
        %v2533 = vld [vmem:[%s915 + $0x28] sm:$0xff]
        %v2534 = vld [vmem:[%s915 + $0x30] sm:$0xff]
        %v2535 = vld [vmem:[%s915 + $0x38] sm:$0xff]
        %v2536 = vld [vmem:[%s915 + $0x40] sm:$0xff]
        %v2537 = vld [vmem:[%s915 + $0x48] sm:$0xff]
        %v2538 = vld [vmem:[%s915 + $0x50] sm:$0xff]
        %v2539 = vld [vmem:[%s915 + $0x58] sm:$0xff]
        %v2540 = vld [vmem:[%s915 + $0x60] sm:$0xff]
        %v2541 = vld [vmem:[%s915 + $0x68] sm:$0xff]
        %v2542 = vld [vmem:[%s915 + $0x70] sm:$0xff]
        %v2543 = vld [vmem:[%s915 + $0x78] sm:$0xff]
        %v2544 = vld [vmem:[%s1041] sm:$0x3]
        %v2546 = vperm.slane %v2544, 0
        %v2547 = vperm.slane %v2544, 1
        %v2566 = vunpack.c.l.b16 %v2528
        %v2567 = vunpack.c.h.b16 %v2528
        %v2568 = vunpack.c.l.b16 %v2529
        %v2569 = vunpack.c.h.b16 %v2529
        %v2570 = vunpack.c.l.b16 %v2530
        %v2571 = vunpack.c.h.b16 %v2530
        %v2572 = vunpack.c.l.b16 %v2531
        %v2573 = vunpack.c.h.b16 %v2531
        %v2574 = vunpack.c.l.b16 %v2532
        %v2575 = vunpack.c.h.b16 %v2532
        %v2576 = vunpack.c.l.b16 %v2533
        %v2577 = vunpack.c.h.b16 %v2533
        %v2578 = vunpack.c.l.b16 %v2534
        %v2579 = vunpack.c.h.b16 %v2534
        %v2580 = vunpack.c.l.b16 %v2535
        %v2581 = vunpack.c.h.b16 %v2535
        %v2582 = vunpack.c.l.b16 %v2536
        %v2583 = vunpack.c.h.b16 %v2536
        %v2584 = vunpack.c.l.b16 %v2537
        %v2585 = vunpack.c.h.b16 %v2537
        %v2586 = vunpack.c.l.b16 %v2538
        %v2587 = vunpack.c.h.b16 %v2538
        %v2588 = vunpack.c.l.b16 %v2539
        %v2589 = vunpack.c.h.b16 %v2539
        %v2590 = vunpack.c.l.b16 %v2540
        %v2591 = vunpack.c.h.b16 %v2540
        %v2592 = vunpack.c.l.b16 %v2541
        %v2593 = vunpack.c.h.b16 %v2541
        %v2594 = vunpack.c.l.b16 %v2542
        %v2595 = vunpack.c.h.b16 %v2542
        %v2596 = vunpack.c.l.b16 %v2543
        %v2597 = vunpack.c.h.b16 %v2543
        %v2598 = vpack.c.b16 %v2568, %v2566
        %v2599 = vpack.c.b16 %v2569, %v2567
        %v2600 = vpack.c.b16 %v2572, %v2570
        %v2601 = vpack.c.b16 %v2573, %v2571
        %v2602 = vpack.c.b16 %v2576, %v2574
        %v2603 = vpack.c.b16 %v2577, %v2575
        %v2604 = vpack.c.b16 %v2580, %v2578
        %v2605 = vpack.c.b16 %v2581, %v2579
        %v2606 = vpack.c.b16 %v2584, %v2582
        %v2607 = vpack.c.b16 %v2585, %v2583
        %v2608 = vpack.c.b16 %v2588, %v2586
        %v2609 = vpack.c.b16 %v2589, %v2587
        %v2610 = vpack.c.b16 %v2592, %v2590
        %v2611 = vpack.c.b16 %v2593, %v2591
        %v2612 = vpack.c.b16 %v2596, %v2594
        %v2613 = vpack.c.b16 %v2597, %v2595
        %2630 = vmatpush.bf16.msra.mxu0 %v2612
        %2631 = vmatpush.bf16.msra.mxu0 %v2610
        %2632 = vmatpush.bf16.msra.mxu0 %v2608
        %2633 = vmatpush.bf16.msra.mxu0 %v2606
        %2634 = vmatpush.bf16.msra.mxu0 %v2604
        %2635 = vmatpush.bf16.msra.mxu0 %v2602
        %2636 = vmatpush.bf16.msra.mxu0 %v2600
        %2637 = vmatpush.bf16.msra.mxu0 %v2598
        %2638 = vmatmul.bf16.gmra.mxu0 %v2526
        %v2639 = vpop.f32.mrf.mxu0
        %v2640 = vadd.f32 %v2546, %v2639
        %v2641 = vpop.f32.mrf.mxu0
        %v2642 = vadd.f32 %v2546, %v2641
        %2643 = vmatmul.bf16.gmra.mxu0 %v2527
        %v2644 = vpop.f32.mrf.mxu0
        %v2645 = vadd.f32 %v2546, %v2644
        %v2646 = vpop.f32.mrf.mxu0
        %v2647 = vadd.f32 %v2546, %v2646
        %2648 = vdwg.mxu0
        %2649 = vmatpush.bf16.msra.mxu0 %v2613
        %2650 = vmatpush.bf16.msra.mxu0 %v2611
        %2651 = vmatpush.bf16.msra.mxu0 %v2609
        %2652 = vmatpush.bf16.msra.mxu0 %v2607
        %2653 = vmatpush.bf16.msra.mxu0 %v2605
        %2654 = vmatpush.bf16.msra.mxu0 %v2603
        %2655 = vmatpush.bf16.msra.mxu0 %v2601
        %2656 = vmatpush.bf16.msra.mxu0 %v2599
        %2657 = vmatmul.bf16.gmra.mxu0 %v2526
        %v2658 = vpop.f32.mrf.mxu0
        %v2659 = vadd.f32 %v2547, %v2658
        %v2660 = vpop.f32.mrf.mxu0
        %v2661 = vadd.f32 %v2547, %v2660
        %2662 = vmatmul.bf16.gmra.mxu0 %v2527
        %v2663 = vpop.f32.mrf.mxu0
        %v2664 = vadd.f32 %v2547, %v2663
        %v2665 = vpop.f32.mrf.mxu0
        %v2666 = vadd.f32 %v2547, %v2665
        %2667 = vdwg.mxu0
        %v2668 = vmul.f32 %v2640, 0.5
        %v2669 = vmul.f32 %v2659, 0.5
        %v2670 = vmul.f32 %v2642, 0.5
        %v2671 = vmul.f32 %v2661, 0.5
        %v2672 = vmul.f32 %v2645, 0.5
        %v2673 = vmul.f32 %v2664, 0.5
        %v2674 = vmul.f32 %v2647, 0.5
        %v2675 = vmul.f32 %v2666, 0.5
        %v2676 = vmul.f32 %v2640, 0.044715
        %v2677 = vmul.f32 %v2659, 0.044715
        %v2678 = vmul.f32 %v2642, 0.044715
        %v2679 = vmul.f32 %v2661, 0.044715
        %v2680 = vmul.f32 %v2645, 0.044715
        %v2681 = vmul.f32 %v2664, 0.044715
        %v2682 = vmul.f32 %v2647, 0.044715
        %v2683 = vmul.f32 %v2666, 0.044715
        %v2684 = vmul.f32 %v2676, %v2640
        %v2685 = vmul.f32 %v2677, %v2659
        %v2686 = vmul.f32 %v2678, %v2642
        %v2687 = vmul.f32 %v2679, %v2661
        %v2688 = vmul.f32 %v2680, %v2645
        %v2689 = vmul.f32 %v2681, %v2664
        %v2690 = vmul.f32 %v2682, %v2647
        %v2691 = vmul.f32 %v2683, %v2666
        %v2692 = vmul.f32 %v2684, %v2640
        %v2693 = vmul.f32 %v2685, %v2659
        %v2694 = vmul.f32 %v2686, %v2642
        %v2695 = vmul.f32 %v2687, %v2661
        %v2696 = vmul.f32 %v2688, %v2645
        %v2697 = vmul.f32 %v2689, %v2664
        %v2698 = vmul.f32 %v2690, %v2647
        %v2699 = vmul.f32 %v2691, %v2666
        %v2700 = vadd.f32 %v2640, %v2692
        %v2701 = vadd.f32 %v2659, %v2693
        %v2702 = vadd.f32 %v2642, %v2694
        %v2703 = vadd.f32 %v2661, %v2695
        %v2704 = vadd.f32 %v2645, %v2696
        %v2705 = vadd.f32 %v2664, %v2697
        %v2706 = vadd.f32 %v2647, %v2698
        %v2707 = vadd.f32 %v2666, %v2699
        %v2708 = vmul.f32 %v2700, 0.7978846
        %v2709 = vmul.f32 %v2701, 0.7978846
        %v2710 = vmul.f32 %v2702, 0.7978846
        %v2711 = vmul.f32 %v2703, 0.7978846
        %v2712 = vmul.f32 %v2704, 0.7978846
        %v2713 = vmul.f32 %v2705, 0.7978846
        %v2714 = vmul.f32 %v2706, 0.7978846
        %v2715 = vmul.f32 %v2707, 0.7978846
        %v2716 = vtanh.pop %v2708
        %v2717 = vtanh.pop %v2709
        %v2718 = vtanh.pop %v2710
        %v2719 = vtanh.pop %v2711
        %v2720 = vtanh.pop %v2712
        %v2721 = vtanh.pop %v2713
        %v2722 = vtanh.pop %v2714
        %v2723 = vtanh.pop %v2715
        %v2724 = vadd.f32 %v2716, 1.0
        %v2725 = vadd.f32 %v2717, 1.0
        %v2726 = vadd.f32 %v2718, 1.0
        %v2727 = vadd.f32 %v2719, 1.0
        %v2728 = vadd.f32 %v2720, 1.0
        %v2729 = vadd.f32 %v2721, 1.0
        %v2730 = vadd.f32 %v2722, 1.0
        %v2731 = vadd.f32 %v2723, 1.0
        %v2732 = vmul.f32 %v2668, %v2724
        %v2733 = vmul.f32 %v2669, %v2725
        %v2734 = vmul.f32 %v2670, %v2726
        %v2735 = vmul.f32 %v2671, %v2727
        %v2736 = vmul.f32 %v2672, %v2728
        %v2737 = vmul.f32 %v2673, %v2729
        %v2738 = vmul.f32 %v2674, %v2730
        %v2739 = vmul.f32 %v2675, %v2731
        %v2740 = vpack.c.bf16 %v2734, %v2732
        %v2741 = vpack.c.bf16 %v2735, %v2733
        %v2742 = vpack.c.bf16 %v2738, %v2736
        %v2743 = vpack.c.bf16 %v2739, %v2737
        %v2744 = vld [vmem:[%s925] sm:$0xf]
        %v2745 = vld [vmem:[%s925 + $0x4] sm:$0xf]
        %v2746 = vld [vmem:[%s925 + $0x8] sm:$0xf]
        %v2747 = vld [vmem:[%s925 + $0xc] sm:$0xf]
        %v2748 = vld [vmem:[%s925 + $0x10] sm:$0xf]
        %v2749 = vld [vmem:[%s925 + $0x14] sm:$0xf]
        %v2750 = vld [vmem:[%s925 + $0x18] sm:$0xf]
        %v2751 = vld [vmem:[%s925 + $0x1c] sm:$0xf]
        %v2752 = vld [vmem:[%s925 + $0x20] sm:$0xf]
        %v2753 = vld [vmem:[%s925 + $0x24] sm:$0xf]
        %v2754 = vld [vmem:[%s925 + $0x28] sm:$0xf]
        %v2755 = vld [vmem:[%s925 + $0x2c] sm:$0xf]
        %v2756 = vld [vmem:[%s925 + $0x30] sm:$0xf]
        %v2757 = vld [vmem:[%s925 + $0x34] sm:$0xf]
        %v2758 = vld [vmem:[%s925 + $0x38] sm:$0xf]
        %v2759 = vld [vmem:[%s925 + $0x3c] sm:$0xf]
        %v2760 = vld [vmem:[%s925 + $0x40] sm:$0xf]
        %v2761 = vld [vmem:[%s925 + $0x44] sm:$0xf]
        %v2762 = vld [vmem:[%s925 + $0x48] sm:$0xf]
        %v2763 = vld [vmem:[%s925 + $0x4c] sm:$0xf]
        %v2764 = vld [vmem:[%s925 + $0x50] sm:$0xf]
        %v2765 = vld [vmem:[%s925 + $0x54] sm:$0xf]
        %v2766 = vld [vmem:[%s925 + $0x58] sm:$0xf]
        %v2767 = vld [vmem:[%s925 + $0x5c] sm:$0xf]
        %v2768 = vld [vmem:[%s925 + $0x60] sm:$0xf]
        %v2769 = vld [vmem:[%s925 + $0x64] sm:$0xf]
        %v2770 = vld [vmem:[%s925 + $0x68] sm:$0xf]
        %v2771 = vld [vmem:[%s925 + $0x6c] sm:$0xf]
        %v2772 = vld [vmem:[%s925 + $0x70] sm:$0xf]
        %v2773 = vld [vmem:[%s925 + $0x74] sm:$0xf]
        %v2774 = vld [vmem:[%s925 + $0x78] sm:$0xf]
        %v2775 = vld [vmem:[%s925 + $0x7c] sm:$0xf]
        %v2776 = vld [vmem:[%s1044] sm:$0x1]
        %v2778 = vperm.slane %v2776, 0
        %v2812 = vunpack.c.l.b16 %v2744
        %v2813 = vunpack.c.l.b16 %v2745
        %v2814 = vunpack.c.l.b16 %v2746
        %v2815 = vunpack.c.l.b16 %v2747
        %v2816 = vunpack.c.l.b16 %v2748
        %v2817 = vunpack.c.l.b16 %v2749
        %v2818 = vunpack.c.l.b16 %v2750
        %v2819 = vunpack.c.l.b16 %v2751
        %v2820 = vunpack.c.l.b16 %v2752
        %v2821 = vunpack.c.l.b16 %v2753
        %v2822 = vunpack.c.l.b16 %v2754
        %v2823 = vunpack.c.l.b16 %v2755
        %v2824 = vunpack.c.l.b16 %v2756
        %v2825 = vunpack.c.l.b16 %v2757
        %v2826 = vunpack.c.l.b16 %v2758
        %v2827 = vunpack.c.l.b16 %v2759
        %v2828 = vunpack.c.l.b16 %v2760
        %v2829 = vunpack.c.l.b16 %v2761
        %v2830 = vunpack.c.l.b16 %v2762
        %v2831 = vunpack.c.l.b16 %v2763
        %v2832 = vunpack.c.l.b16 %v2764
        %v2833 = vunpack.c.l.b16 %v2765
        %v2834 = vunpack.c.l.b16 %v2766
        %v2835 = vunpack.c.l.b16 %v2767
        %v2836 = vunpack.c.l.b16 %v2768
        %v2837 = vunpack.c.l.b16 %v2769
        %v2838 = vunpack.c.l.b16 %v2770
        %v2839 = vunpack.c.l.b16 %v2771
        %v2840 = vunpack.c.l.b16 %v2772
        %v2841 = vunpack.c.l.b16 %v2773
        %v2842 = vunpack.c.l.b16 %v2774
        %v2843 = vunpack.c.l.b16 %v2775
        %v2844 = vpack.c.b16 %v2813, %v2812
        %v2845 = vpack.c.b16 %v2815, %v2814
        %v2846 = vpack.c.b16 %v2817, %v2816
        %v2847 = vpack.c.b16 %v2819, %v2818
        %v2848 = vpack.c.b16 %v2821, %v2820
        %v2849 = vpack.c.b16 %v2823, %v2822
        %v2850 = vpack.c.b16 %v2825, %v2824
        %v2851 = vpack.c.b16 %v2827, %v2826
        %v2852 = vpack.c.b16 %v2829, %v2828
        %v2853 = vpack.c.b16 %v2831, %v2830
        %v2854 = vpack.c.b16 %v2833, %v2832
        %v2855 = vpack.c.b16 %v2835, %v2834
        %v2856 = vpack.c.b16 %v2837, %v2836
        %v2857 = vpack.c.b16 %v2839, %v2838
        %v2858 = vpack.c.b16 %v2841, %v2840
        %v2859 = vpack.c.b16 %v2843, %v2842
        %2876 = vmatpush.bf16.msra.mxu0 %v2851
        %2877 = vmatpush.bf16.msra.mxu0 %v2850
        %2878 = vmatpush.bf16.msra.mxu0 %v2849
        %2879 = vmatpush.bf16.msra.mxu0 %v2848
        %2880 = vmatpush.bf16.msra.mxu0 %v2847
        %2881 = vmatpush.bf16.msra.mxu0 %v2846
        %2882 = vmatpush.bf16.msra.mxu0 %v2845
        %2883 = vmatpush.bf16.msra.mxu0 %v2844
        %2884 = vmatmul.bf16.gmra.mxu0 %v2740
        %v2885 = vpop.f32.mrf.mxu0
        %v2886 = vadd.f32 %v2778, %v2885
        %v2887 = vpop.f32.mrf.mxu0
        %v2888 = vadd.f32 %v2778, %v2887
        %2889 = vmatmul.bf16.gmra.mxu0 %v2742
        %v2890 = vpop.f32.mrf.mxu0
        %v2891 = vadd.f32 %v2778, %v2890
        %v2892 = vpop.f32.mrf.mxu0
        %v2893 = vadd.f32 %v2778, %v2892
        %2894 = vdwg.mxu0
        %2895 = vmatpush.bf16.msra.mxu0 %v2859
        %2896 = vmatpush.bf16.msra.mxu0 %v2858
        %2897 = vmatpush.bf16.msra.mxu0 %v2857
        %2898 = vmatpush.bf16.msra.mxu0 %v2856
        %2899 = vmatpush.bf16.msra.mxu0 %v2855
        %2900 = vmatpush.bf16.msra.mxu0 %v2854
        %2901 = vmatpush.bf16.msra.mxu0 %v2853
        %2902 = vmatpush.bf16.msra.mxu0 %v2852
        %2903 = vmatmul.bf16.gmra.mxu0 %v2741
        %v2904 = vpop.f32.mrf.mxu0
        %v2905 = vadd.f32 %v2886, %v2904
        %v2906 = vpop.f32.mrf.mxu0
        %v2907 = vadd.f32 %v2888, %v2906
        %2908 = vmatmul.bf16.gmra.mxu0 %v2743
        %v2909 = vpop.f32.mrf.mxu0
        %v2910 = vadd.f32 %v2891, %v2909
        %v2911 = vpop.f32.mrf.mxu0
        %v2912 = vadd.f32 %v2893, %v2911
        %2913 = vdwg.mxu0
        %v2914 = vadd.f32 %v2426, %v2905
        %v2915 = vadd.f32 %v2427, %v2907
        %v2916 = vadd.f32 %v2428, %v2910
        %v2917 = vadd.f32 %v2429, %v2912
        %2918 = vst [vmem:[#allocation2] sm:$0xff] %v2914
        %2919 = vst [vmem:[#allocation2 + $0x8] sm:$0xff] %v2915
        %2920 = vst [vmem:[#allocation2 + $0x10] sm:$0xff] %v2916
        %2921 = vst [vmem:[#allocation2 + $0x18] sm:$0xff] %v2917
        %p2922 = scmp.eq.s32.totalorder %s36, 1
        // Predicated region
        $region157: #{tpu_custom_call.1} parent=107 // pred_check
          %p2923 = pneg %p2922
        $region158: #{tpu_custom_call.1} parent=107 // pred_check_branch
          %2925 = sbr.rel (%p2923) target = $region160
        $region159: #{tpu_custom_call.1} parent=107 // pred_region
          %v2927 = vrot.slane %v2916, 7
          %vm2929 = vcmask 1040384
          %v2930 = vsel %vm2929, %v2914, %v2927
          %v2931 = vld [vmem:[%s14] sm:$0x1]
          %v2932 = vld [vmem:[%s15] sm:$0x1]
          %vm2933 = vcmask 1041408
          %v2934 = vsel %vm2933, %v2930, 0.0
          %2935 = vadd.xlane.f32.xlu0 %v2934
          %v2936 = vpop.xlane.xlu0 %2935
          %v2937 = vmul.f32 %v2936, %v1079
          %v2938 = vsub.f32 %v2930, %v2937
          %v2939 = vmul.f32 %v2938, %v2938
          %v2940 = vsel %vm2933, %v2939, 0.0
          %2941 = vadd.xlane.f32.xlu0 %v2940
          %v2942 = vpop.xlane.xlu0 %2941
          %v2943 = vmul.f32 %v2942, %v1079
          %v2944 = vadd.f32 %v2943, 1e-05
          %v2945 = vrsqrt.pop %v2944
          %v2946 = vmul.f32 %v2945, %v2944
          %v2947 = vmul.f32 %v2946, %v2945
          %v2948 = vmul.f32 0.5, %v2947
          %v2949 = vsub.f32 1.5, %v2948
          %v2950 = vmul.f32 %v2945, %v2949
          %vm2951 = vweird.f32 %v2944
          %vm2952 = vweird.f32 %v2945
          %vm2953 = vmor %vm2951, %vm2952
          %v2954 = vsel %vm2953, %v2945, %v2950
          %v2955 = vmul.f32 %v2938, %v2954
          %v2957 = vperm.slane %v2931, 0
          %v2959 = vmul.f32 %v2955, %v2957
          %v2961 = vperm.slane %v2932, 0
          %v2963 = vadd.f32 %v2959, %v2961
          %v2964 = vld [vmem:[%s16] sm:$0x1]
          %v2966 = vperm.slane %v2964, 0
          %v2968 = vsub.f32 %v2963, %v2966
          %v2969 = vld [vmem:[%s17] sm:$0x1]
          %v2970 = vadd.f32 %v2969, 1e-05
          %v2971 = vrsqrt.pop %v2970
          %v2972 = vmul.f32 %v2971, %v2970
          %v2973 = vmul.f32 %v2972, %v2971
          %v2974 = vmul.f32 0.5, %v2973
          %v2975 = vsub.f32 1.5, %v2974
          %v2976 = vmul.f32 %v2971, %v2975
          %vm2977 = vweird.f32 %v2970
          %vm2978 = vweird.f32 %v2971
          %vm2979 = vmor %vm2977, %vm2978
          %v2980 = vsel %vm2979, %v2971, %v2976
          %v2982 = vperm.slane %v2980, 0
          %v2984 = vmul.f32 %v2968, %v2982
          %v2985 = vld [vmem:[%s18] sm:$0x1]
          %v2987 = vperm.slane %v2985, 0
          %v2989 = vmul.f32 %v2984, %v2987
          %v2990 = vld [vmem:[%s19] sm:$0x1]
          %v2992 = vperm.slane %v2990, 0
          %v2994 = vadd.f32 %v2989, %v2992
          %v2995 = vpack.c.bf16 %v2994, %v2994
          %v2996 = vld [vmem:[#allocation16] sm:$0xf]
          %v2997 = vld [vmem:[#allocation16 + $0x4] sm:$0xf]
          %v2998 = vld [vmem:[#allocation16 + $0x8] sm:$0xf]
          %v2999 = vld [vmem:[#allocation16 + $0xc] sm:$0xf]
          %v3000 = vld [vmem:[#allocation16 + $0x10] sm:$0xf]
          %v3001 = vld [vmem:[#allocation16 + $0x14] sm:$0xf]
          %v3002 = vld [vmem:[#allocation16 + $0x18] sm:$0xf]
          %v3003 = vld [vmem:[#allocation16 + $0x1c] sm:$0xf]
          %v3004 = vld [vmem:[#allocation16 + $0x20] sm:$0xf]
          %v3005 = vld [vmem:[#allocation16 + $0x24] sm:$0xf]
          %v3006 = vld [vmem:[#allocation16 + $0x28] sm:$0xf]
          %v3007 = vld [vmem:[#allocation16 + $0x2c] sm:$0xf]
          %v3008 = vld [vmem:[#allocation16 + $0x30] sm:$0xf]
          %v3009 = vld [vmem:[#allocation16 + $0x34] sm:$0xf]
          %v3010 = vld [vmem:[#allocation16 + $0x38] sm:$0xf]
          %v3011 = vld [vmem:[#allocation16 + $0x3c] sm:$0xf]
          %v3012 = vld [vmem:[%s21] sm:$0x1]
          %v3014 = vperm.slane %v3012, 0
          %v3032 = vunpack.c.l.b16 %v2996
          %v3033 = vunpack.c.l.b16 %v2997
          %v3034 = vunpack.c.l.b16 %v2998
          %v3035 = vunpack.c.l.b16 %v2999
          %v3036 = vunpack.c.l.b16 %v3000
          %v3037 = vunpack.c.l.b16 %v3001
          %v3038 = vunpack.c.l.b16 %v3002
          %v3039 = vunpack.c.l.b16 %v3003
          %v3040 = vunpack.c.l.b16 %v3004
          %v3041 = vunpack.c.l.b16 %v3005
          %v3042 = vunpack.c.l.b16 %v3006
          %v3043 = vunpack.c.l.b16 %v3007
          %v3044 = vunpack.c.l.b16 %v3008
          %v3045 = vunpack.c.l.b16 %v3009
          %v3046 = vunpack.c.l.b16 %v3010
          %v3047 = vunpack.c.l.b16 %v3011
          %v3048 = vpack.c.b16 %v3033, %v3032
          %v3049 = vpack.c.b16 %v3035, %v3034
          %v3050 = vpack.c.b16 %v3037, %v3036
          %v3051 = vpack.c.b16 %v3039, %v3038
          %v3052 = vpack.c.b16 %v3041, %v3040
          %v3053 = vpack.c.b16 %v3043, %v3042
          %v3054 = vpack.c.b16 %v3045, %v3044
          %v3055 = vpack.c.b16 %v3047, %v3046
          %3064 = vmatpush.bf16.msra.mxu0 %v3055
          %3065 = vmatpush.bf16.msra.mxu0 %v3054
          %3066 = vmatpush.bf16.msra.mxu0 %v3053
          %3067 = vmatpush.bf16.msra.mxu0 %v3052
          %3068 = vmatpush.bf16.msra.mxu0 %v3051
          %3069 = vmatpush.bf16.msra.mxu0 %v3050
          %3070 = vmatpush.bf16.msra.mxu0 %v3049
          %3071 = vmatpush.bf16.msra.mxu0 %v3048
          %3072 = vmatmul.bf16.gmra.mxu0 %v2995
          %v3073 = vpop.f32.mrf.mxu0
          %v3074 = vadd.f32 %v3014, %v3073
          %v3075 = vpop.f32.mrf.mxu0
          %3076 = vdwg.mxu0
          %3077 = vst [vmem:[#allocation17] sm:$0x3] %v3074
        $region160: #{tpu_custom_call.1} parent=107 // pred_fallthru
          _
        // Predicated region
        $region161: #{tpu_custom_call.1} parent=107 // pred_check
          %p3078 = pneg %p571
        $region162: #{tpu_custom_call.1} parent=107 // pred_check_branch
          %3080 = sbr.rel (%p3078) target = $region164
        $region163: #{tpu_custom_call.1} parent=107 // pred_region
          %3082 = vsyncadd [#allocation5], 0
          %s3084 = sshll.u32 [#allocation17], 4
          %s3085 = int_to_ptr.vmem [resolvable:$true] %s3084
          %s3086 = sshll.u32 %s22, 4
          %s3087 = int_to_ptr.hbm [resolvable:$true] %s3086
          %3089 = dma.vmem_to_hbm [thread:$0]  %s3085, 32, %s3087, [#allocation5]
        $region164: #{tpu_custom_call.1} parent=107 // pred_fallthru
          _
        // Predicated region
        $region165: #{tpu_custom_call.1} parent=107 // pred_check
          %p3090 = pneg %p571
        $region166: #{tpu_custom_call.1} parent=107 // pred_check_branch
          %3092 = sbr.rel (%p3090) target = $region168
        $region167: #{tpu_custom_call.1} parent=107 // pred_region
          %3094 = dma.done [#allocation5], 32
        $region168: #{tpu_custom_call.1} parent=107 // pred_fallthru
          _
      $region108: #{tpu_custom_call.1} parent=5 // pred_fallthru
        _
      %p3095 = scmp.le.s32.totalorder 2, %s31
      // Predicated region
      $region169: #{tpu_custom_call.1} parent=5 // pred_check
        %p3096 = pneg %p3095
      $region170: #{tpu_custom_call.1} parent=5 // pred_check_branch
        %3098 = sbr.rel (%p3096) target = $region172
      $region171: #{tpu_custom_call.1} parent=5 // pred_region
        %s3099 = ssub.s32 %s31, 2
      $region172: #{tpu_custom_call.1} parent=5 // pred_fallthru
        _
    $region6: #{tpu_custom_call.1} parent=1 // loop_footer
      %s35 = sadd.s32 1, %s31
    $region7: #{tpu_custom_call.1} parent=1 // loop_footer_branch
      %30 = sbr.rel target = $region3
    $region8: #{tpu_custom_call.1} parent=1 // loop_exit
      _
    %3100 = vsyncpa [#allocation4], 1
    %s3101 = scalar_lea.sflag [#allocation4], 1
    %3102 = vsyncpa %s3101, 1
    %3103 = vsyncpa [#allocation7], 1
    %3104 = vsyncpa [#allocation5], 1
    %s3105 = scalar_lea.sflag [#allocation5], 1
    %3106 = vsyncpa %s3105, 1

</llo_original>
